<compile_context>
chip_gen: v7x
topology: tpu7x:2x2x1
jax: 0.10.0
libtpu: 0.0.40
codegen_flags: <defaults>
</compile_context>

<pallas_src>
import math

import numpy as np
import jax
import jax.numpy as jnp
from jax.experimental import pallas as pl
from jax.experimental.pallas import tpu as pltpu


K1 = 5                        # first conv kernel size
K2 = 3                        # second conv kernel size
PAD = (K1 - 1) // 2 + 1       # ReplicationPad1d amount (odd kernel)


# --------------------------------------------------------------------------
# Pallas kernel (single fused forward)
# --------------------------------------------------------------------------
def _conv_pair(xpad, w1, b1, w2, b2, lh):
    """Packed conv block: (already replication-padded input) -> Conv(k=K1) ->
    LeakyReLU(0.01) -> Dropout(eval identity) -> Conv(k=K2) -> Tanh.
    xpad: (lh + 2*PAD, width); w1/w2 are block-diagonal im2col weights."""
    l1 = lh + 2 * PAD - (K1 - 1)
    t1 = jnp.concatenate([xpad[j:j + l1, :] for j in range(K1)], axis=1)
    y1 = jnp.dot(t1, w1, preferred_element_type=jnp.float32) + b1
    y1 = jnp.where(y1 >= 0, y1, 0.01 * y1)                   # LeakyReLU(0.01)
    t2 = jnp.concatenate([y1[j:j + lh, :] for j in range(K2)], axis=1)
    y2 = jnp.dot(t2, w2, preferred_element_type=jnp.float32) + b2
    return jnp.tanh(y2)


def _level(s, eo_ref, w1_ref, b1_ref, w2_ref, b2_ref):
    """One breadth-first tree depth on the packed state.

    s: (L_d, W) with W = num_nodes * B * C (node-major lanes).
    Returns next depth's state (L_d // 2, 2*W) = [even-children | odd-children].
    """
    ld, w = s.shape
    lh = ld // 2
    # even/odd split + replication pad folded into one 0/1 row matrix per branch
    x1p = jnp.concatenate(
        [jnp.dot(eo_ref[0], s, preferred_element_type=jnp.float32),
         jnp.dot(eo_ref[1], s, preferred_element_type=jnp.float32)], axis=1)
    # round 1: [phi(x_even) | psi(x_odd)] for all nodes & batch, one conv pair
    z1 = _conv_pair(x1p, w1_ref[0], b1_ref[0], w2_ref[0], b2_ref[0], lh)
    x1u = x1p[PAD:PAD + lh, :]                               # [x_even | x_odd]
    m = jnp.concatenate([x1u[:, w:], x1u[:, :w]], axis=1)    # [x_odd  | x_even]
    dc = m * jnp.exp(z1)                                     # [d | c]
    # round 2: [U(d) | P(c)]
    dcp = jnp.concatenate(
        [jnp.broadcast_to(dc[0:1, :], (PAD, 2 * w)), dc,
         jnp.broadcast_to(dc[lh - 1:lh, :], (PAD, 2 * w))], axis=0)
    z2 = _conv_pair(dcp, w1_ref[1], b1_ref[1], w2_ref[1], b2_ref[1], lh)
    even_upd = dc[:, w:] + z2[:, :w]                         # c + U(d)
    odd_upd = dc[:, :w] - z2[:, w:]                          # d - P(c)
    return jnp.concatenate([even_upd, odd_upd], axis=1)


def _scinet_fused_kernel(*refs):
    """Whole SCINet forward: encoder tree + residual + projection1."""
    out_ref = refs[-1]
    s0_ref, xp_ref, wbig_ref = refs[0], refs[1], refs[2]
    depth_refs = refs[3:-1]
    num_levels = len(depth_refs) // 5

    s = s0_ref[...]
    for d in range(num_levels):
        eo, w1, b1, w2, b2 = depth_refs[5 * d:5 * d + 5]
        s = _level(s, eo, w1, b1, w2, b2)

    # residual add in the packed layout, then fold (un-permute + projection1)
    g = s + xp_ref[...]
    acc = jnp.zeros((1, out_ref.shape[1]), jnp.float32)
    for r in range(g.shape[0]):
        acc = acc + jnp.dot(g[r:r + 1, :], wbig_ref[r],
                            preferred_element_type=jnp.float32)
    out_ref[...] = acc


# --------------------------------------------------------------------------
# Parameter packing (host side, done once at setup)
# --------------------------------------------------------------------------
def _pack_block_diag(slot_convs, k, cin, cout):
    """slot_convs: per-lane-slot list of (w (k,cin,cout), b (cout,)).
    Returns block-diagonal im2col weight (k*S*cin, S*cout) and bias (1, S*cout)."""
    s = len(slot_convs)
    w_stack = jnp.stack([w for (w, _) in slot_convs])        # (S, k, cin, cout)
    b_stack = jnp.stack([b for (_, b) in slot_convs])        # (S, cout)
    eye = jnp.eye(s, dtype=w_stack.dtype)
    wbd = jnp.einsum('skio,st->ksito', w_stack, eye)
    return wbd.reshape(k * s * cin, s * cout), b_stack.reshape(1, s * cout)


def build_packed_params(tree_params, w_proj, length, batch, c, ch, num_levels):
    nodes = [(tree_params, list(range(length)))]
    depth_inputs = []
    for d in range(num_levels):
        n_nodes = len(nodes)
        ld = length >> d
        lh = ld // 2
        # fold even/odd split + replication pad into 0/1 row-selection matrices
        ep = np.zeros((lh + 2 * PAD, ld), np.float32)
        op = np.zeros((lh + 2 * PAD, ld), np.float32)
        for i in range(lh + 2 * PAD):
            j = min(max(i - PAD, 0), lh - 1)
            ep[i, 2 * j] = 1.0
            op[i, 2 * j + 1] = 1.0
        eo = jnp.asarray(np.stack([ep, op]))

        def slots_for(branch_names):
            conv1, conv2 = [], []
            for name in branch_names:               # branch 0, branch 1
                for n in range(n_nodes):            # node-major
                    blk = nodes[n][0]['block'][name]
                    for _ in range(batch):          # replicated across batch
                        conv1.append((blk['w1'], blk['b1']))
                        conv2.append((blk['w2'], blk['b2']))
            return conv1, conv2

        r1c1, r1c2 = slots_for(('phi', 'psi'))
        r2c1, r2c2 = slots_for(('U', 'P'))
        w1_r1, b1_r1 = _pack_block_diag(r1c1, K1, c, ch)
        w2_r1, b2_r1 = _pack_block_diag(r1c2, K2, ch, c)
        w1_r2, b1_r2 = _pack_block_diag(r2c1, K1, c, ch)
        w2_r2, b2_r2 = _pack_block_diag(r2c2, K2, ch, c)
        depth_inputs += [eo,
                         jnp.stack([w1_r1, w1_r2]),
                         jnp.stack([b1_r1, b1_r2]),
                         jnp.stack([w2_r1, w2_r2]),
                         jnp.stack([b2_r1, b2_r2])]

        is_leaf = (d == num_levels - 1)
        new_nodes = [((None if is_leaf else p['even']), t[0::2]) for (p, t) in nodes]
        new_nodes += [((None if is_leaf else p['odd']), t[1::2]) for (p, t) in nodes]
        nodes = new_nodes

    # packed leaf layout -> original time mapping (composition of all zip-ups)
    n_slots = 1 << num_levels
    rows = length // n_slots
    tmap = np.array([t for (_, t) in nodes], np.int32)       # (n_slots, rows)

    # fold un-permute + projection1 (Conv1d k=1 over time) into one matrix
    wp = np.asarray(w_proj)                                  # (O, L)
    wsel = np.transpose(wp[:, tmap], (2, 1, 0))              # (rows, slots, O)
    wbig = np.einsum('rso,bd,ce->rsbcdoe', wsel,
                     np.eye(batch, dtype=np.float32),
                     np.eye(c, dtype=np.float32))
    wbig = jnp.asarray(
        wbig.reshape(rows, n_slots * batch * c, batch * wp.shape[0] * c))
    return depth_inputs, wbig, tmap


def make_scinet_forward(tree_params, w_proj, length, batch, c, ch,
                        num_levels, out_len):
    assert length % (1 << num_levels) == 0
    depth_inputs, wbig, tmap = build_packed_params(
        tree_params, w_proj, length, batch, c, ch, num_levels)
    n_slots = 1 << num_levels
    rows = length // n_slots
    tmap_flat = tmap.reshape(-1)

    vmem = pl.BlockSpec(memory_space=pltpu.MemorySpace.VMEM)
    call = pl.pallas_call(
        _scinet_fused_kernel,
        out_shape=jax.ShapeDtypeStruct((1, batch * out_len * c), jnp.float32),
        in_specs=[vmem] * (3 + len(depth_inputs)),
        out_specs=vmem,
    )

    def forward(x):
        # depth-0 packed state: rows = time, lanes = (batch, channel)
        s0 = jnp.transpose(x, (1, 0, 2)).reshape(length, batch * c)
        # residual, pre-permuted into the kernel's final packed layout
        xg = x[:, tmap_flat, :]
        xp = jnp.transpose(xg.reshape(batch, n_slots, rows, c),
                           (2, 1, 0, 3)).reshape(rows, n_slots * batch * c)
        out = call(s0, xp, wbig, *depth_inputs)
        return out.reshape(batch, out_len, c)

    return forward


# --------------------------------------------------------------------------
# Deterministic parameter init (matches nn.Conv1d default uniform bounds)
# --------------------------------------------------------------------------
def init_conv_pair(key, c, ch):
    kw1, kb1, kw2, kb2 = jax.random.split(key, 4)
    bnd1 = 1.0 / math.sqrt(c * K1)
    bnd2 = 1.0 / math.sqrt(ch * K2)
    # stored transposed: w1[j, cin, cout] == torch_W1[cout, cin, j]
    return {'w1': jax.random.uniform(kw1, (K1, c, ch), jnp.float32, -bnd1, bnd1),
            'b1': jax.random.uniform(kb1, (ch,), jnp.float32, -bnd1, bnd1),
            'w2': jax.random.uniform(kw2, (K2, ch, c), jnp.float32, -bnd2, bnd2),
            'b2': jax.random.uniform(kb2, (c,), jnp.float32, -bnd2, bnd2)}


def init_block(key, c, ch):
    kphi, kpsi, ku, kp = jax.random.split(key, 4)
    return {'phi': init_conv_pair(kphi, c, ch), 'psi': init_conv_pair(kpsi, c, ch),
            'U': init_conv_pair(ku, c, ch), 'P': init_conv_pair(kp, c, ch)}


def init_tree(key, level, c, ch):
    kb, ke, ko = jax.random.split(key, 3)
    p = {'block': init_block(kb, c, ch)}
    if level != 0:
        p['even'] = init_tree(ke, level - 1, c, ch)
        p['odd'] = init_tree(ko, level - 1, c, ch)
    return p


# --------------------------------------------------------------------------
# Pure-JAX reference (direct translation of the PyTorch module) for validation
# --------------------------------------------------------------------------
def _ref_conv_block(x, p):
    top = jnp.repeat(x[:, :1, :], PAD, axis=1)
    bot = jnp.repeat(x[:, -1:, :], PAD, axis=1)
    xp = jnp.concatenate([top, x, bot], axis=1)
    lh = x.shape[1]
    l1 = lh + 2 * PAD - (K1 - 1)
    y1 = p['b1'][None, None, :]
    for j in range(K1):
        y1 = y1 + jnp.einsum('blc,ch->blh', xp[:, j:j + l1, :], p['w1'][j],
                             precision=jax.lax.Precision.HIGHEST)
    y1 = jnp.where(y1 >= 0, y1, 0.01 * y1)
    y2 = p['b2'][None, None, :]
    for j in range(K2):
        y2 = y2 + jnp.einsum('blh,hc->blc', y1[:, j:j + lh, :], p['w2'][j],
                             precision=jax.lax.Precision.HIGHEST)
    return jnp.tanh(y2)


def _ref_interactor(x, block):
    xe, xo = x[:, ::2, :], x[:, 1::2, :]
    d = xo * jnp.exp(_ref_conv_block(xe, block['phi']))
    c = xe * jnp.exp(_ref_conv_block(xo, block['psi']))
    return c + _ref_conv_block(d, block['U']), d - _ref_conv_block(c, block['P'])


def _ref_zip(e, o):
    b, m, c = e.shape
    return jnp.stack([e, o], axis=2).reshape(b, 2 * m, c)


def _ref_tree(x, params, level):
    e, o = _ref_interactor(x, params['block'])
    if level == 0:
        return _ref_zip(e, o)
    return _ref_zip(_ref_tree(e, params['even'], level - 1),
                    _ref_tree(o, params['odd'], level - 1))


def _ref_forward(x, tree_params, w_proj, num_levels):
    y = _ref_tree(x, tree_params, num_levels - 1) + x
    return jnp.einsum('ot,btc->boc', w_proj, y,
                      precision=jax.lax.Precision.HIGHEST)


# --------------------------------------------------------------------------
if __name__ == "__main__":
    # SCINet(output_len=4, input_len=16, output_dim=8, input_dim=8, hid_size=1,
    #        num_stacks=1, num_levels=3, num_decoder_layer=1, kernel=5)
    B, L, C, O = 2, 16, 8, 4
    NUM_LEVELS, HID = 3, 1
    CH = C * HID

    key = jax.random.PRNGKey(0)
    kx, ktree, kproj = jax.random.split(key, 3)
    x = jax.random.normal(kx, (B, L, C), jnp.float32)
    tree_params = init_tree(ktree, NUM_LEVELS - 1, C, CH)
    bnd = 1.0 / math.sqrt(L)        # Conv1d(input_len, output_len, 1, bias=False)
    w_proj = jax.random.uniform(kproj, (O, L), jnp.float32, -bnd, bnd)

    forward = jax.jit(make_scinet_forward(
        tree_params, w_proj, L, B, C, CH, NUM_LEVELS, O))
    out = jax.block_until_ready(forward(x))

    assert out.shape == (B, O, C), out.shape
    assert bool(jnp.all(jnp.isfinite(out)))

    ref = _ref_forward(x, tree_params, w_proj, NUM_LEVELS)
    rel_err = float(jnp.linalg.norm(out - ref) / jnp.linalg.norm(ref))
    assert rel_err < 5e-2, f"relative error vs reference too large: {rel_err}"

    print("KERNEL_OK")
</pallas_src>

<mosaic_0001>
module attributes {stable_mosaic.version = 11 : i64} {
  func.func @_scinet_fused_kernel(%arg0: memref<16x16xf32, #tpu.memory_space<vmem>>, %arg1: memref<2x128xf32, #tpu.memory_space<vmem>>, %arg2: memref<2x128x64xf32, #tpu.memory_space<vmem>>, %arg3: memref<2x14x16xf32, #tpu.memory_space<vmem>>, %arg4: memref<2x160x32xf32, #tpu.memory_space<vmem>>, %arg5: memref<2x1x32xf32, #tpu.memory_space<vmem>>, %arg6: memref<2x96x32xf32, #tpu.memory_space<vmem>>, %arg7: memref<2x1x32xf32, #tpu.memory_space<vmem>>, %arg8: memref<2x10x8xf32, #tpu.memory_space<vmem>>, %arg9: memref<2x320x64xf32, #tpu.memory_space<vmem>>, %arg10: memref<2x1x64xf32, #tpu.memory_space<vmem>>, %arg11: memref<2x192x64xf32, #tpu.memory_space<vmem>>, %arg12: memref<2x1x64xf32, #tpu.memory_space<vmem>>, %arg13: memref<2x8x4xf32, #tpu.memory_space<vmem>>, %arg14: memref<2x640x128xf32, #tpu.memory_space<vmem>>, %arg15: memref<2x1x128xf32, #tpu.memory_space<vmem>>, %arg16: memref<2x384x128xf32, #tpu.memory_space<vmem>>, %arg17: memref<2x1x128xf32, #tpu.memory_space<vmem>>, %arg18: memref<1x64xf32, #tpu.memory_space<vmem>>) attributes {dimension_semantics = [], scalar_prefetch = 0 : i64, scratch_operands = 0 : i64, tpu.core_type = #tpu.core_type<tc>} {
    %c0 = arith.constant 0 : index
    %c0_0 = arith.constant 0 : index
    %0 = vector.load %arg0[%c0, %c0_0] : memref<16x16xf32, #tpu.memory_space<vmem>>, vector<16x16xf32>
    %c0_1 = arith.constant 0 : index
    %c0_2 = arith.constant 0 : index
    %c0_3 = arith.constant 0 : index
    %1 = vector.load %arg3[%c0_1, %c0_2, %c0_3] : memref<2x14x16xf32, #tpu.memory_space<vmem>>, vector<1x14x16xf32>
    %2 = vector.shape_cast %1 : vector<1x14x16xf32> to vector<14x16xf32>
    %cst = arith.constant dense<0.000000e+00> : vector<14x16xf32>
    %3 = tpu.matmul %2, %0, %cst {dimension_numbers = #tpu.dot_dimension_numbers<[1], [0], [0], [1], [0, 0, 1, 1], [], []>} : vector<14x16xf32>, vector<16x16xf32>, vector<14x16xf32> -> vector<14x16xf32>
    %c1 = arith.constant 1 : index
    %c0_4 = arith.constant 0 : index
    %c0_5 = arith.constant 0 : index
    %4 = vector.load %arg3[%c1, %c0_4, %c0_5] : memref<2x14x16xf32, #tpu.memory_space<vmem>>, vector<1x14x16xf32>
    %5 = vector.shape_cast %4 : vector<1x14x16xf32> to vector<14x16xf32>
    %cst_6 = arith.constant dense<0.000000e+00> : vector<14x16xf32>
    %6 = tpu.matmul %5, %0, %cst_6 {dimension_numbers = #tpu.dot_dimension_numbers<[1], [0], [0], [1], [0, 0, 1, 1], [], []>} : vector<14x16xf32>, vector<16x16xf32>, vector<14x16xf32> -> vector<14x16xf32>
    %7 = tpu.concatenate %3, %6 in 1 : vector<14x16xf32>, vector<14x16xf32> -> vector<14x32xf32>
    %c0_7 = arith.constant 0 : index
    %c0_8 = arith.constant 0 : index
    %c0_9 = arith.constant 0 : index
    %8 = vector.load %arg4[%c0_7, %c0_8, %c0_9] : memref<2x160x32xf32, #tpu.memory_space<vmem>>, vector<1x160x32xf32>
    %9 = vector.shape_cast %8 : vector<1x160x32xf32> to vector<160x32xf32>
    %c0_10 = arith.constant 0 : index
    %c0_11 = arith.constant 0 : index
    %c0_12 = arith.constant 0 : index
    %10 = vector.load %arg5[%c0_10, %c0_11, %c0_12] : memref<2x1x32xf32, #tpu.memory_space<vmem>>, vector<1x1x32xf32>
    %11 = vector.shape_cast %10 : vector<1x1x32xf32> to vector<1x32xf32>
    %c0_13 = arith.constant 0 : index
    %c0_14 = arith.constant 0 : index
    %c0_15 = arith.constant 0 : index
    %12 = vector.load %arg6[%c0_13, %c0_14, %c0_15] : memref<2x96x32xf32, #tpu.memory_space<vmem>>, vector<1x96x32xf32>
    %13 = vector.shape_cast %12 : vector<1x96x32xf32> to vector<96x32xf32>
    %c0_16 = arith.constant 0 : index
    %c0_17 = arith.constant 0 : index
    %c0_18 = arith.constant 0 : index
    %14 = vector.load %arg7[%c0_16, %c0_17, %c0_18] : memref<2x1x32xf32, #tpu.memory_space<vmem>>, vector<1x1x32xf32>
    %15 = vector.shape_cast %14 : vector<1x1x32xf32> to vector<1x32xf32>
    %16 = vector.extract_strided_slice %7 {offsets = [0, 0], sizes = [10, 32], strides = [1, 1]} : vector<14x32xf32> to vector<10x32xf32>
    %17 = vector.extract_strided_slice %7 {offsets = [1, 0], sizes = [10, 32], strides = [1, 1]} : vector<14x32xf32> to vector<10x32xf32>
    %18 = vector.extract_strided_slice %7 {offsets = [2, 0], sizes = [10, 32], strides = [1, 1]} : vector<14x32xf32> to vector<10x32xf32>
    %19 = vector.extract_strided_slice %7 {offsets = [3, 0], sizes = [10, 32], strides = [1, 1]} : vector<14x32xf32> to vector<10x32xf32>
    %20 = vector.extract_strided_slice %7 {offsets = [4, 0], sizes = [10, 32], strides = [1, 1]} : vector<14x32xf32> to vector<10x32xf32>
    %21 = tpu.concatenate %16, %17, %18, %19, %20 in 1 : vector<10x32xf32>, vector<10x32xf32>, vector<10x32xf32>, vector<10x32xf32>, vector<10x32xf32> -> vector<10x160xf32>
    %cst_19 = arith.constant dense<0.000000e+00> : vector<10x32xf32>
    %22 = tpu.matmul %21, %9, %cst_19 {dimension_numbers = #tpu.dot_dimension_numbers<[1], [0], [0], [1], [0, 0, 1, 1], [], []>} : vector<10x160xf32>, vector<160x32xf32>, vector<10x32xf32> -> vector<10x32xf32>
    %23 = vector.broadcast %11 : vector<1x32xf32> to vector<10x32xf32>
    %24 = arith.addf %22, %23 : vector<10x32xf32>
    %cst_20 = arith.constant 0.000000e+00 : f32
    %25 = vector.broadcast %cst_20 : f32 to vector<10x32xf32>
    %26 = arith.cmpf oge, %24, %25 : vector<10x32xf32>
    %cst_21 = arith.constant 0.00999999977 : f32
    %27 = vector.broadcast %cst_21 : f32 to vector<10x32xf32>
    %28 = arith.mulf %27, %24 : vector<10x32xf32>
    %29 = arith.select %26, %24, %28 : vector<10x32xi1>, vector<10x32xf32>
    %30 = vector.extract_strided_slice %29 {offsets = [0, 0], sizes = [8, 32], strides = [1, 1]} : vector<10x32xf32> to vector<8x32xf32>
    %31 = vector.extract_strided_slice %29 {offsets = [1, 0], sizes = [8, 32], strides = [1, 1]} : vector<10x32xf32> to vector<8x32xf32>
    %32 = vector.extract_strided_slice %29 {offsets = [2, 0], sizes = [8, 32], strides = [1, 1]} : vector<10x32xf32> to vector<8x32xf32>
    %33 = tpu.concatenate %30, %31, %32 in 1 : vector<8x32xf32>, vector<8x32xf32>, vector<8x32xf32> -> vector<8x96xf32>
    %cst_22 = arith.constant dense<0.000000e+00> : vector<8x32xf32>
    %34 = tpu.matmul %33, %13, %cst_22 {dimension_numbers = #tpu.dot_dimension_numbers<[1], [0], [0], [1], [0, 0, 1, 1], [], []>} : vector<8x96xf32>, vector<96x32xf32>, vector<8x32xf32> -> vector<8x32xf32>
    %35 = vector.broadcast %15 : vector<1x32xf32> to vector<8x32xf32>
    %36 = arith.addf %34, %35 : vector<8x32xf32>
    %37 = math.tanh %36 : vector<8x32xf32>
    %38 = vector.extract_strided_slice %7 {offsets = [3, 0], sizes = [8, 32], strides = [1, 1]} : vector<14x32xf32> to vector<8x32xf32>
    %39 = vector.extract_strided_slice %38 {offsets = [0, 16], sizes = [8, 16], strides = [1, 1]} : vector<8x32xf32> to vector<8x16xf32>
    %40 = vector.extract_strided_slice %38 {offsets = [0, 0], sizes = [8, 16], strides = [1, 1]} : vector<8x32xf32> to vector<8x16xf32>
    %41 = tpu.concatenate %39, %40 in 1 : vector<8x16xf32>, vector<8x16xf32> -> vector<8x32xf32>
    %42 = math.exp %37 : vector<8x32xf32>
    %43 = arith.mulf %41, %42 : vector<8x32xf32>
    %44 = vector.extract_strided_slice %43 {offsets = [0, 0], sizes = [1, 32], strides = [1, 1]} : vector<8x32xf32> to vector<1x32xf32>
    %45 = vector.shape_cast %44 : vector<1x32xf32> to vector<1x32xf32>
    %46 = vector.broadcast %45 : vector<1x32xf32> to vector<3x32xf32>
    %47 = vector.extract_strided_slice %43 {offsets = [7, 0], sizes = [1, 32], strides = [1, 1]} : vector<8x32xf32> to vector<1x32xf32>
    %48 = vector.shape_cast %47 : vector<1x32xf32> to vector<1x32xf32>
    %49 = vector.broadcast %48 : vector<1x32xf32> to vector<3x32xf32>
    %50 = tpu.concatenate %46, %43, %49 in 0 : vector<3x32xf32>, vector<8x32xf32>, vector<3x32xf32> -> vector<14x32xf32>
    %c1_23 = arith.constant 1 : index
    %c0_24 = arith.constant 0 : index
    %c0_25 = arith.constant 0 : index
    %51 = vector.load %arg4[%c1_23, %c0_24, %c0_25] : memref<2x160x32xf32, #tpu.memory_space<vmem>>, vector<1x160x32xf32>
    %52 = vector.shape_cast %51 : vector<1x160x32xf32> to vector<160x32xf32>
    %c1_26 = arith.constant 1 : index
    %c0_27 = arith.constant 0 : index
    %c0_28 = arith.constant 0 : index
    %53 = vector.load %arg5[%c1_26, %c0_27, %c0_28] : memref<2x1x32xf32, #tpu.memory_space<vmem>>, vector<1x1x32xf32>
    %54 = vector.shape_cast %53 : vector<1x1x32xf32> to vector<1x32xf32>
    %c1_29 = arith.constant 1 : index
    %c0_30 = arith.constant 0 : index
    %c0_31 = arith.constant 0 : index
    %55 = vector.load %arg6[%c1_29, %c0_30, %c0_31] : memref<2x96x32xf32, #tpu.memory_space<vmem>>, vector<1x96x32xf32>
    %56 = vector.shape_cast %55 : vector<1x96x32xf32> to vector<96x32xf32>
    %c1_32 = arith.constant 1 : index
    %c0_33 = arith.constant 0 : index
    %c0_34 = arith.constant 0 : index
    %57 = vector.load %arg7[%c1_32, %c0_33, %c0_34] : memref<2x1x32xf32, #tpu.memory_space<vmem>>, vector<1x1x32xf32>
    %58 = vector.shape_cast %57 : vector<1x1x32xf32> to vector<1x32xf32>
    %59 = vector.extract_strided_slice %50 {offsets = [0, 0], sizes = [10, 32], strides = [1, 1]} : vector<14x32xf32> to vector<10x32xf32>
    %60 = vector.extract_strided_slice %50 {offsets = [1, 0], sizes = [10, 32], strides = [1, 1]} : vector<14x32xf32> to vector<10x32xf32>
    %61 = vector.extract_strided_slice %50 {offsets = [2, 0], sizes = [10, 32], strides = [1, 1]} : vector<14x32xf32> to vector<10x32xf32>
    %62 = vector.extract_strided_slice %50 {offsets = [3, 0], sizes = [10, 32], strides = [1, 1]} : vector<14x32xf32> to vector<10x32xf32>
    %63 = vector.extract_strided_slice %50 {offsets = [4, 0], sizes = [10, 32], strides = [1, 1]} : vector<14x32xf32> to vector<10x32xf32>
    %64 = tpu.concatenate %59, %60, %61, %62, %63 in 1 : vector<10x32xf32>, vector<10x32xf32>, vector<10x32xf32>, vector<10x32xf32>, vector<10x32xf32> -> vector<10x160xf32>
    %cst_35 = arith.constant dense<0.000000e+00> : vector<10x32xf32>
    %65 = tpu.matmul %64, %52, %cst_35 {dimension_numbers = #tpu.dot_dimension_numbers<[1], [0], [0], [1], [0, 0, 1, 1], [], []>} : vector<10x160xf32>, vector<160x32xf32>, vector<10x32xf32> -> vector<10x32xf32>
    %66 = vector.broadcast %54 : vector<1x32xf32> to vector<10x32xf32>
    %67 = arith.addf %65, %66 : vector<10x32xf32>
    %cst_36 = arith.constant 0.000000e+00 : f32
    %68 = vector.broadcast %cst_36 : f32 to vector<10x32xf32>
    %69 = arith.cmpf oge, %67, %68 : vector<10x32xf32>
    %cst_37 = arith.constant 0.00999999977 : f32
    %70 = vector.broadcast %cst_37 : f32 to vector<10x32xf32>
    %71 = arith.mulf %70, %67 : vector<10x32xf32>
    %72 = arith.select %69, %67, %71 : vector<10x32xi1>, vector<10x32xf32>
    %73 = vector.extract_strided_slice %72 {offsets = [0, 0], sizes = [8, 32], strides = [1, 1]} : vector<10x32xf32> to vector<8x32xf32>
    %74 = vector.extract_strided_slice %72 {offsets = [1, 0], sizes = [8, 32], strides = [1, 1]} : vector<10x32xf32> to vector<8x32xf32>
    %75 = vector.extract_strided_slice %72 {offsets = [2, 0], sizes = [8, 32], strides = [1, 1]} : vector<10x32xf32> to vector<8x32xf32>
    %76 = tpu.concatenate %73, %74, %75 in 1 : vector<8x32xf32>, vector<8x32xf32>, vector<8x32xf32> -> vector<8x96xf32>
    %cst_38 = arith.constant dense<0.000000e+00> : vector<8x32xf32>
    %77 = tpu.matmul %76, %56, %cst_38 {dimension_numbers = #tpu.dot_dimension_numbers<[1], [0], [0], [1], [0, 0, 1, 1], [], []>} : vector<8x96xf32>, vector<96x32xf32>, vector<8x32xf32> -> vector<8x32xf32>
    %78 = vector.broadcast %58 : vector<1x32xf32> to vector<8x32xf32>
    %79 = arith.addf %77, %78 : vector<8x32xf32>
    %80 = math.tanh %79 : vector<8x32xf32>
    %81 = vector.extract_strided_slice %43 {offsets = [0, 16], sizes = [8, 16], strides = [1, 1]} : vector<8x32xf32> to vector<8x16xf32>
    %82 = vector.extract_strided_slice %80 {offsets = [0, 0], sizes = [8, 16], strides = [1, 1]} : vector<8x32xf32> to vector<8x16xf32>
    %83 = arith.addf %81, %82 : vector<8x16xf32>
    %84 = vector.extract_strided_slice %43 {offsets = [0, 0], sizes = [8, 16], strides = [1, 1]} : vector<8x32xf32> to vector<8x16xf32>
    %85 = vector.extract_strided_slice %80 {offsets = [0, 16], sizes = [8, 16], strides = [1, 1]} : vector<8x32xf32> to vector<8x16xf32>
    %86 = arith.subf %84, %85 : vector<8x16xf32>
    %87 = tpu.concatenate %83, %86 in 1 : vector<8x16xf32>, vector<8x16xf32> -> vector<8x32xf32>
    %c0_39 = arith.constant 0 : index
    %c0_40 = arith.constant 0 : index
    %c0_41 = arith.constant 0 : index
    %88 = vector.load %arg8[%c0_39, %c0_40, %c0_41] : memref<2x10x8xf32, #tpu.memory_space<vmem>>, vector<1x10x8xf32>
    %89 = vector.shape_cast %88 : vector<1x10x8xf32> to vector<10x8xf32>
    %cst_42 = arith.constant dense<0.000000e+00> : vector<10x32xf32>
    %90 = tpu.matmul %89, %87, %cst_42 {dimension_numbers = #tpu.dot_dimension_numbers<[1], [0], [0], [1], [0, 0, 1, 1], [], []>} : vector<10x8xf32>, vector<8x32xf32>, vector<10x32xf32> -> vector<10x32xf32>
    %c1_43 = arith.constant 1 : index
    %c0_44 = arith.constant 0 : index
    %c0_45 = arith.constant 0 : index
    %91 = vector.load %arg8[%c1_43, %c0_44, %c0_45] : memref<2x10x8xf32, #tpu.memory_space<vmem>>, vector<1x10x8xf32>
    %92 = vector.shape_cast %91 : vector<1x10x8xf32> to vector<10x8xf32>
    %cst_46 = arith.constant dense<0.000000e+00> : vector<10x32xf32>
    %93 = tpu.matmul %92, %87, %cst_46 {dimension_numbers = #tpu.dot_dimension_numbers<[1], [0], [0], [1], [0, 0, 1, 1], [], []>} : vector<10x8xf32>, vector<8x32xf32>, vector<10x32xf32> -> vector<10x32xf32>
    %94 = tpu.concatenate %90, %93 in 1 : vector<10x32xf32>, vector<10x32xf32> -> vector<10x64xf32>
    %c0_47 = arith.constant 0 : index
    %c0_48 = arith.constant 0 : index
    %c0_49 = arith.constant 0 : index
    %95 = vector.load %arg9[%c0_47, %c0_48, %c0_49] : memref<2x320x64xf32, #tpu.memory_space<vmem>>, vector<1x320x64xf32>
    %96 = vector.shape_cast %95 : vector<1x320x64xf32> to vector<320x64xf32>
    %c0_50 = arith.constant 0 : index
    %c0_51 = arith.constant 0 : index
    %c0_52 = arith.constant 0 : index
    %97 = vector.load %arg10[%c0_50, %c0_51, %c0_52] : memref<2x1x64xf32, #tpu.memory_space<vmem>>, vector<1x1x64xf32>
    %98 = vector.shape_cast %97 : vector<1x1x64xf32> to vector<1x64xf32>
    %c0_53 = arith.constant 0 : index
    %c0_54 = arith.constant 0 : index
    %c0_55 = arith.constant 0 : index
    %99 = vector.load %arg11[%c0_53, %c0_54, %c0_55] : memref<2x192x64xf32, #tpu.memory_space<vmem>>, vector<1x192x64xf32>
    %100 = vector.shape_cast %99 : vector<1x192x64xf32> to vector<192x64xf32>
    %c0_56 = arith.constant 0 : index
    %c0_57 = arith.constant 0 : index
    %c0_58 = arith.constant 0 : index
    %101 = vector.load %arg12[%c0_56, %c0_57, %c0_58] : memref<2x1x64xf32, #tpu.memory_space<vmem>>, vector<1x1x64xf32>
    %102 = vector.shape_cast %101 : vector<1x1x64xf32> to vector<1x64xf32>
    %103 = vector.extract_strided_slice %94 {offsets = [0, 0], sizes = [6, 64], strides = [1, 1]} : vector<10x64xf32> to vector<6x64xf32>
    %104 = vector.extract_strided_slice %94 {offsets = [1, 0], sizes = [6, 64], strides = [1, 1]} : vector<10x64xf32> to vector<6x64xf32>
    %105 = vector.extract_strided_slice %94 {offsets = [2, 0], sizes = [6, 64], strides = [1, 1]} : vector<10x64xf32> to vector<6x64xf32>
    %106 = vector.extract_strided_slice %94 {offsets = [3, 0], sizes = [6, 64], strides = [1, 1]} : vector<10x64xf32> to vector<6x64xf32>
    %107 = vector.extract_strided_slice %94 {offsets = [4, 0], sizes = [6, 64], strides = [1, 1]} : vector<10x64xf32> to vector<6x64xf32>
    %108 = tpu.concatenate %103, %104, %105, %106, %107 in 1 : vector<6x64xf32>, vector<6x64xf32>, vector<6x64xf32>, vector<6x64xf32>, vector<6x64xf32> -> vector<6x320xf32>
    %cst_59 = arith.constant dense<0.000000e+00> : vector<6x64xf32>
    %109 = tpu.matmul %108, %96, %cst_59 {dimension_numbers = #tpu.dot_dimension_numbers<[1], [0], [0], [1], [0, 0, 1, 1], [], []>} : vector<6x320xf32>, vector<320x64xf32>, vector<6x64xf32> -> vector<6x64xf32>
    %110 = vector.broadcast %98 : vector<1x64xf32> to vector<6x64xf32>
    %111 = arith.addf %109, %110 : vector<6x64xf32>
    %cst_60 = arith.constant 0.000000e+00 : f32
    %112 = vector.broadcast %cst_60 : f32 to vector<6x64xf32>
    %113 = arith.cmpf oge, %111, %112 : vector<6x64xf32>
    %cst_61 = arith.constant 0.00999999977 : f32
    %114 = vector.broadcast %cst_61 : f32 to vector<6x64xf32>
    %115 = arith.mulf %114, %111 : vector<6x64xf32>
    %116 = arith.select %113, %111, %115 : vector<6x64xi1>, vector<6x64xf32>
    %117 = vector.extract_strided_slice %116 {offsets = [0, 0], sizes = [4, 64], strides = [1, 1]} : vector<6x64xf32> to vector<4x64xf32>
    %118 = vector.extract_strided_slice %116 {offsets = [1, 0], sizes = [4, 64], strides = [1, 1]} : vector<6x64xf32> to vector<4x64xf32>
    %119 = vector.extract_strided_slice %116 {offsets = [2, 0], sizes = [4, 64], strides = [1, 1]} : vector<6x64xf32> to vector<4x64xf32>
    %120 = tpu.concatenate %117, %118, %119 in 1 : vector<4x64xf32>, vector<4x64xf32>, vector<4x64xf32> -> vector<4x192xf32>
    %cst_62 = arith.constant dense<0.000000e+00> : vector<4x64xf32>
    %121 = tpu.matmul %120, %100, %cst_62 {dimension_numbers = #tpu.dot_dimension_numbers<[1], [0], [0], [1], [0, 0, 1, 1], [], []>} : vector<4x192xf32>, vector<192x64xf32>, vector<4x64xf32> -> vector<4x64xf32>
    %122 = vector.broadcast %102 : vector<1x64xf32> to vector<4x64xf32>
    %123 = arith.addf %121, %122 : vector<4x64xf32>
    %124 = math.tanh %123 : vector<4x64xf32>
    %125 = vector.extract_strided_slice %94 {offsets = [3, 0], sizes = [4, 64], strides = [1, 1]} : vector<10x64xf32> to vector<4x64xf32>
    %126 = vector.extract_strided_slice %125 {offsets = [0, 32], sizes = [4, 32], strides = [1, 1]} : vector<4x64xf32> to vector<4x32xf32>
    %127 = vector.extract_strided_slice %125 {offsets = [0, 0], sizes = [4, 32], strides = [1, 1]} : vector<4x64xf32> to vector<4x32xf32>
    %128 = tpu.concatenate %126, %127 in 1 : vector<4x32xf32>, vector<4x32xf32> -> vector<4x64xf32>
    %129 = math.exp %124 : vector<4x64xf32>
    %130 = arith.mulf %128, %129 : vector<4x64xf32>
    %131 = vector.extract_strided_slice %130 {offsets = [0, 0], sizes = [1, 64], strides = [1, 1]} : vector<4x64xf32> to vector<1x64xf32>
    %132 = vector.shape_cast %131 : vector<1x64xf32> to vector<1x64xf32>
    %133 = vector.broadcast %132 : vector<1x64xf32> to vector<3x64xf32>
    %134 = vector.extract_strided_slice %130 {offsets = [3, 0], sizes = [1, 64], strides = [1, 1]} : vector<4x64xf32> to vector<1x64xf32>
    %135 = vector.shape_cast %134 : vector<1x64xf32> to vector<1x64xf32>
    %136 = vector.broadcast %135 : vector<1x64xf32> to vector<3x64xf32>
    %137 = tpu.concatenate %133, %130, %136 in 0 : vector<3x64xf32>, vector<4x64xf32>, vector<3x64xf32> -> vector<10x64xf32>
    %c1_63 = arith.constant 1 : index
    %c0_64 = arith.constant 0 : index
    %c0_65 = arith.constant 0 : index
    %138 = vector.load %arg9[%c1_63, %c0_64, %c0_65] : memref<2x320x64xf32, #tpu.memory_space<vmem>>, vector<1x320x64xf32>
    %139 = vector.shape_cast %138 : vector<1x320x64xf32> to vector<320x64xf32>
    %c1_66 = arith.constant 1 : index
    %c0_67 = arith.constant 0 : index
    %c0_68 = arith.constant 0 : index
    %140 = vector.load %arg10[%c1_66, %c0_67, %c0_68] : memref<2x1x64xf32, #tpu.memory_space<vmem>>, vector<1x1x64xf32>
    %141 = vector.shape_cast %140 : vector<1x1x64xf32> to vector<1x64xf32>
    %c1_69 = arith.constant 1 : index
    %c0_70 = arith.constant 0 : index
    %c0_71 = arith.constant 0 : index
    %142 = vector.load %arg11[%c1_69, %c0_70, %c0_71] : memref<2x192x64xf32, #tpu.memory_space<vmem>>, vector<1x192x64xf32>
    %143 = vector.shape_cast %142 : vector<1x192x64xf32> to vector<192x64xf32>
    %c1_72 = arith.constant 1 : index
    %c0_73 = arith.constant 0 : index
    %c0_74 = arith.constant 0 : index
    %144 = vector.load %arg12[%c1_72, %c0_73, %c0_74] : memref<2x1x64xf32, #tpu.memory_space<vmem>>, vector<1x1x64xf32>
    %145 = vector.shape_cast %144 : vector<1x1x64xf32> to vector<1x64xf32>
    %146 = vector.extract_strided_slice %137 {offsets = [0, 0], sizes = [6, 64], strides = [1, 1]} : vector<10x64xf32> to vector<6x64xf32>
    %147 = vector.extract_strided_slice %137 {offsets = [1, 0], sizes = [6, 64], strides = [1, 1]} : vector<10x64xf32> to vector<6x64xf32>
    %148 = vector.extract_strided_slice %137 {offsets = [2, 0], sizes = [6, 64], strides = [1, 1]} : vector<10x64xf32> to vector<6x64xf32>
    %149 = vector.extract_strided_slice %137 {offsets = [3, 0], sizes = [6, 64], strides = [1, 1]} : vector<10x64xf32> to vector<6x64xf32>
    %150 = vector.extract_strided_slice %137 {offsets = [4, 0], sizes = [6, 64], strides = [1, 1]} : vector<10x64xf32> to vector<6x64xf32>
    %151 = tpu.concatenate %146, %147, %148, %149, %150 in 1 : vector<6x64xf32>, vector<6x64xf32>, vector<6x64xf32>, vector<6x64xf32>, vector<6x64xf32> -> vector<6x320xf32>
    %cst_75 = arith.constant dense<0.000000e+00> : vector<6x64xf32>
    %152 = tpu.matmul %151, %139, %cst_75 {dimension_numbers = #tpu.dot_dimension_numbers<[1], [0], [0], [1], [0, 0, 1, 1], [], []>} : vector<6x320xf32>, vector<320x64xf32>, vector<6x64xf32> -> vector<6x64xf32>
    %153 = vector.broadcast %141 : vector<1x64xf32> to vector<6x64xf32>
    %154 = arith.addf %152, %153 : vector<6x64xf32>
    %cst_76 = arith.constant 0.000000e+00 : f32
    %155 = vector.broadcast %cst_76 : f32 to vector<6x64xf32>
    %156 = arith.cmpf oge, %154, %155 : vector<6x64xf32>
    %cst_77 = arith.constant 0.00999999977 : f32
    %157 = vector.broadcast %cst_77 : f32 to vector<6x64xf32>
    %158 = arith.mulf %157, %154 : vector<6x64xf32>
    %159 = arith.select %156, %154, %158 : vector<6x64xi1>, vector<6x64xf32>
    %160 = vector.extract_strided_slice %159 {offsets = [0, 0], sizes = [4, 64], strides = [1, 1]} : vector<6x64xf32> to vector<4x64xf32>
    %161 = vector.extract_strided_slice %159 {offsets = [1, 0], sizes = [4, 64], strides = [1, 1]} : vector<6x64xf32> to vector<4x64xf32>
    %162 = vector.extract_strided_slice %159 {offsets = [2, 0], sizes = [4, 64], strides = [1, 1]} : vector<6x64xf32> to vector<4x64xf32>
    %163 = tpu.concatenate %160, %161, %162 in 1 : vector<4x64xf32>, vector<4x64xf32>, vector<4x64xf32> -> vector<4x192xf32>
    %cst_78 = arith.constant dense<0.000000e+00> : vector<4x64xf32>
    %164 = tpu.matmul %163, %143, %cst_78 {dimension_numbers = #tpu.dot_dimension_numbers<[1], [0], [0], [1], [0, 0, 1, 1], [], []>} : vector<4x192xf32>, vector<192x64xf32>, vector<4x64xf32> -> vector<4x64xf32>
    %165 = vector.broadcast %145 : vector<1x64xf32> to vector<4x64xf32>
    %166 = arith.addf %164, %165 : vector<4x64xf32>
    %167 = math.tanh %166 : vector<4x64xf32>
    %168 = vector.extract_strided_slice %130 {offsets = [0, 32], sizes = [4, 32], strides = [1, 1]} : vector<4x64xf32> to vector<4x32xf32>
    %169 = vector.extract_strided_slice %167 {offsets = [0, 0], sizes = [4, 32], strides = [1, 1]} : vector<4x64xf32> to vector<4x32xf32>
    %170 = arith.addf %168, %169 : vector<4x32xf32>
    %171 = vector.extract_strided_slice %130 {offsets = [0, 0], sizes = [4, 32], strides = [1, 1]} : vector<4x64xf32> to vector<4x32xf32>
    %172 = vector.extract_strided_slice %167 {offsets = [0, 32], sizes = [4, 32], strides = [1, 1]} : vector<4x64xf32> to vector<4x32xf32>
    %173 = arith.subf %171, %172 : vector<4x32xf32>
    %174 = tpu.concatenate %170, %173 in 1 : vector<4x32xf32>, vector<4x32xf32> -> vector<4x64xf32>
    %c0_79 = arith.constant 0 : index
    %c0_80 = arith.constant 0 : index
    %c0_81 = arith.constant 0 : index
    %175 = vector.load %arg13[%c0_79, %c0_80, %c0_81] : memref<2x8x4xf32, #tpu.memory_space<vmem>>, vector<1x8x4xf32>
    %176 = vector.shape_cast %175 : vector<1x8x4xf32> to vector<8x4xf32>
    %cst_82 = arith.constant dense<0.000000e+00> : vector<8x64xf32>
    %177 = tpu.matmul %176, %174, %cst_82 {dimension_numbers = #tpu.dot_dimension_numbers<[1], [0], [0], [1], [0, 0, 1, 1], [], []>} : vector<8x4xf32>, vector<4x64xf32>, vector<8x64xf32> -> vector<8x64xf32>
    %c1_83 = arith.constant 1 : index
    %c0_84 = arith.constant 0 : index
    %c0_85 = arith.constant 0 : index
    %178 = vector.load %arg13[%c1_83, %c0_84, %c0_85] : memref<2x8x4xf32, #tpu.memory_space<vmem>>, vector<1x8x4xf32>
    %179 = vector.shape_cast %178 : vector<1x8x4xf32> to vector<8x4xf32>
    %cst_86 = arith.constant dense<0.000000e+00> : vector<8x64xf32>
    %180 = tpu.matmul %179, %174, %cst_86 {dimension_numbers = #tpu.dot_dimension_numbers<[1], [0], [0], [1], [0, 0, 1, 1], [], []>} : vector<8x4xf32>, vector<4x64xf32>, vector<8x64xf32> -> vector<8x64xf32>
    %181 = tpu.concatenate %177, %180 in 1 : vector<8x64xf32>, vector<8x64xf32> -> vector<8x128xf32>
    %c0_87 = arith.constant 0 : index
    %c0_88 = arith.constant 0 : index
    %c0_89 = arith.constant 0 : index
    %182 = vector.load %arg14[%c0_87, %c0_88, %c0_89] : memref<2x640x128xf32, #tpu.memory_space<vmem>>, vector<1x640x128xf32>
    %183 = vector.shape_cast %182 : vector<1x640x128xf32> to vector<640x128xf32>
    %c0_90 = arith.constant 0 : index
    %c0_91 = arith.constant 0 : index
    %c0_92 = arith.constant 0 : index
    %184 = vector.load %arg15[%c0_90, %c0_91, %c0_92] : memref<2x1x128xf32, #tpu.memory_space<vmem>>, vector<1x1x128xf32>
    %185 = vector.shape_cast %184 : vector<1x1x128xf32> to vector<1x128xf32>
    %c0_93 = arith.constant 0 : index
    %c0_94 = arith.constant 0 : index
    %c0_95 = arith.constant 0 : index
    %186 = vector.load %arg16[%c0_93, %c0_94, %c0_95] : memref<2x384x128xf32, #tpu.memory_space<vmem>>, vector<1x384x128xf32>
    %187 = vector.shape_cast %186 : vector<1x384x128xf32> to vector<384x128xf32>
    %c0_96 = arith.constant 0 : index
    %c0_97 = arith.constant 0 : index
    %c0_98 = arith.constant 0 : index
    %188 = vector.load %arg17[%c0_96, %c0_97, %c0_98] : memref<2x1x128xf32, #tpu.memory_space<vmem>>, vector<1x1x128xf32>
    %189 = vector.shape_cast %188 : vector<1x1x128xf32> to vector<1x128xf32>
    %190 = vector.extract_strided_slice %181 {offsets = [0, 0], sizes = [4, 128], strides = [1, 1]} : vector<8x128xf32> to vector<4x128xf32>
    %191 = vector.extract_strided_slice %181 {offsets = [1, 0], sizes = [4, 128], strides = [1, 1]} : vector<8x128xf32> to vector<4x128xf32>
    %192 = vector.extract_strided_slice %181 {offsets = [2, 0], sizes = [4, 128], strides = [1, 1]} : vector<8x128xf32> to vector<4x128xf32>
    %193 = vector.extract_strided_slice %181 {offsets = [3, 0], sizes = [4, 128], strides = [1, 1]} : vector<8x128xf32> to vector<4x128xf32>
    %194 = vector.extract_strided_slice %181 {offsets = [4, 0], sizes = [4, 128], strides = [1, 1]} : vector<8x128xf32> to vector<4x128xf32>
    %195 = tpu.concatenate %190, %191, %192, %193, %194 in 1 : vector<4x128xf32>, vector<4x128xf32>, vector<4x128xf32>, vector<4x128xf32>, vector<4x128xf32> -> vector<4x640xf32>
    %cst_99 = arith.constant dense<0.000000e+00> : vector<4x128xf32>
    %196 = tpu.matmul %195, %183, %cst_99 {dimension_numbers = #tpu.dot_dimension_numbers<[1], [0], [0], [1], [0, 0, 1, 1], [], []>} : vector<4x640xf32>, vector<640x128xf32>, vector<4x128xf32> -> vector<4x128xf32>
    %197 = vector.broadcast %185 : vector<1x128xf32> to vector<4x128xf32>
    %198 = arith.addf %196, %197 : vector<4x128xf32>
    %cst_100 = arith.constant 0.000000e+00 : f32
    %199 = vector.broadcast %cst_100 : f32 to vector<4x128xf32>
    %200 = arith.cmpf oge, %198, %199 : vector<4x128xf32>
    %cst_101 = arith.constant 0.00999999977 : f32
    %201 = vector.broadcast %cst_101 : f32 to vector<4x128xf32>
    %202 = arith.mulf %201, %198 : vector<4x128xf32>
    %203 = arith.select %200, %198, %202 : vector<4x128xi1>, vector<4x128xf32>
    %204 = vector.extract_strided_slice %203 {offsets = [0, 0], sizes = [2, 128], strides = [1, 1]} : vector<4x128xf32> to vector<2x128xf32>
    %205 = vector.extract_strided_slice %203 {offsets = [1, 0], sizes = [2, 128], strides = [1, 1]} : vector<4x128xf32> to vector<2x128xf32>
    %206 = vector.extract_strided_slice %203 {offsets = [2, 0], sizes = [2, 128], strides = [1, 1]} : vector<4x128xf32> to vector<2x128xf32>
    %207 = tpu.concatenate %204, %205, %206 in 1 : vector<2x128xf32>, vector<2x128xf32>, vector<2x128xf32> -> vector<2x384xf32>
    %cst_102 = arith.constant dense<0.000000e+00> : vector<2x128xf32>
    %208 = tpu.matmul %207, %187, %cst_102 {dimension_numbers = #tpu.dot_dimension_numbers<[1], [0], [0], [1], [0, 0, 1, 1], [], []>} : vector<2x384xf32>, vector<384x128xf32>, vector<2x128xf32> -> vector<2x128xf32>
    %209 = vector.broadcast %189 : vector<1x128xf32> to vector<2x128xf32>
    %210 = arith.addf %208, %209 : vector<2x128xf32>
    %211 = math.tanh %210 : vector<2x128xf32>
    %212 = vector.extract_strided_slice %181 {offsets = [3, 0], sizes = [2, 128], strides = [1, 1]} : vector<8x128xf32> to vector<2x128xf32>
    %213 = vector.extract_strided_slice %212 {offsets = [0, 64], sizes = [2, 64], strides = [1, 1]} : vector<2x128xf32> to vector<2x64xf32>
    %214 = vector.extract_strided_slice %212 {offsets = [0, 0], sizes = [2, 64], strides = [1, 1]} : vector<2x128xf32> to vector<2x64xf32>
    %215 = tpu.concatenate %213, %214 in 1 : vector<2x64xf32>, vector<2x64xf32> -> vector<2x128xf32>
    %216 = math.exp %211 : vector<2x128xf32>
    %217 = arith.mulf %215, %216 : vector<2x128xf32>
    %218 = vector.extract_strided_slice %217 {offsets = [0, 0], sizes = [1, 128], strides = [1, 1]} : vector<2x128xf32> to vector<1x128xf32>
    %219 = vector.shape_cast %218 : vector<1x128xf32> to vector<1x128xf32>
    %220 = vector.broadcast %219 : vector<1x128xf32> to vector<3x128xf32>
    %221 = vector.extract_strided_slice %217 {offsets = [1, 0], sizes = [1, 128], strides = [1, 1]} : vector<2x128xf32> to vector<1x128xf32>
    %222 = vector.shape_cast %221 : vector<1x128xf32> to vector<1x128xf32>
    %223 = vector.broadcast %222 : vector<1x128xf32> to vector<3x128xf32>
    %224 = tpu.concatenate %220, %217, %223 in 0 : vector<3x128xf32>, vector<2x128xf32>, vector<3x128xf32> -> vector<8x128xf32>
    %c1_103 = arith.constant 1 : index
    %c0_104 = arith.constant 0 : index
    %c0_105 = arith.constant 0 : index
    %225 = vector.load %arg14[%c1_103, %c0_104, %c0_105] : memref<2x640x128xf32, #tpu.memory_space<vmem>>, vector<1x640x128xf32>
    %226 = vector.shape_cast %225 : vector<1x640x128xf32> to vector<640x128xf32>
    %c1_106 = arith.constant 1 : index
    %c0_107 = arith.constant 0 : index
    %c0_108 = arith.constant 0 : index
    %227 = vector.load %arg15[%c1_106, %c0_107, %c0_108] : memref<2x1x128xf32, #tpu.memory_space<vmem>>, vector<1x1x128xf32>
    %228 = vector.shape_cast %227 : vector<1x1x128xf32> to vector<1x128xf32>
    %c1_109 = arith.constant 1 : index
    %c0_110 = arith.constant 0 : index
    %c0_111 = arith.constant 0 : index
    %229 = vector.load %arg16[%c1_109, %c0_110, %c0_111] : memref<2x384x128xf32, #tpu.memory_space<vmem>>, vector<1x384x128xf32>
    %230 = vector.shape_cast %229 : vector<1x384x128xf32> to vector<384x128xf32>
    %c1_112 = arith.constant 1 : index
    %c0_113 = arith.constant 0 : index
    %c0_114 = arith.constant 0 : index
    %231 = vector.load %arg17[%c1_112, %c0_113, %c0_114] : memref<2x1x128xf32, #tpu.memory_space<vmem>>, vector<1x1x128xf32>
    %232 = vector.shape_cast %231 : vector<1x1x128xf32> to vector<1x128xf32>
    %233 = vector.extract_strided_slice %224 {offsets = [0, 0], sizes = [4, 128], strides = [1, 1]} : vector<8x128xf32> to vector<4x128xf32>
    %234 = vector.extract_strided_slice %224 {offsets = [1, 0], sizes = [4, 128], strides = [1, 1]} : vector<8x128xf32> to vector<4x128xf32>
    %235 = vector.extract_strided_slice %224 {offsets = [2, 0], sizes = [4, 128], strides = [1, 1]} : vector<8x128xf32> to vector<4x128xf32>
    %236 = vector.extract_strided_slice %224 {offsets = [3, 0], sizes = [4, 128], strides = [1, 1]} : vector<8x128xf32> to vector<4x128xf32>
    %237 = vector.extract_strided_slice %224 {offsets = [4, 0], sizes = [4, 128], strides = [1, 1]} : vector<8x128xf32> to vector<4x128xf32>
    %238 = tpu.concatenate %233, %234, %235, %236, %237 in 1 : vector<4x128xf32>, vector<4x128xf32>, vector<4x128xf32>, vector<4x128xf32>, vector<4x128xf32> -> vector<4x640xf32>
    %cst_115 = arith.constant dense<0.000000e+00> : vector<4x128xf32>
    %239 = tpu.matmul %238, %226, %cst_115 {dimension_numbers = #tpu.dot_dimension_numbers<[1], [0], [0], [1], [0, 0, 1, 1], [], []>} : vector<4x640xf32>, vector<640x128xf32>, vector<4x128xf32> -> vector<4x128xf32>
    %240 = vector.broadcast %228 : vector<1x128xf32> to vector<4x128xf32>
    %241 = arith.addf %239, %240 : vector<4x128xf32>
    %cst_116 = arith.constant 0.000000e+00 : f32
    %242 = vector.broadcast %cst_116 : f32 to vector<4x128xf32>
    %243 = arith.cmpf oge, %241, %242 : vector<4x128xf32>
    %cst_117 = arith.constant 0.00999999977 : f32
    %244 = vector.broadcast %cst_117 : f32 to vector<4x128xf32>
    %245 = arith.mulf %244, %241 : vector<4x128xf32>
    %246 = arith.select %243, %241, %245 : vector<4x128xi1>, vector<4x128xf32>
    %247 = vector.extract_strided_slice %246 {offsets = [0, 0], sizes = [2, 128], strides = [1, 1]} : vector<4x128xf32> to vector<2x128xf32>
    %248 = vector.extract_strided_slice %246 {offsets = [1, 0], sizes = [2, 128], strides = [1, 1]} : vector<4x128xf32> to vector<2x128xf32>
    %249 = vector.extract_strided_slice %246 {offsets = [2, 0], sizes = [2, 128], strides = [1, 1]} : vector<4x128xf32> to vector<2x128xf32>
    %250 = tpu.concatenate %247, %248, %249 in 1 : vector<2x128xf32>, vector<2x128xf32>, vector<2x128xf32> -> vector<2x384xf32>
    %cst_118 = arith.constant dense<0.000000e+00> : vector<2x128xf32>
    %251 = tpu.matmul %250, %230, %cst_118 {dimension_numbers = #tpu.dot_dimension_numbers<[1], [0], [0], [1], [0, 0, 1, 1], [], []>} : vector<2x384xf32>, vector<384x128xf32>, vector<2x128xf32> -> vector<2x128xf32>
    %252 = vector.broadcast %232 : vector<1x128xf32> to vector<2x128xf32>
    %253 = arith.addf %251, %252 : vector<2x128xf32>
    %254 = math.tanh %253 : vector<2x128xf32>
    %255 = vector.extract_strided_slice %217 {offsets = [0, 64], sizes = [2, 64], strides = [1, 1]} : vector<2x128xf32> to vector<2x64xf32>
    %256 = vector.extract_strided_slice %254 {offsets = [0, 0], sizes = [2, 64], strides = [1, 1]} : vector<2x128xf32> to vector<2x64xf32>
    %257 = arith.addf %255, %256 : vector<2x64xf32>
    %258 = vector.extract_strided_slice %217 {offsets = [0, 0], sizes = [2, 64], strides = [1, 1]} : vector<2x128xf32> to vector<2x64xf32>
    %259 = vector.extract_strided_slice %254 {offsets = [0, 64], sizes = [2, 64], strides = [1, 1]} : vector<2x128xf32> to vector<2x64xf32>
    %260 = arith.subf %258, %259 : vector<2x64xf32>
    %261 = tpu.concatenate %257, %260 in 1 : vector<2x64xf32>, vector<2x64xf32> -> vector<2x128xf32>
    %c0_119 = arith.constant 0 : index
    %c0_120 = arith.constant 0 : index
    %262 = vector.load %arg1[%c0_119, %c0_120] : memref<2x128xf32, #tpu.memory_space<vmem>>, vector<2x128xf32>
    %263 = arith.addf %261, %262 : vector<2x128xf32>
    %cst_121 = arith.constant 0.000000e+00 : f32
    %264 = vector.broadcast %cst_121 : f32 to vector<1x64xf32>
    %265 = vector.extract_strided_slice %263 {offsets = [0, 0], sizes = [1, 128], strides = [1, 1]} : vector<2x128xf32> to vector<1x128xf32>
    %c0_122 = arith.constant 0 : index
    %c0_123 = arith.constant 0 : index
    %c0_124 = arith.constant 0 : index
    %266 = vector.load %arg2[%c0_122, %c0_123, %c0_124] : memref<2x128x64xf32, #tpu.memory_space<vmem>>, vector<1x128x64xf32>
    %267 = vector.shape_cast %266 : vector<1x128x64xf32> to vector<128x64xf32>
    %cst_125 = arith.constant dense<0.000000e+00> : vector<1x64xf32>
    %268 = tpu.matmul %265, %267, %cst_125 {dimension_numbers = #tpu.dot_dimension_numbers<[1], [0], [0], [1], [0, 0, 1, 1], [], []>} : vector<1x128xf32>, vector<128x64xf32>, vector<1x64xf32> -> vector<1x64xf32>
    %269 = arith.addf %264, %268 : vector<1x64xf32>
    %270 = vector.extract_strided_slice %263 {offsets = [1, 0], sizes = [1, 128], strides = [1, 1]} : vector<2x128xf32> to vector<1x128xf32>
    %c1_126 = arith.constant 1 : index
    %c0_127 = arith.constant 0 : index
    %c0_128 = arith.constant 0 : index
    %271 = vector.load %arg2[%c1_126, %c0_127, %c0_128] : memref<2x128x64xf32, #tpu.memory_space<vmem>>, vector<1x128x64xf32>
    %272 = vector.shape_cast %271 : vector<1x128x64xf32> to vector<128x64xf32>
    %cst_129 = arith.constant dense<0.000000e+00> : vector<1x64xf32>
    %273 = tpu.matmul %270, %272, %cst_129 {dimension_numbers = #tpu.dot_dimension_numbers<[1], [0], [0], [1], [0, 0, 1, 1], [], []>} : vector<1x128xf32>, vector<128x64xf32>, vector<1x64xf32> -> vector<1x64xf32>
    %274 = arith.addf %269, %273 : vector<1x64xf32>
    %c0_130 = arith.constant 0 : index
    %c0_131 = arith.constant 0 : index
    %275 = vector.load %arg18[%c0_130, %c0_131] : memref<1x64xf32, #tpu.memory_space<vmem>>, vector<1x64xf32>
    tpu.vector_store %arg18[%c0_130, %c0_131], %274 {strides = array<i32>} : memref<1x64xf32, #tpu.memory_space<vmem>>, vector<1x64xf32>,
    return
  }
}

</mosaic_0001>

<llo_original>
// kernel: forward.1
$region0: #{forward.1}
  #allocation0 [shape = 'u32[]', space=smem, size = 0x4, offset = 0x4, fixed_abs, tag = 'smem constant byte address 0x4 - core index']
  #allocation1 [shape = 'u32[144,128]{1,0:T(1,128)}', space=vmem, size = 0x12000, scoped, tag = 'internal scratch']
  %s0 = inlined_call_operand.vmem [shape: f32[16,16], index: 0, kind: input, shape index: {}]
  %s1 = inlined_call_operand.vmem [shape: f32[2,128], index: 1, kind: input, shape index: {}]
  %s2 = inlined_call_operand.hbm [shape: f32[2,128,64], index: 2, kind: input, shape index: {}]
  %s3 = inlined_call_operand.vmem [shape: f32[2,14,16], index: 3, kind: input, shape index: {}]
  %s4 = inlined_call_operand.vmem [shape: f32[2,160,32], index: 4, kind: input, shape index: {}]
  %s5 = inlined_call_operand.hbm [shape: f32[2,1,32], index: 5, kind: input, shape index: {}]
  %s6 = inlined_call_operand.hbm [shape: f32[2,96,32], index: 6, kind: input, shape index: {}]
  %s7 = inlined_call_operand.hbm [shape: f32[2,1,32], index: 7, kind: input, shape index: {}]
  %s8 = inlined_call_operand.hbm [shape: f32[2,10,8], index: 8, kind: input, shape index: {}]
  %s9 = inlined_call_operand.hbm [shape: f32[2,320,64], index: 9, kind: input, shape index: {}]
  %s10 = inlined_call_operand.hbm [shape: f32[2,1,64], index: 10, kind: input, shape index: {}]
  %s11 = inlined_call_operand.hbm [shape: f32[2,192,64], index: 11, kind: input, shape index: {}]
  %s12 = inlined_call_operand.hbm [shape: f32[2,1,64], index: 12, kind: input, shape index: {}]
  %s13 = inlined_call_operand.vmem [shape: f32[2,8,4], index: 13, kind: input, shape index: {}]
  %s14 = inlined_call_operand.hbm [shape: f32[2,640,128], index: 14, kind: input, shape index: {}]
  %s15 = inlined_call_operand.hbm [shape: f32[2,1,128], index: 15, kind: input, shape index: {}]
  %s16 = inlined_call_operand.hbm [shape: f32[2,384,128], index: 16, kind: input, shape index: {}]
  %s17 = inlined_call_operand.hbm [shape: f32[2,1,128], index: 17, kind: input, shape index: {}]
  %s18 = inlined_call_operand.vmem [shape: f32[1,64], index: 18, kind: output, shape index: {}]
  %s19 = sld [smem:[#allocation0]]
  $region134: #{forward.1} parent=0
    _
  %s21 = ssub.s32 1, %s19
  %s22 = scalar_select 0, %s21, %s19
  $region1: #{forward.1} parent=0
    #allocation2 [shape = 'u8[131072]{0}', space=vmem, size = 0x20000, scoped, tag = 'input window, operand 2, single buffered']
    #allocation3 [shape = 's32[1]{0}', space=sflag, size = 0x4, scoped, tag = 'scoped memory for forward.1']
    #allocation4 [shape = 'u8[1024]{0}', space=vmem, size = 0x400, scoped, tag = 'input window, operand 5, single buffered']
    #allocation5 [shape = 's32[1]{0}', space=sflag, size = 0x4, scoped, tag = 'scoped memory for forward.1']
    #allocation6 [shape = 'u8[98304]{0}', space=vmem, size = 0x18000, scoped, tag = 'input window, operand 6, single buffered']
    #allocation7 [shape = 'u8[1024]{0}', space=vmem, size = 0x400, scoped, tag = 'input window, operand 7, single buffered']
    #allocation8 [shape = 's32[1]{0}', space=sflag, size = 0x4, scoped, tag = 'scoped memory for forward.1']
    #allocation9 [shape = 'u8[16384]{0}', space=vmem, size = 0x4000, scoped, tag = 'input window, operand 8, single buffered']
    #allocation10 [shape = 'u8[327680]{0}', space=vmem, size = 0x50000, scoped, tag = 'input window, operand 9, single buffered']
    #allocation11 [shape = 's32[1]{0}', space=sflag, size = 0x4, scoped, tag = 'scoped memory for forward.1']
    #allocation12 [shape = 'u8[1024]{0}', space=vmem, size = 0x400, scoped, tag = 'input window, operand 10, single buffered']
    #allocation13 [shape = 'u8[196608]{0}', space=vmem, size = 0x30000, scoped, tag = 'input window, operand 11, single buffered']
    #allocation14 [shape = 's32[1]{0}', space=sflag, size = 0x4, scoped, tag = 'scoped memory for forward.1']
    #allocation15 [shape = 'u8[1024]{0}', space=vmem, size = 0x400, scoped, tag = 'input window, operand 12, single buffered']
    #allocation16 [shape = 'u8[655360]{0}', space=vmem, size = 0xa0000, scoped, tag = 'input window, operand 14, single buffered']
    #allocation17 [shape = 's32[1]{0}', space=sflag, size = 0x4, scoped, tag = 'scoped memory for forward.1']
    #allocation18 [shape = 'u8[1024]{0}', space=vmem, size = 0x400, scoped, tag = 'input window, operand 15, single buffered']
    #allocation19 [shape = 'u8[393216]{0}', space=vmem, size = 0x60000, scoped, tag = 'input window, operand 16, single buffered']
    #allocation20 [shape = 's32[1]{0}', space=sflag, size = 0x4, scoped, tag = 'scoped memory for forward.1']
    #allocation21 [shape = 'u8[1024]{0}', space=vmem, size = 0x400, scoped, tag = 'input window, operand 17, single buffered']
    %23 = vsyncpa [#allocation3], 0
    %24 = vsyncpa [#allocation5], 0
    %25 = vsyncpa [#allocation8], 0
    %26 = vsyncpa [#allocation11], 0
    %27 = vsyncpa [#allocation14], 0
    %28 = vsyncpa [#allocation17], 0
    %29 = vsyncpa [#allocation20], 0
    // Predicated region
    $region2: #{forward.1} parent=1 // pred_check
      _
    $region3: #{forward.1} parent=1 // pred_check_branch
      %31 = sbr.rel (0) target = $region5
    $region4: #{forward.1} parent=1 // pred_region
      _
    $region5: #{forward.1} parent=1 // pred_fallthru
      _
    // Predicated region
    $region6: #{forward.1} parent=1 // pred_check
      _
    $region7: #{forward.1} parent=1 // pred_check_branch
      %33 = sbr.rel (0) target = $region9
    $region8: #{forward.1} parent=1 // pred_region
      _
    $region9: #{forward.1} parent=1 // pred_fallthru
      _
    // Predicated region
    $region10: #{forward.1} parent=1 // pred_check
      _
    $region11: #{forward.1} parent=1 // pred_check_branch
      %35 = sbr.rel (0) target = $region13
    $region12: #{forward.1} parent=1 // pred_region
      %s37 = ssub.s32 4096, 4096
      %38 = vsyncadd [#allocation3], %s37
      %s39 = sshll.u32 [#allocation2], 4
      %s40 = int_to_ptr.vmem [resolvable:$true] %s39
      %45 = dma.hbm_to_vmem [thread:$0]  %s2, 4096, %s40, [#allocation3], 128, 128, 8
    $region13: #{forward.1} parent=1 // pred_fallthru
      _
    // Predicated region
    $region14: #{forward.1} parent=1 // pred_check
      _
    $region15: #{forward.1} parent=1 // pred_check_branch
      %47 = sbr.rel (0) target = $region17
    $region16: #{forward.1} parent=1 // pred_region
      _
    $region17: #{forward.1} parent=1 // pred_fallthru
      _
    // Predicated region
    $region18: #{forward.1} parent=1 // pred_check
      _
    $region19: #{forward.1} parent=1 // pred_check_branch
      %49 = sbr.rel (0) target = $region21
    $region20: #{forward.1} parent=1 // pred_region
      _
    $region21: #{forward.1} parent=1 // pred_fallthru
      _
    // Predicated region
    $region22: #{forward.1} parent=1 // pred_check
      _
    $region23: #{forward.1} parent=1 // pred_check_branch
      %51 = sbr.rel (0) target = $region25
    $region24: #{forward.1} parent=1 // pred_region
      %s53 = ssub.s32 32, 32
      %54 = vsyncadd [#allocation5], %s53
      %s55 = sshll.u32 [#allocation4], 4
      %s56 = int_to_ptr.vmem [resolvable:$true] %s55
      %61 = dma.hbm_to_vmem [thread:$0]  %s5, 32, %s56, [#allocation5], 16, 16, 1
    $region25: #{forward.1} parent=1 // pred_fallthru
      _
    // Predicated region
    $region26: #{forward.1} parent=1 // pred_check
      _
    $region27: #{forward.1} parent=1 // pred_check_branch
      %63 = sbr.rel (0) target = $region29
    $region28: #{forward.1} parent=1 // pred_region
      %s65 = ssub.s32 3072, 3072
      %66 = vsyncadd [#allocation5], %s65
      %s67 = sshll.u32 [#allocation6], 4
      %s68 = int_to_ptr.vmem [resolvable:$true] %s67
      %73 = dma.hbm_to_vmem [thread:$0]  %s6, 3072, %s68, [#allocation5], 128, 128, 8
    $region29: #{forward.1} parent=1 // pred_fallthru
      _
    // Predicated region
    $region30: #{forward.1} parent=1 // pred_check
      _
    $region31: #{forward.1} parent=1 // pred_check_branch
      %75 = sbr.rel (0) target = $region33
    $region32: #{forward.1} parent=1 // pred_region
      %s77 = ssub.s32 32, 32
      %78 = vsyncadd [#allocation8], %s77
      %s79 = sshll.u32 [#allocation7], 4
      %s80 = int_to_ptr.vmem [resolvable:$true] %s79
      %85 = dma.hbm_to_vmem [thread:$0]  %s7, 32, %s80, [#allocation8], 16, 16, 1
    $region33: #{forward.1} parent=1 // pred_fallthru
      _
    // Predicated region
    $region34: #{forward.1} parent=1 // pred_check
      _
    $region35: #{forward.1} parent=1 // pred_check_branch
      %87 = sbr.rel (0) target = $region37
    $region36: #{forward.1} parent=1 // pred_region
      %s89 = ssub.s32 512, 512
      %90 = vsyncadd [#allocation8], %s89
      %s91 = sshll.u32 [#allocation9], 4
      %s92 = int_to_ptr.vmem [resolvable:$true] %s91
      %97 = dma.hbm_to_vmem [thread:$0]  %s8, 512, %s92, [#allocation8], 128, 128, 8
    $region37: #{forward.1} parent=1 // pred_fallthru
      _
    // Predicated region
    $region38: #{forward.1} parent=1 // pred_check
      _
    $region39: #{forward.1} parent=1 // pred_check_branch
      %99 = sbr.rel (0) target = $region41
    $region40: #{forward.1} parent=1 // pred_region
      %s101 = ssub.s32 10240, 10240
      %102 = vsyncadd [#allocation11], %s101
      %s103 = sshll.u32 [#allocation10], 4
      %s104 = int_to_ptr.vmem [resolvable:$true] %s103
      %109 = dma.hbm_to_vmem [thread:$0]  %s9, 10240, %s104, [#allocation11], 128, 128, 8
    $region41: #{forward.1} parent=1 // pred_fallthru
      _
    // Predicated region
    $region42: #{forward.1} parent=1 // pred_check
      _
    $region43: #{forward.1} parent=1 // pred_check_branch
      %111 = sbr.rel (0) target = $region45
    $region44: #{forward.1} parent=1 // pred_region
      %s113 = ssub.s32 32, 32
      %114 = vsyncadd [#allocation11], %s113
      %s115 = sshll.u32 [#allocation12], 4
      %s116 = int_to_ptr.vmem [resolvable:$true] %s115
      %121 = dma.hbm_to_vmem [thread:$0]  %s10, 32, %s116, [#allocation11], 16, 16, 1
    $region45: #{forward.1} parent=1 // pred_fallthru
      _
    // Predicated region
    $region46: #{forward.1} parent=1 // pred_check
      _
    $region47: #{forward.1} parent=1 // pred_check_branch
      %123 = sbr.rel (0) target = $region49
    $region48: #{forward.1} parent=1 // pred_region
      %s125 = ssub.s32 6144, 6144
      %126 = vsyncadd [#allocation14], %s125
      %s127 = sshll.u32 [#allocation13], 4
      %s128 = int_to_ptr.vmem [resolvable:$true] %s127
      %133 = dma.hbm_to_vmem [thread:$0]  %s11, 6144, %s128, [#allocation14], 128, 128, 8
    $region49: #{forward.1} parent=1 // pred_fallthru
      _
    // Predicated region
    $region50: #{forward.1} parent=1 // pred_check
      _
    $region51: #{forward.1} parent=1 // pred_check_branch
      %135 = sbr.rel (0) target = $region53
    $region52: #{forward.1} parent=1 // pred_region
      %s137 = ssub.s32 32, 32
      %138 = vsyncadd [#allocation14], %s137
      %s139 = sshll.u32 [#allocation15], 4
      %s140 = int_to_ptr.vmem [resolvable:$true] %s139
      %145 = dma.hbm_to_vmem [thread:$0]  %s12, 32, %s140, [#allocation14], 16, 16, 1
    $region53: #{forward.1} parent=1 // pred_fallthru
      _
    // Predicated region
    $region54: #{forward.1} parent=1 // pred_check
      _
    $region55: #{forward.1} parent=1 // pred_check_branch
      %147 = sbr.rel (0) target = $region57
    $region56: #{forward.1} parent=1 // pred_region
      _
    $region57: #{forward.1} parent=1 // pred_fallthru
      _
    // Predicated region
    $region58: #{forward.1} parent=1 // pred_check
      _
    $region59: #{forward.1} parent=1 // pred_check_branch
      %149 = sbr.rel (0) target = $region61
    $region60: #{forward.1} parent=1 // pred_region
      %s151 = ssub.s32 20480, 20480
      %152 = vsyncadd [#allocation17], %s151
      %s153 = sshll.u32 [#allocation16], 4
      %s154 = int_to_ptr.vmem [resolvable:$true] %s153
      %159 = dma.hbm_to_vmem [thread:$0]  %s14, 20480, %s154, [#allocation17], 128, 128, 8
    $region61: #{forward.1} parent=1 // pred_fallthru
      _
    // Predicated region
    $region62: #{forward.1} parent=1 // pred_check
      _
    $region63: #{forward.1} parent=1 // pred_check_branch
      %161 = sbr.rel (0) target = $region65
    $region64: #{forward.1} parent=1 // pred_region
      %s163 = ssub.s32 32, 32
      %164 = vsyncadd [#allocation17], %s163
      %s165 = sshll.u32 [#allocation18], 4
      %s166 = int_to_ptr.vmem [resolvable:$true] %s165
      %171 = dma.hbm_to_vmem [thread:$0]  %s15, 32, %s166, [#allocation17], 16, 16, 1
    $region65: #{forward.1} parent=1 // pred_fallthru
      _
    // Predicated region
    $region66: #{forward.1} parent=1 // pred_check
      _
    $region67: #{forward.1} parent=1 // pred_check_branch
      %173 = sbr.rel (0) target = $region69
    $region68: #{forward.1} parent=1 // pred_region
      %s175 = ssub.s32 12288, 12288
      %176 = vsyncadd [#allocation20], %s175
      %s177 = sshll.u32 [#allocation19], 4
      %s178 = int_to_ptr.vmem [resolvable:$true] %s177
      %183 = dma.hbm_to_vmem [thread:$0]  %s16, 12288, %s178, [#allocation20], 128, 128, 8
    $region69: #{forward.1} parent=1 // pred_fallthru
      _
    // Predicated region
    $region70: #{forward.1} parent=1 // pred_check
      _
    $region71: #{forward.1} parent=1 // pred_check_branch
      %185 = sbr.rel (0) target = $region73
    $region72: #{forward.1} parent=1 // pred_region
      %s187 = ssub.s32 32, 32
      %188 = vsyncadd [#allocation20], %s187
      %s189 = sshll.u32 [#allocation21], 4
      %s190 = int_to_ptr.vmem [resolvable:$true] %s189
      %195 = dma.hbm_to_vmem [thread:$0]  %s17, 32, %s190, [#allocation20], 16, 16, 1
    $region73: #{forward.1} parent=1 // pred_fallthru
      _
    // Predicated region
    $region74: #{forward.1} parent=1 // pred_check
      _
    $region75: #{forward.1} parent=1 // pred_check_branch
      %197 = sbr.rel (0) target = $region77
    $region76: #{forward.1} parent=1 // pred_region
      %198 = dma.done [#allocation3], 4096
    $region77: #{forward.1} parent=1 // pred_fallthru
      _
    // Predicated region
    $region78: #{forward.1} parent=1 // pred_check
      _
    $region79: #{forward.1} parent=1 // pred_check_branch
      %200 = sbr.rel (0) target = $region81
    $region80: #{forward.1} parent=1 // pred_region
      %201 = dma.done [#allocation5], 32
    $region81: #{forward.1} parent=1 // pred_fallthru
      _
    // Predicated region
    $region82: #{forward.1} parent=1 // pred_check
      _
    $region83: #{forward.1} parent=1 // pred_check_branch
      %203 = sbr.rel (0) target = $region85
    $region84: #{forward.1} parent=1 // pred_region
      %204 = dma.done [#allocation5], 3072
    $region85: #{forward.1} parent=1 // pred_fallthru
      _
    // Predicated region
    $region86: #{forward.1} parent=1 // pred_check
      _
    $region87: #{forward.1} parent=1 // pred_check_branch
      %206 = sbr.rel (0) target = $region89
    $region88: #{forward.1} parent=1 // pred_region
      %207 = dma.done [#allocation8], 32
    $region89: #{forward.1} parent=1 // pred_fallthru
      _
    // Predicated region
    $region90: #{forward.1} parent=1 // pred_check
      _
    $region91: #{forward.1} parent=1 // pred_check_branch
      %209 = sbr.rel (0) target = $region93
    $region92: #{forward.1} parent=1 // pred_region
      %210 = dma.done [#allocation8], 512
    $region93: #{forward.1} parent=1 // pred_fallthru
      _
    // Predicated region
    $region94: #{forward.1} parent=1 // pred_check
      _
    $region95: #{forward.1} parent=1 // pred_check_branch
      %212 = sbr.rel (0) target = $region97
    $region96: #{forward.1} parent=1 // pred_region
      %213 = dma.done [#allocation11], 10240
    $region97: #{forward.1} parent=1 // pred_fallthru
      _
    // Predicated region
    $region98: #{forward.1} parent=1 // pred_check
      _
    $region99: #{forward.1} parent=1 // pred_check_branch
      %215 = sbr.rel (0) target = $region101
    $region100: #{forward.1} parent=1 // pred_region
      %216 = dma.done [#allocation11], 32
    $region101: #{forward.1} parent=1 // pred_fallthru
      _
    // Predicated region
    $region102: #{forward.1} parent=1 // pred_check
      _
    $region103: #{forward.1} parent=1 // pred_check_branch
      %218 = sbr.rel (0) target = $region105
    $region104: #{forward.1} parent=1 // pred_region
      %219 = dma.done [#allocation14], 6144
    $region105: #{forward.1} parent=1 // pred_fallthru
      _
    // Predicated region
    $region106: #{forward.1} parent=1 // pred_check
      _
    $region107: #{forward.1} parent=1 // pred_check_branch
      %221 = sbr.rel (0) target = $region109
    $region108: #{forward.1} parent=1 // pred_region
      %222 = dma.done [#allocation14], 32
    $region109: #{forward.1} parent=1 // pred_fallthru
      _
    // Predicated region
    $region110: #{forward.1} parent=1 // pred_check
      _
    $region111: #{forward.1} parent=1 // pred_check_branch
      %224 = sbr.rel (0) target = $region113
    $region112: #{forward.1} parent=1 // pred_region
      %225 = dma.done [#allocation17], 20480
    $region113: #{forward.1} parent=1 // pred_fallthru
      _
    // Predicated region
    $region114: #{forward.1} parent=1 // pred_check
      _
    $region115: #{forward.1} parent=1 // pred_check_branch
      %227 = sbr.rel (0) target = $region117
    $region116: #{forward.1} parent=1 // pred_region
      %228 = dma.done [#allocation17], 32
    $region117: #{forward.1} parent=1 // pred_fallthru
      _
    // Predicated region
    $region118: #{forward.1} parent=1 // pred_check
      _
    $region119: #{forward.1} parent=1 // pred_check_branch
      %230 = sbr.rel (0) target = $region121
    $region120: #{forward.1} parent=1 // pred_region
      %231 = dma.done [#allocation20], 12288
    $region121: #{forward.1} parent=1 // pred_fallthru
      _
    // Predicated region
    $region122: #{forward.1} parent=1 // pred_check
      _
    $region123: #{forward.1} parent=1 // pred_check_branch
      %233 = sbr.rel (0) target = $region125
    $region124: #{forward.1} parent=1 // pred_region
      %234 = dma.done [#allocation20], 32
    $region125: #{forward.1} parent=1 // pred_fallthru
      _
    %v235 = vld [vmem:[%s0] sm:$0xff]
    %v236 = vld [vmem:[%s0 + $0x8] sm:$0xff]
    %v237 = vld [vmem:[%s3] sm:$0xff]
    %v238 = vld [vmem:[%s3 + $0x8] sm:$0x3f]
    %vm239 = vcmask 130048
    %v241 = vsel %vm239, %v237, 0
    %v244 = vsel %vm239, %v238, 0
    %246 = vmatprep.subr.mxu0 0.0
    %247 = vmatpush1.msra.mxu0 %v235
    %248 = vmatprep.subr.mxu0 0.0
    %249 = vmatpush1.msra.mxu0 %v236
    %250 = vmatprep.subr.mxu0 0.0
    %251 = vmatpush1.msra.mxu0 0.0
    %252 = vmatprep.subr.mxu0 0.0
    %253 = vmatpush1.msra.mxu0 0.0
    %254 = vmatprep.subr.mxu0 0.0
    %255 = vmatpush1.msra.mxu0 0.0
    %256 = vmatprep.subr.mxu0 0.0
    %257 = vmatpush1.msra.mxu0 0.0
    %258 = vmatprep.subr.mxu0 0.0
    %259 = vmatpush1.msra.mxu0 0.0
    %260 = vmatprep.subr.mxu0 0.0
    %261 = vmatpush1.msra.mxu0 0.0
    %262 = vmatprep.subr.mxu0 0.0
    %263 = vmatpush1.msra.mxu0 0.0
    %264 = vmatprep.subr.mxu0 0.0
    %265 = vmatpush1.msra.mxu0 0.0
    %266 = vmatprep.subr.mxu0 0.0
    %267 = vmatpush1.msra.mxu0 0.0
    %268 = vmatprep.subr.mxu0 0.0
    %269 = vmatpush1.msra.mxu0 0.0
    %270 = vmatprep.subr.mxu0 0.0
    %271 = vmatpush1.msra.mxu0 0.0
    %272 = vmatprep.subr.mxu0 0.0
    %273 = vmatpush1.msra.mxu0 0.0
    %274 = vmatprep.subr.mxu0 0.0
    %275 = vmatpush1.msra.mxu0 0.0
    %276 = vmatprep.subr.mxu0 0.0
    %277 = vmatpush1.msra.mxu0 0.0
    %278 = vmatprep.subr.mxu0 0.0
    %279 = vmatpush1.msra.mxu0 0.0
    %280 = vmatprep.subr.mxu0 0.0
    %281 = vmatpush1.msra.mxu0 0.0
    %282 = vmatprep.subr.mxu0 0.0
    %283 = vmatpush1.msra.mxu0 0.0
    %284 = vmatprep.subr.mxu0 0.0
    %285 = vmatpush1.msra.mxu0 0.0
    %286 = vmatprep.subr.mxu0 0.0
    %287 = vmatpush1.msra.mxu0 0.0
    %288 = vmatprep.subr.mxu0 0.0
    %289 = vmatpush1.msra.mxu0 0.0
    %290 = vmatprep.subr.mxu0 0.0
    %291 = vmatpush1.msra.mxu0 0.0
    %292 = vmatprep.subr.mxu0 0.0
    %293 = vmatpush1.msra.mxu0 0.0
    %294 = vmatprep.subr.mxu0 0.0
    %295 = vmatpush1.msra.mxu0 0.0
    %296 = vmatprep.subr.mxu0 0.0
    %297 = vmatpush1.msra.mxu0 0.0
    %298 = vmatprep.subr.mxu0 0.0
    %299 = vmatpush1.msra.mxu0 0.0
    %300 = vmatprep.subr.mxu0 0.0
    %301 = vmatpush1.msra.mxu0 0.0
    %302 = vmatprep.subr.mxu0 0.0
    %303 = vmatpush1.msra.mxu0 0.0
    %304 = vmatprep.subr.mxu0 0.0
    %305 = vmatpush1.msra.mxu0 0.0
    %306 = vmatprep.subr.mxu0 0.0
    %307 = vmatpush1.msra.mxu0 0.0
    %308 = vmatprep.subr.mxu0 0.0
    %309 = vmatpush1.msra.mxu0 0.0
    %310 = vmatprep.mubr.f32.mxu0 0.0
    %311 = vmatmul.mubr.f32.gmra.mrb[0].mxu0 %v241
    %v312 = vpop.f32.mrb[0].mxu0
    %v313 = vadd.f32 0.0, %v312
    %v314 = vpop.f32.mrb[0].mxu0
    %315 = vmatprep.mubr.f32.mxu0 0.0
    %316 = vmatmul.mubr.f32.gmra.mrb[0].mxu0 %v244
    %v317 = vpop.f32.mrb[0].mxu0
    %v318 = vadd.f32 0.0, %v317
    %v319 = vpop.f32.mrb[0].mxu0
    %320 = vdwg.mxu0
    %s321 = scalar_lea.vmem %s3, 16
    %v322 = vld [vmem:[%s321] sm:$0xff]
    %v323 = vld [vmem:[%s321 + $0x8] sm:$0x3f]
    %v325 = vsel %vm239, %v322, 0
    %v328 = vsel %vm239, %v323, 0
    %330 = vmatprep.subr.mxu0 0.0
    %331 = vmatpush1.msra.mxu0 %v235
    %332 = vmatprep.subr.mxu0 0.0
    %333 = vmatpush1.msra.mxu0 %v236
    %334 = vmatprep.subr.mxu0 0.0
    %335 = vmatpush1.msra.mxu0 0.0
    %336 = vmatprep.subr.mxu0 0.0
    %337 = vmatpush1.msra.mxu0 0.0
    %338 = vmatprep.subr.mxu0 0.0
    %339 = vmatpush1.msra.mxu0 0.0
    %340 = vmatprep.subr.mxu0 0.0
    %341 = vmatpush1.msra.mxu0 0.0
    %342 = vmatprep.subr.mxu0 0.0
    %343 = vmatpush1.msra.mxu0 0.0
    %344 = vmatprep.subr.mxu0 0.0
    %345 = vmatpush1.msra.mxu0 0.0
    %346 = vmatprep.subr.mxu0 0.0
    %347 = vmatpush1.msra.mxu0 0.0
    %348 = vmatprep.subr.mxu0 0.0
    %349 = vmatpush1.msra.mxu0 0.0
    %350 = vmatprep.subr.mxu0 0.0
    %351 = vmatpush1.msra.mxu0 0.0
    %352 = vmatprep.subr.mxu0 0.0
    %353 = vmatpush1.msra.mxu0 0.0
    %354 = vmatprep.subr.mxu0 0.0
    %355 = vmatpush1.msra.mxu0 0.0
    %356 = vmatprep.subr.mxu0 0.0
    %357 = vmatpush1.msra.mxu0 0.0
    %358 = vmatprep.subr.mxu0 0.0
    %359 = vmatpush1.msra.mxu0 0.0
    %360 = vmatprep.subr.mxu0 0.0
    %361 = vmatpush1.msra.mxu0 0.0
    %362 = vmatprep.subr.mxu0 0.0
    %363 = vmatpush1.msra.mxu0 0.0
    %364 = vmatprep.subr.mxu0 0.0
    %365 = vmatpush1.msra.mxu0 0.0
    %366 = vmatprep.subr.mxu0 0.0
    %367 = vmatpush1.msra.mxu0 0.0
    %368 = vmatprep.subr.mxu0 0.0
    %369 = vmatpush1.msra.mxu0 0.0
    %370 = vmatprep.subr.mxu0 0.0
    %371 = vmatpush1.msra.mxu0 0.0
    %372 = vmatprep.subr.mxu0 0.0
    %373 = vmatpush1.msra.mxu0 0.0
    %374 = vmatprep.subr.mxu0 0.0
    %375 = vmatpush1.msra.mxu0 0.0
    %376 = vmatprep.subr.mxu0 0.0
    %377 = vmatpush1.msra.mxu0 0.0
    %378 = vmatprep.subr.mxu0 0.0
    %379 = vmatpush1.msra.mxu0 0.0
    %380 = vmatprep.subr.mxu0 0.0
    %381 = vmatpush1.msra.mxu0 0.0
    %382 = vmatprep.subr.mxu0 0.0
    %383 = vmatpush1.msra.mxu0 0.0
    %384 = vmatprep.subr.mxu0 0.0
    %385 = vmatpush1.msra.mxu0 0.0
    %386 = vmatprep.subr.mxu0 0.0
    %387 = vmatpush1.msra.mxu0 0.0
    %388 = vmatprep.subr.mxu0 0.0
    %389 = vmatpush1.msra.mxu0 0.0
    %390 = vmatprep.subr.mxu0 0.0
    %391 = vmatpush1.msra.mxu0 0.0
    %392 = vmatprep.subr.mxu0 0.0
    %393 = vmatpush1.msra.mxu0 0.0
    %394 = vmatprep.mubr.f32.mxu0 0.0
    %395 = vmatmul.mubr.f32.gmra.mrb[0].mxu0 %v325
    %v396 = vpop.f32.mrb[0].mxu0
    %v397 = vadd.f32 0.0, %v396
    %v398 = vpop.f32.mrb[0].mxu0
    %399 = vmatprep.mubr.f32.mxu0 0.0
    %400 = vmatmul.mubr.f32.gmra.mrb[0].mxu0 %v328
    %v401 = vpop.f32.mrb[0].mxu0
    %v402 = vadd.f32 0.0, %v401
    %v403 = vpop.f32.mrb[0].mxu0
    %404 = vdwg.mxu0
    %407 = vrot.lane.b32.xlu0 %v397, 16
    %v408 = vpop.permute.xlu0 %407
    %409 = vrot.lane.b32.xlu0 %v402, 16
    %v410 = vpop.permute.xlu0 %409
    %v413 = vsel %vm239, %v313, %v408
    %v414 = vsel %vm239, %v318, %v410
    %v415 = vld [vmem:[%s4] sm:$0xff]
    %v416 = vld [vmem:[%s4 + $0x8] sm:$0xff]
    %v417 = vld [vmem:[%s4 + $0x10] sm:$0xff]
    %v418 = vld [vmem:[%s4 + $0x18] sm:$0xff]
    %v419 = vld [vmem:[%s4 + $0x20] sm:$0xff]
    %v420 = vld [vmem:[%s4 + $0x28] sm:$0xff]
    %v421 = vld [vmem:[%s4 + $0x30] sm:$0xff]
    %v422 = vld [vmem:[%s4 + $0x38] sm:$0xff]
    %v423 = vld [vmem:[%s4 + $0x40] sm:$0xff]
    %v424 = vld [vmem:[%s4 + $0x48] sm:$0xff]
    %v425 = vld [vmem:[%s4 + $0x50] sm:$0xff]
    %v426 = vld [vmem:[%s4 + $0x58] sm:$0xff]
    %v427 = vld [vmem:[%s4 + $0x60] sm:$0xff]
    %v428 = vld [vmem:[%s4 + $0x68] sm:$0xff]
    %v429 = vld [vmem:[%s4 + $0x70] sm:$0xff]
    %v430 = vld [vmem:[%s4 + $0x78] sm:$0xff]
    %v431 = vld [vmem:[%s4 + $0x80] sm:$0xff]
    %v432 = vld [vmem:[%s4 + $0x88] sm:$0xff]
    %v433 = vld [vmem:[%s4 + $0x90] sm:$0xff]
    %v434 = vld [vmem:[%s4 + $0x98] sm:$0xff]
    %v435 = vld [vmem:[#allocation4] sm:$0x1]
    %v436 = vld [vmem:[#allocation6] sm:$0xff]
    %v437 = vld [vmem:[#allocation6 + $0x8] sm:$0xff]
    %v438 = vld [vmem:[#allocation6 + $0x10] sm:$0xff]
    %v439 = vld [vmem:[#allocation6 + $0x18] sm:$0xff]
    %v440 = vld [vmem:[#allocation6 + $0x20] sm:$0xff]
    %v441 = vld [vmem:[#allocation6 + $0x28] sm:$0xff]
    %v442 = vld [vmem:[#allocation6 + $0x30] sm:$0xff]
    %v443 = vld [vmem:[#allocation6 + $0x38] sm:$0xff]
    %v444 = vld [vmem:[#allocation6 + $0x40] sm:$0xff]
    %v445 = vld [vmem:[#allocation6 + $0x48] sm:$0xff]
    %v446 = vld [vmem:[#allocation6 + $0x50] sm:$0xff]
    %v447 = vld [vmem:[#allocation6 + $0x58] sm:$0xff]
    %v448 = vld [vmem:[#allocation7] sm:$0x1]
    %vm451 = vcmask 1046528
    %v452 = vrot.slane %v413, 1
    %v453 = vrot.slane %v414, 1
    %v454 = vsel %vm451, %v452, %v453
    %455 = vrot.lane.b32.xlu0 %v454, 32
    %v456 = vpop.permute.xlu0 %455
    %457 = vrot.lane.b32.xlu0 %v453, 32
    %v458 = vpop.permute.xlu0 %457
    %vm461 = vcmask 1045504
    %v462 = vrot.slane %v413, 2
    %v463 = vrot.slane %v414, 2
    %v464 = vsel %vm461, %v462, %v463
    %465 = vrot.lane.b32.xlu0 %v464, 64
    %v466 = vpop.permute.xlu0 %465
    %467 = vrot.lane.b32.xlu0 %v463, 64
    %v468 = vpop.permute.xlu0 %467
    %vm471 = vcmask 1044480
    %v472 = vrot.slane %v413, 3
    %v473 = vrot.slane %v414, 3
    %v474 = vsel %vm471, %v472, %v473
    %475 = vrot.lane.b32.xlu0 %v474, 96
    %v476 = vpop.permute.xlu0 %475
    %477 = vrot.lane.b32.xlu0 %v473, 96
    %v478 = vpop.permute.xlu0 %477
    %vm481 = vcmask 1043456
    %v482 = vrot.slane %v413, 4
    %v483 = vrot.slane %v414, 4
    %v484 = vsel %vm481, %v482, %v483
    %vm485 = vcmask 261120
    %v486 = vsel %vm485, %v413, %v456
    %v487 = vsel %vm485, %v414, %v458
    %vm488 = vcmask 523264
    %v489 = vsel %vm488, %v486, %v466
    %v490 = vsel %vm488, %v487, %v468
    %vm491 = vcmask 785408
    %v492 = vsel %vm491, %v489, %v476
    %v493 = vsel %vm491, %v490, %v478
    %v495 = vlaneseq
    %v496 = vshrl.u32 %v495, 7
    %v497 = vsub.s32 0, %v496
    %v498 = vrot.slane %v435, %v497
    %v500 = vsel %vm485, %v484, 0
    %v502 = vsel %vm485, %v483, 0
    %504 = vmatprep.subr.mxu0 0.0
    %505 = vmatpush1.msra.mxu0 %v415
    %506 = vmatprep.subr.mxu0 0.0
    %507 = vmatpush1.msra.mxu0 %v416
    %508 = vmatprep.subr.mxu0 0.0
    %509 = vmatpush1.msra.mxu0 %v417
    %510 = vmatprep.subr.mxu0 0.0
    %511 = vmatpush1.msra.mxu0 %v418
    %512 = vmatprep.subr.mxu0 0.0
    %513 = vmatpush1.msra.mxu0 %v419
    %514 = vmatprep.subr.mxu0 0.0
    %515 = vmatpush1.msra.mxu0 %v420
    %516 = vmatprep.subr.mxu0 0.0
    %517 = vmatpush1.msra.mxu0 %v421
    %518 = vmatprep.subr.mxu0 0.0
    %519 = vmatpush1.msra.mxu0 %v422
    %520 = vmatprep.subr.mxu0 0.0
    %521 = vmatpush1.msra.mxu0 %v423
    %522 = vmatprep.subr.mxu0 0.0
    %523 = vmatpush1.msra.mxu0 %v424
    %524 = vmatprep.subr.mxu0 0.0
    %525 = vmatpush1.msra.mxu0 %v425
    %526 = vmatprep.subr.mxu0 0.0
    %527 = vmatpush1.msra.mxu0 %v426
    %528 = vmatprep.subr.mxu0 0.0
    %529 = vmatpush1.msra.mxu0 %v427
    %530 = vmatprep.subr.mxu0 0.0
    %531 = vmatpush1.msra.mxu0 %v428
    %532 = vmatprep.subr.mxu0 0.0
    %533 = vmatpush1.msra.mxu0 %v429
    %534 = vmatprep.subr.mxu0 0.0
    %535 = vmatpush1.msra.mxu0 %v430
    %536 = vmatprep.subr.mxu0 0.0
    %537 = vmatpush1.msra.mxu0 %v431
    %538 = vmatprep.subr.mxu0 0.0
    %539 = vmatpush1.msra.mxu0 %v432
    %540 = vmatprep.subr.mxu0 0.0
    %541 = vmatpush1.msra.mxu0 %v433
    %542 = vmatprep.subr.mxu0 0.0
    %543 = vmatpush1.msra.mxu0 %v434
    %544 = vmatprep.subr.mxu0 0.0
    %545 = vmatpush1.msra.mxu0 0.0
    %546 = vmatprep.subr.mxu0 0.0
    %547 = vmatpush1.msra.mxu0 0.0
    %548 = vmatprep.subr.mxu0 0.0
    %549 = vmatpush1.msra.mxu0 0.0
    %550 = vmatprep.subr.mxu0 0.0
    %551 = vmatpush1.msra.mxu0 0.0
    %552 = vmatprep.subr.mxu0 0.0
    %553 = vmatpush1.msra.mxu0 0.0
    %554 = vmatprep.subr.mxu0 0.0
    %555 = vmatpush1.msra.mxu0 0.0
    %556 = vmatprep.subr.mxu0 0.0
    %557 = vmatpush1.msra.mxu0 0.0
    %558 = vmatprep.subr.mxu0 0.0
    %559 = vmatpush1.msra.mxu0 0.0
    %560 = vmatprep.subr.mxu0 0.0
    %561 = vmatpush1.msra.mxu0 0.0
    %562 = vmatprep.subr.mxu0 0.0
    %563 = vmatpush1.msra.mxu0 0.0
    %564 = vmatprep.subr.mxu0 0.0
    %565 = vmatpush1.msra.mxu0 0.0
    %566 = vmatprep.subr.mxu0 0.0
    %567 = vmatpush1.msra.mxu0 0.0
    %568 = vmatprep.mubr.f32.mxu0 %v500
    %569 = vmatmul.mubr.f32.gmra.mrb[0].mxu0 %v492
    %v570 = vpop.f32.mrb[0].mxu0
    %v571 = vadd.f32 %v498, %v570
    %v572 = vpop.f32.mrb[0].mxu0
    %573 = vmatprep.mubr.f32.mxu0 %v502
    %574 = vmatmul.mubr.f32.gmra.mrb[0].mxu0 %v493
    %v575 = vpop.f32.mrb[0].mxu0
    %v576 = vadd.f32 %v498, %v575
    %v577 = vpop.f32.mrb[0].mxu0
    %578 = vdwg.mxu0
    %vm579 = vcmp.ge.f32.partialorder %v571, 0.0
    %vm580 = vcmp.ge.f32.partialorder %v576, 0.0
    %v581 = vmul.f32 %v571, 0.01
    %v582 = vmul.f32 %v576, 0.01
    %v583 = vsel %vm579, %v571, %v581
    %v584 = vsel %vm580, %v576, %v582
    %v587 = vrot.slane %v583, 1
    %v588 = vrot.slane %v584, 1
    %v589 = vsel %vm451, %v587, %v588
    %590 = vrot.lane.b32.xlu0 %v589, 32
    %v591 = vpop.permute.xlu0 %590
    %v593 = vrot.slane %v583, 2
    %v594 = vrot.slane %v584, 2
    %v595 = vsel %vm461, %v593, %v594
    %596 = vrot.lane.b32.xlu0 %v595, 64
    %v597 = vpop.permute.xlu0 %596
    %v599 = vsel %vm485, %v583, %v591
    %v600 = vsel %vm488, %v599, %v597
    %v602 = vlaneseq
    %v603 = vshrl.u32 %v602, 7
    %v604 = vsub.s32 0, %v603
    %v605 = vrot.slane %v448, %v604
    %v608 = vsel %vm491, %v600, 0
    %610 = vmatprep.subr.mxu0 0.0
    %611 = vmatpush1.msra.mxu0 %v436
    %612 = vmatprep.subr.mxu0 0.0
    %613 = vmatpush1.msra.mxu0 %v437
    %614 = vmatprep.subr.mxu0 0.0
    %615 = vmatpush1.msra.mxu0 %v438
    %616 = vmatprep.subr.mxu0 0.0
    %617 = vmatpush1.msra.mxu0 %v439
    %618 = vmatprep.subr.mxu0 0.0
    %619 = vmatpush1.msra.mxu0 %v440
    %620 = vmatprep.subr.mxu0 0.0
    %621 = vmatpush1.msra.mxu0 %v441
    %622 = vmatprep.subr.mxu0 0.0
    %623 = vmatpush1.msra.mxu0 %v442
    %624 = vmatprep.subr.mxu0 0.0
    %625 = vmatpush1.msra.mxu0 %v443
    %626 = vmatprep.subr.mxu0 0.0
    %627 = vmatpush1.msra.mxu0 %v444
    %628 = vmatprep.subr.mxu0 0.0
    %629 = vmatpush1.msra.mxu0 %v445
    %630 = vmatprep.subr.mxu0 0.0
    %631 = vmatpush1.msra.mxu0 %v446
    %632 = vmatprep.subr.mxu0 0.0
    %633 = vmatpush1.msra.mxu0 %v447
    %634 = vmatprep.subr.mxu0 0.0
    %635 = vmatpush1.msra.mxu0 0.0
    %636 = vmatprep.subr.mxu0 0.0
    %637 = vmatpush1.msra.mxu0 0.0
    %638 = vmatprep.subr.mxu0 0.0
    %639 = vmatpush1.msra.mxu0 0.0
    %640 = vmatprep.subr.mxu0 0.0
    %641 = vmatpush1.msra.mxu0 0.0
    %642 = vmatprep.subr.mxu0 0.0
    %643 = vmatpush1.msra.mxu0 0.0
    %644 = vmatprep.subr.mxu0 0.0
    %645 = vmatpush1.msra.mxu0 0.0
    %646 = vmatprep.subr.mxu0 0.0
    %647 = vmatpush1.msra.mxu0 0.0
    %648 = vmatprep.subr.mxu0 0.0
    %649 = vmatpush1.msra.mxu0 0.0
    %650 = vmatprep.subr.mxu0 0.0
    %651 = vmatpush1.msra.mxu0 0.0
    %652 = vmatprep.subr.mxu0 0.0
    %653 = vmatpush1.msra.mxu0 0.0
    %654 = vmatprep.subr.mxu0 0.0
    %655 = vmatpush1.msra.mxu0 0.0
    %656 = vmatprep.subr.mxu0 0.0
    %657 = vmatpush1.msra.mxu0 0.0
    %658 = vmatprep.subr.mxu0 0.0
    %659 = vmatpush1.msra.mxu0 0.0
    %660 = vmatprep.subr.mxu0 0.0
    %661 = vmatpush1.msra.mxu0 0.0
    %662 = vmatprep.subr.mxu0 0.0
    %663 = vmatpush1.msra.mxu0 0.0
    %664 = vmatprep.subr.mxu0 0.0
    %665 = vmatpush1.msra.mxu0 0.0
    %666 = vmatprep.subr.mxu0 0.0
    %667 = vmatpush1.msra.mxu0 0.0
    %668 = vmatprep.subr.mxu0 0.0
    %669 = vmatpush1.msra.mxu0 0.0
    %670 = vmatprep.subr.mxu0 0.0
    %671 = vmatpush1.msra.mxu0 0.0
    %672 = vmatprep.subr.mxu0 0.0
    %673 = vmatpush1.msra.mxu0 0.0
    %674 = vmatprep.mubr.f32.mxu0 0.0
    %675 = vmatmul.mubr.f32.gmra.mrb[0].mxu0 %v608
    %v676 = vpop.f32.mrb[0].mxu0
    %v677 = vadd.f32 %v605, %v676
    %v678 = vpop.f32.mrb[0].mxu0
    %679 = vdwg.mxu0
    %v680 = vtanh.pop %v677
    %681 = vrot.lane.b32.xlu0 %v413, 112
    %v682 = vpop.permute.xlu0 %681
    %683 = vrot.lane.b32.xlu0 %v414, 112
    %v684 = vpop.permute.xlu0 %683
    %687 = vrot.lane.b32.xlu0 %v413, 16
    %v688 = vpop.permute.xlu0 %687
    %689 = vrot.lane.b32.xlu0 %v414, 16
    %v690 = vpop.permute.xlu0 %689
    %v693 = vsel %vm239, %v682, %v688
    %v694 = vsel %vm239, %v684, %v690
    %v695 = vmul.f32 %v680, 1.442695
    %v696 = vpow.pop %v695
    %v698 = vrot.slane %v696, 5
    %v700 = vmul.f32 %v693, %v698
    %v701 = vmul.f32 %v694, %v698
    %v702 = vlaneseq
    %v703 = vshrl.u32 %v702, 7
    %v704 = vsub.s32 3, %v703
    %v705 = vrot.slane %v700, %v704
    %v706 = vlaneseq
    %v707 = vshrl.u32 %v706, 7
    %v708 = vsub.s32 2, %v707
    %v709 = vrot.slane %v701, %v708
    %vm710 = vcmask 1042432
    %v711 = vsel %vm710, %v705, %v700
    %v712 = vsel %vm710, %v701, %v709
    %s713 = scalar_lea.vmem %s4, 160
    %v714 = vld [vmem:[%s713] sm:$0xff]
    %v715 = vld [vmem:[%s713 + $0x8] sm:$0xff]
    %v716 = vld [vmem:[%s713 + $0x10] sm:$0xff]
    %v717 = vld [vmem:[%s713 + $0x18] sm:$0xff]
    %v718 = vld [vmem:[%s713 + $0x20] sm:$0xff]
    %v719 = vld [vmem:[%s713 + $0x28] sm:$0xff]
    %v720 = vld [vmem:[%s713 + $0x30] sm:$0xff]
    %v721 = vld [vmem:[%s713 + $0x38] sm:$0xff]
    %v722 = vld [vmem:[%s713 + $0x40] sm:$0xff]
    %v723 = vld [vmem:[%s713 + $0x48] sm:$0xff]
    %v724 = vld [vmem:[%s713 + $0x50] sm:$0xff]
    %v725 = vld [vmem:[%s713 + $0x58] sm:$0xff]
    %v726 = vld [vmem:[%s713 + $0x60] sm:$0xff]
    %v727 = vld [vmem:[%s713 + $0x68] sm:$0xff]
    %v728 = vld [vmem:[%s713 + $0x70] sm:$0xff]
    %v729 = vld [vmem:[%s713 + $0x78] sm:$0xff]
    %v730 = vld [vmem:[%s713 + $0x80] sm:$0xff]
    %v731 = vld [vmem:[%s713 + $0x88] sm:$0xff]
    %v732 = vld [vmem:[%s713 + $0x90] sm:$0xff]
    %v733 = vld [vmem:[%s713 + $0x98] sm:$0xff]
    %s734 = scalar_lea.vmem [#allocation4], 1
    %v735 = vld [vmem:[%s734] sm:$0x1]
    %s736 = scalar_lea.vmem [#allocation6], 96
    %v737 = vld [vmem:[%s736] sm:$0xff]
    %v738 = vld [vmem:[%s736 + $0x8] sm:$0xff]
    %v739 = vld [vmem:[%s736 + $0x10] sm:$0xff]
    %v740 = vld [vmem:[%s736 + $0x18] sm:$0xff]
    %v741 = vld [vmem:[%s736 + $0x20] sm:$0xff]
    %v742 = vld [vmem:[%s736 + $0x28] sm:$0xff]
    %v743 = vld [vmem:[%s736 + $0x30] sm:$0xff]
    %v744 = vld [vmem:[%s736 + $0x38] sm:$0xff]
    %v745 = vld [vmem:[%s736 + $0x40] sm:$0xff]
    %v746 = vld [vmem:[%s736 + $0x48] sm:$0xff]
    %v747 = vld [vmem:[%s736 + $0x50] sm:$0xff]
    %v748 = vld [vmem:[%s736 + $0x58] sm:$0xff]
    %s749 = scalar_lea.vmem [#allocation7], 1
    %v750 = vld [vmem:[%s749] sm:$0x1]
    %v753 = vrot.slane %v711, 1
    %v754 = vrot.slane %v712, 1
    %v755 = vsel %vm451, %v753, %v754
    %756 = vrot.lane.b32.xlu0 %v755, 32
    %v757 = vpop.permute.xlu0 %756
    %758 = vrot.lane.b32.xlu0 %v754, 32
    %v759 = vpop.permute.xlu0 %758
    %v762 = vrot.slane %v711, 2
    %v763 = vrot.slane %v712, 2
    %v764 = vsel %vm461, %v762, %v763
    %765 = vrot.lane.b32.xlu0 %v764, 64
    %v766 = vpop.permute.xlu0 %765
    %767 = vrot.lane.b32.xlu0 %v763, 64
    %v768 = vpop.permute.xlu0 %767
    %v771 = vrot.slane %v711, 3
    %v772 = vrot.slane %v712, 3
    %v773 = vsel %vm471, %v771, %v772
    %774 = vrot.lane.b32.xlu0 %v773, 96
    %v775 = vpop.permute.xlu0 %774
    %776 = vrot.lane.b32.xlu0 %v772, 96
    %v777 = vpop.permute.xlu0 %776
    %v780 = vrot.slane %v711, 4
    %v781 = vrot.slane %v712, 4
    %v782 = vsel %vm481, %v780, %v781
    %v783 = vsel %vm485, %v711, %v757
    %v784 = vsel %vm485, %v712, %v759
    %v785 = vsel %vm488, %v783, %v766
    %v786 = vsel %vm488, %v784, %v768
    %v787 = vsel %vm491, %v785, %v775
    %v788 = vsel %vm491, %v786, %v777
    %v790 = vlaneseq
    %v791 = vshrl.u32 %v790, 7
    %v792 = vsub.s32 0, %v791
    %v793 = vrot.slane %v735, %v792
    %v795 = vsel %vm485, %v782, 0
    %v797 = vsel %vm485, %v781, 0
    %799 = vmatprep.subr.mxu0 0.0
    %800 = vmatpush1.msra.mxu0 %v714
    %801 = vmatprep.subr.mxu0 0.0
    %802 = vmatpush1.msra.mxu0 %v715
    %803 = vmatprep.subr.mxu0 0.0
    %804 = vmatpush1.msra.mxu0 %v716
    %805 = vmatprep.subr.mxu0 0.0
    %806 = vmatpush1.msra.mxu0 %v717
    %807 = vmatprep.subr.mxu0 0.0
    %808 = vmatpush1.msra.mxu0 %v718
    %809 = vmatprep.subr.mxu0 0.0
    %810 = vmatpush1.msra.mxu0 %v719
    %811 = vmatprep.subr.mxu0 0.0
    %812 = vmatpush1.msra.mxu0 %v720
    %813 = vmatprep.subr.mxu0 0.0
    %814 = vmatpush1.msra.mxu0 %v721
    %815 = vmatprep.subr.mxu0 0.0
    %816 = vmatpush1.msra.mxu0 %v722
    %817 = vmatprep.subr.mxu0 0.0
    %818 = vmatpush1.msra.mxu0 %v723
    %819 = vmatprep.subr.mxu0 0.0
    %820 = vmatpush1.msra.mxu0 %v724
    %821 = vmatprep.subr.mxu0 0.0
    %822 = vmatpush1.msra.mxu0 %v725
    %823 = vmatprep.subr.mxu0 0.0
    %824 = vmatpush1.msra.mxu0 %v726
    %825 = vmatprep.subr.mxu0 0.0
    %826 = vmatpush1.msra.mxu0 %v727
    %827 = vmatprep.subr.mxu0 0.0
    %828 = vmatpush1.msra.mxu0 %v728
    %829 = vmatprep.subr.mxu0 0.0
    %830 = vmatpush1.msra.mxu0 %v729
    %831 = vmatprep.subr.mxu0 0.0
    %832 = vmatpush1.msra.mxu0 %v730
    %833 = vmatprep.subr.mxu0 0.0
    %834 = vmatpush1.msra.mxu0 %v731
    %835 = vmatprep.subr.mxu0 0.0
    %836 = vmatpush1.msra.mxu0 %v732
    %837 = vmatprep.subr.mxu0 0.0
    %838 = vmatpush1.msra.mxu0 %v733
    %839 = vmatprep.subr.mxu0 0.0
    %840 = vmatpush1.msra.mxu0 0.0
    %841 = vmatprep.subr.mxu0 0.0
    %842 = vmatpush1.msra.mxu0 0.0
    %843 = vmatprep.subr.mxu0 0.0
    %844 = vmatpush1.msra.mxu0 0.0
    %845 = vmatprep.subr.mxu0 0.0
    %846 = vmatpush1.msra.mxu0 0.0
    %847 = vmatprep.subr.mxu0 0.0
    %848 = vmatpush1.msra.mxu0 0.0
    %849 = vmatprep.subr.mxu0 0.0
    %850 = vmatpush1.msra.mxu0 0.0
    %851 = vmatprep.subr.mxu0 0.0
    %852 = vmatpush1.msra.mxu0 0.0
    %853 = vmatprep.subr.mxu0 0.0
    %854 = vmatpush1.msra.mxu0 0.0
    %855 = vmatprep.subr.mxu0 0.0
    %856 = vmatpush1.msra.mxu0 0.0
    %857 = vmatprep.subr.mxu0 0.0
    %858 = vmatpush1.msra.mxu0 0.0
    %859 = vmatprep.subr.mxu0 0.0
    %860 = vmatpush1.msra.mxu0 0.0
    %861 = vmatprep.subr.mxu0 0.0
    %862 = vmatpush1.msra.mxu0 0.0
    %863 = vmatprep.mubr.f32.mxu0 %v795
    %864 = vmatmul.mubr.f32.gmra.mrb[0].mxu0 %v787
    %v865 = vpop.f32.mrb[0].mxu0
    %v866 = vadd.f32 %v793, %v865
    %v867 = vpop.f32.mrb[0].mxu0
    %868 = vmatprep.mubr.f32.mxu0 %v797
    %869 = vmatmul.mubr.f32.gmra.mrb[0].mxu0 %v788
    %v870 = vpop.f32.mrb[0].mxu0
    %v871 = vadd.f32 %v793, %v870
    %v872 = vpop.f32.mrb[0].mxu0
    %873 = vdwg.mxu0
    %vm874 = vcmp.ge.f32.partialorder %v866, 0.0
    %vm875 = vcmp.ge.f32.partialorder %v871, 0.0
    %v876 = vmul.f32 %v866, 0.01
    %v877 = vmul.f32 %v871, 0.01
    %v878 = vsel %vm874, %v866, %v876
    %v879 = vsel %vm875, %v871, %v877
    %v882 = vrot.slane %v878, 1
    %v883 = vrot.slane %v879, 1
    %v884 = vsel %vm451, %v882, %v883
    %885 = vrot.lane.b32.xlu0 %v884, 32
    %v886 = vpop.permute.xlu0 %885
    %v888 = vrot.slane %v878, 2
    %v889 = vrot.slane %v879, 2
    %v890 = vsel %vm461, %v888, %v889
    %891 = vrot.lane.b32.xlu0 %v890, 64
    %v892 = vpop.permute.xlu0 %891
    %v894 = vsel %vm485, %v878, %v886
    %v895 = vsel %vm488, %v894, %v892
    %v897 = vlaneseq
    %v898 = vshrl.u32 %v897, 7
    %v899 = vsub.s32 0, %v898
    %v900 = vrot.slane %v750, %v899
    %v903 = vsel %vm491, %v895, 0
    %905 = vmatprep.subr.mxu0 0.0
    %906 = vmatpush1.msra.mxu0 %v737
    %907 = vmatprep.subr.mxu0 0.0
    %908 = vmatpush1.msra.mxu0 %v738
    %909 = vmatprep.subr.mxu0 0.0
    %910 = vmatpush1.msra.mxu0 %v739
    %911 = vmatprep.subr.mxu0 0.0
    %912 = vmatpush1.msra.mxu0 %v740
    %913 = vmatprep.subr.mxu0 0.0
    %914 = vmatpush1.msra.mxu0 %v741
    %915 = vmatprep.subr.mxu0 0.0
    %916 = vmatpush1.msra.mxu0 %v742
    %917 = vmatprep.subr.mxu0 0.0
    %918 = vmatpush1.msra.mxu0 %v743
    %919 = vmatprep.subr.mxu0 0.0
    %920 = vmatpush1.msra.mxu0 %v744
    %921 = vmatprep.subr.mxu0 0.0
    %922 = vmatpush1.msra.mxu0 %v745
    %923 = vmatprep.subr.mxu0 0.0
    %924 = vmatpush1.msra.mxu0 %v746
    %925 = vmatprep.subr.mxu0 0.0
    %926 = vmatpush1.msra.mxu0 %v747
    %927 = vmatprep.subr.mxu0 0.0
    %928 = vmatpush1.msra.mxu0 %v748
    %929 = vmatprep.subr.mxu0 0.0
    %930 = vmatpush1.msra.mxu0 0.0
    %931 = vmatprep.subr.mxu0 0.0
    %932 = vmatpush1.msra.mxu0 0.0
    %933 = vmatprep.subr.mxu0 0.0
    %934 = vmatpush1.msra.mxu0 0.0
    %935 = vmatprep.subr.mxu0 0.0
    %936 = vmatpush1.msra.mxu0 0.0
    %937 = vmatprep.subr.mxu0 0.0
    %938 = vmatpush1.msra.mxu0 0.0
    %939 = vmatprep.subr.mxu0 0.0
    %940 = vmatpush1.msra.mxu0 0.0
    %941 = vmatprep.subr.mxu0 0.0
    %942 = vmatpush1.msra.mxu0 0.0
    %943 = vmatprep.subr.mxu0 0.0
    %944 = vmatpush1.msra.mxu0 0.0
    %945 = vmatprep.subr.mxu0 0.0
    %946 = vmatpush1.msra.mxu0 0.0
    %947 = vmatprep.subr.mxu0 0.0
    %948 = vmatpush1.msra.mxu0 0.0
    %949 = vmatprep.subr.mxu0 0.0
    %950 = vmatpush1.msra.mxu0 0.0
    %951 = vmatprep.subr.mxu0 0.0
    %952 = vmatpush1.msra.mxu0 0.0
    %953 = vmatprep.subr.mxu0 0.0
    %954 = vmatpush1.msra.mxu0 0.0
    %955 = vmatprep.subr.mxu0 0.0
    %956 = vmatpush1.msra.mxu0 0.0
    %957 = vmatprep.subr.mxu0 0.0
    %958 = vmatpush1.msra.mxu0 0.0
    %959 = vmatprep.subr.mxu0 0.0
    %960 = vmatpush1.msra.mxu0 0.0
    %961 = vmatprep.subr.mxu0 0.0
    %962 = vmatpush1.msra.mxu0 0.0
    %963 = vmatprep.subr.mxu0 0.0
    %964 = vmatpush1.msra.mxu0 0.0
    %965 = vmatprep.subr.mxu0 0.0
    %966 = vmatpush1.msra.mxu0 0.0
    %967 = vmatprep.subr.mxu0 0.0
    %968 = vmatpush1.msra.mxu0 0.0
    %969 = vmatprep.mubr.f32.mxu0 0.0
    %970 = vmatmul.mubr.f32.gmra.mrb[0].mxu0 %v903
    %v971 = vpop.f32.mrb[0].mxu0
    %v972 = vadd.f32 %v900, %v971
    %v973 = vpop.f32.mrb[0].mxu0
    %974 = vdwg.mxu0
    %v975 = vtanh.pop %v972
    %v977 = vrot.slane %v975, 5
    %978 = vrot.lane.b32.xlu0 %v977, 16
    %v979 = vpop.permute.xlu0 %978
    %v981 = vadd.f32 %v700, %v979
    %v982 = vadd.f32 %v701, %v979
    %983 = vrot.lane.b32.xlu0 %v977, 112
    %v984 = vpop.permute.xlu0 %983
    %v986 = vsub.f32 %v700, %v984
    %v987 = vsub.f32 %v701, %v984
    %990 = vrot.lane.b32.xlu0 %v981, 112
    %v991 = vpop.permute.xlu0 %990
    %992 = vrot.lane.b32.xlu0 %v982, 112
    %v993 = vpop.permute.xlu0 %992
    %998 = vrot.lane.b32.xlu0 %v986, 16
    %v999 = vpop.permute.xlu0 %998
    %1000 = vrot.lane.b32.xlu0 %v987, 16
    %v1001 = vpop.permute.xlu0 %1000
    %v1004 = vsel %vm239, %v991, %v999
    %v1005 = vsel %vm239, %v993, %v1001
    %v1006 = vld [vmem:[#allocation9] sm:$0xff]
    %v1007 = vld [vmem:[#allocation9 + $0x8] sm:$0x3]
    %v1010 = vrot.slane %v1004, 3
    %v1011 = vrot.slane %v1005, 3
    %v1012 = vsel %vm471, %v1010, %v1011
    %vm1014 = vcmask 64512
    %v1016 = vsel %vm1014, %v1006, 0
    %v1019 = vsel %vm1014, %v1007, 0
    %1021 = vmatprep.subr.mxu0 0.0
    %1022 = vmatpush1.msra.mxu0 %v1012
    %1023 = vmatprep.subr.mxu0 0.0
    %1024 = vmatpush1.msra.mxu0 0.0
    %1025 = vmatprep.subr.mxu0 0.0
    %1026 = vmatpush1.msra.mxu0 0.0
    %1027 = vmatprep.subr.mxu0 0.0
    %1028 = vmatpush1.msra.mxu0 0.0
    %1029 = vmatprep.subr.mxu0 0.0
    %1030 = vmatpush1.msra.mxu0 0.0
    %1031 = vmatprep.subr.mxu0 0.0
    %1032 = vmatpush1.msra.mxu0 0.0
    %1033 = vmatprep.subr.mxu0 0.0
    %1034 = vmatpush1.msra.mxu0 0.0
    %1035 = vmatprep.subr.mxu0 0.0
    %1036 = vmatpush1.msra.mxu0 0.0
    %1037 = vmatprep.subr.mxu0 0.0
    %1038 = vmatpush1.msra.mxu0 0.0
    %1039 = vmatprep.subr.mxu0 0.0
    %1040 = vmatpush1.msra.mxu0 0.0
    %1041 = vmatprep.subr.mxu0 0.0
    %1042 = vmatpush1.msra.mxu0 0.0
    %1043 = vmatprep.subr.mxu0 0.0
    %1044 = vmatpush1.msra.mxu0 0.0
    %1045 = vmatprep.subr.mxu0 0.0
    %1046 = vmatpush1.msra.mxu0 0.0
    %1047 = vmatprep.subr.mxu0 0.0
    %1048 = vmatpush1.msra.mxu0 0.0
    %1049 = vmatprep.subr.mxu0 0.0
    %1050 = vmatpush1.msra.mxu0 0.0
    %1051 = vmatprep.subr.mxu0 0.0
    %1052 = vmatpush1.msra.mxu0 0.0
    %1053 = vmatprep.subr.mxu0 0.0
    %1054 = vmatpush1.msra.mxu0 0.0
    %1055 = vmatprep.subr.mxu0 0.0
    %1056 = vmatpush1.msra.mxu0 0.0
    %1057 = vmatprep.subr.mxu0 0.0
    %1058 = vmatpush1.msra.mxu0 0.0
    %1059 = vmatprep.subr.mxu0 0.0
    %1060 = vmatpush1.msra.mxu0 0.0
    %1061 = vmatprep.subr.mxu0 0.0
    %1062 = vmatpush1.msra.mxu0 0.0
    %1063 = vmatprep.subr.mxu0 0.0
    %1064 = vmatpush1.msra.mxu0 0.0
    %1065 = vmatprep.subr.mxu0 0.0
    %1066 = vmatpush1.msra.mxu0 0.0
    %1067 = vmatprep.subr.mxu0 0.0
    %1068 = vmatpush1.msra.mxu0 0.0
    %1069 = vmatprep.subr.mxu0 0.0
    %1070 = vmatpush1.msra.mxu0 0.0
    %1071 = vmatprep.subr.mxu0 0.0
    %1072 = vmatpush1.msra.mxu0 0.0
    %1073 = vmatprep.subr.mxu0 0.0
    %1074 = vmatpush1.msra.mxu0 0.0
    %1075 = vmatprep.subr.mxu0 0.0
    %1076 = vmatpush1.msra.mxu0 0.0
    %1077 = vmatprep.subr.mxu0 0.0
    %1078 = vmatpush1.msra.mxu0 0.0
    %1079 = vmatprep.subr.mxu0 0.0
    %1080 = vmatpush1.msra.mxu0 0.0
    %1081 = vmatprep.subr.mxu0 0.0
    %1082 = vmatpush1.msra.mxu0 0.0
    %1083 = vmatprep.subr.mxu0 0.0
    %1084 = vmatpush1.msra.mxu0 0.0
    %1085 = vmatprep.mubr.f32.mxu0 0.0
    %1086 = vmatmul.mubr.f32.gmra.mrb[0].mxu0 %v1016
    %v1087 = vpop.f32.mrb[0].mxu0
    %v1088 = vadd.f32 0.0, %v1087
    %v1089 = vpop.f32.mrb[0].mxu0
    %1090 = vmatprep.mubr.f32.mxu0 0.0
    %1091 = vmatmul.mubr.f32.gmra.mrb[0].mxu0 %v1019
    %v1092 = vpop.f32.mrb[0].mxu0
    %v1093 = vadd.f32 0.0, %v1092
    %v1094 = vpop.f32.mrb[0].mxu0
    %1095 = vdwg.mxu0
    %s1096 = scalar_lea.vmem [#allocation9], 16
    %v1097 = vld [vmem:[%s1096] sm:$0xff]
    %v1098 = vld [vmem:[%s1096 + $0x8] sm:$0x3]
    %v1100 = vsel %vm1014, %v1097, 0
    %v1103 = vsel %vm1014, %v1098, 0
    %1105 = vmatprep.subr.mxu0 0.0
    %1106 = vmatpush1.msra.mxu0 %v1012
    %1107 = vmatprep.subr.mxu0 0.0
    %1108 = vmatpush1.msra.mxu0 0.0
    %1109 = vmatprep.subr.mxu0 0.0
    %1110 = vmatpush1.msra.mxu0 0.0
    %1111 = vmatprep.subr.mxu0 0.0
    %1112 = vmatpush1.msra.mxu0 0.0
    %1113 = vmatprep.subr.mxu0 0.0
    %1114 = vmatpush1.msra.mxu0 0.0
    %1115 = vmatprep.subr.mxu0 0.0
    %1116 = vmatpush1.msra.mxu0 0.0
    %1117 = vmatprep.subr.mxu0 0.0
    %1118 = vmatpush1.msra.mxu0 0.0
    %1119 = vmatprep.subr.mxu0 0.0
    %1120 = vmatpush1.msra.mxu0 0.0
    %1121 = vmatprep.subr.mxu0 0.0
    %1122 = vmatpush1.msra.mxu0 0.0
    %1123 = vmatprep.subr.mxu0 0.0
    %1124 = vmatpush1.msra.mxu0 0.0
    %1125 = vmatprep.subr.mxu0 0.0
    %1126 = vmatpush1.msra.mxu0 0.0
    %1127 = vmatprep.subr.mxu0 0.0
    %1128 = vmatpush1.msra.mxu0 0.0
    %1129 = vmatprep.subr.mxu0 0.0
    %1130 = vmatpush1.msra.mxu0 0.0
    %1131 = vmatprep.subr.mxu0 0.0
    %1132 = vmatpush1.msra.mxu0 0.0
    %1133 = vmatprep.subr.mxu0 0.0
    %1134 = vmatpush1.msra.mxu0 0.0
    %1135 = vmatprep.subr.mxu0 0.0
    %1136 = vmatpush1.msra.mxu0 0.0
    %1137 = vmatprep.subr.mxu0 0.0
    %1138 = vmatpush1.msra.mxu0 0.0
    %1139 = vmatprep.subr.mxu0 0.0
    %1140 = vmatpush1.msra.mxu0 0.0
    %1141 = vmatprep.subr.mxu0 0.0
    %1142 = vmatpush1.msra.mxu0 0.0
    %1143 = vmatprep.subr.mxu0 0.0
    %1144 = vmatpush1.msra.mxu0 0.0
    %1145 = vmatprep.subr.mxu0 0.0
    %1146 = vmatpush1.msra.mxu0 0.0
    %1147 = vmatprep.subr.mxu0 0.0
    %1148 = vmatpush1.msra.mxu0 0.0
    %1149 = vmatprep.subr.mxu0 0.0
    %1150 = vmatpush1.msra.mxu0 0.0
    %1151 = vmatprep.subr.mxu0 0.0
    %1152 = vmatpush1.msra.mxu0 0.0
    %1153 = vmatprep.subr.mxu0 0.0
    %1154 = vmatpush1.msra.mxu0 0.0
    %1155 = vmatprep.subr.mxu0 0.0
    %1156 = vmatpush1.msra.mxu0 0.0
    %1157 = vmatprep.subr.mxu0 0.0
    %1158 = vmatpush1.msra.mxu0 0.0
    %1159 = vmatprep.subr.mxu0 0.0
    %1160 = vmatpush1.msra.mxu0 0.0
    %1161 = vmatprep.subr.mxu0 0.0
    %1162 = vmatpush1.msra.mxu0 0.0
    %1163 = vmatprep.subr.mxu0 0.0
    %1164 = vmatpush1.msra.mxu0 0.0
    %1165 = vmatprep.subr.mxu0 0.0
    %1166 = vmatpush1.msra.mxu0 0.0
    %1167 = vmatprep.subr.mxu0 0.0
    %1168 = vmatpush1.msra.mxu0 0.0
    %1169 = vmatprep.mubr.f32.mxu0 0.0
    %1170 = vmatmul.mubr.f32.gmra.mrb[0].mxu0 %v1100
    %v1171 = vpop.f32.mrb[0].mxu0
    %v1172 = vadd.f32 0.0, %v1171
    %v1173 = vpop.f32.mrb[0].mxu0
    %1174 = vmatprep.mubr.f32.mxu0 0.0
    %1175 = vmatmul.mubr.f32.gmra.mrb[0].mxu0 %v1103
    %v1176 = vpop.f32.mrb[0].mxu0
    %v1177 = vadd.f32 0.0, %v1176
    %v1178 = vpop.f32.mrb[0].mxu0
    %1179 = vdwg.mxu0
    %1182 = vrot.lane.b32.xlu0 %v1172, 32
    %v1183 = vpop.permute.xlu0 %1182
    %1184 = vrot.lane.b32.xlu0 %v1177, 32
    %v1185 = vpop.permute.xlu0 %1184
    %v1188 = vsel %vm485, %v1088, %v1183
    %v1189 = vsel %vm485, %v1093, %v1185
    %v1190 = vld [vmem:[#allocation10] sm:$0xff]
    %v1191 = vld [vmem:[#allocation10 + $0x8] sm:$0xff]
    %v1192 = vld [vmem:[#allocation10 + $0x10] sm:$0xff]
    %v1193 = vld [vmem:[#allocation10 + $0x18] sm:$0xff]
    %v1194 = vld [vmem:[#allocation10 + $0x20] sm:$0xff]
    %v1195 = vld [vmem:[#allocation10 + $0x28] sm:$0xff]
    %v1196 = vld [vmem:[#allocation10 + $0x30] sm:$0xff]
    %v1197 = vld [vmem:[#allocation10 + $0x38] sm:$0xff]
    %v1198 = vld [vmem:[#allocation10 + $0x40] sm:$0xff]
    %v1199 = vld [vmem:[#allocation10 + $0x48] sm:$0xff]
    %v1200 = vld [vmem:[#allocation10 + $0x50] sm:$0xff]
    %v1201 = vld [vmem:[#allocation10 + $0x58] sm:$0xff]
    %v1202 = vld [vmem:[#allocation10 + $0x60] sm:$0xff]
    %v1203 = vld [vmem:[#allocation10 + $0x68] sm:$0xff]
    %v1204 = vld [vmem:[#allocation10 + $0x70] sm:$0xff]
    %v1205 = vld [vmem:[#allocation10 + $0x78] sm:$0xff]
    %v1206 = vld [vmem:[#allocation10 + $0x80] sm:$0xff]
    %v1207 = vld [vmem:[#allocation10 + $0x88] sm:$0xff]
    %v1208 = vld [vmem:[#allocation10 + $0x90] sm:$0xff]
    %v1209 = vld [vmem:[#allocation10 + $0x98] sm:$0xff]
    %v1210 = vld [vmem:[#allocation10 + $0xa0] sm:$0xff]
    %v1211 = vld [vmem:[#allocation10 + $0xa8] sm:$0xff]
    %v1212 = vld [vmem:[#allocation10 + $0xb0] sm:$0xff]
    %v1213 = vld [vmem:[#allocation10 + $0xb8] sm:$0xff]
    %v1214 = vld [vmem:[#allocation10 + $0xc0] sm:$0xff]
    %v1215 = vld [vmem:[#allocation10 + $0xc8] sm:$0xff]
    %v1216 = vld [vmem:[#allocation10 + $0xd0] sm:$0xff]
    %v1217 = vld [vmem:[#allocation10 + $0xd8] sm:$0xff]
    %v1218 = vld [vmem:[#allocation10 + $0xe0] sm:$0xff]
    %v1219 = vld [vmem:[#allocation10 + $0xe8] sm:$0xff]
    %v1220 = vld [vmem:[#allocation10 + $0xf0] sm:$0xff]
    %v1221 = vld [vmem:[#allocation10 + $0xf8] sm:$0xff]
    %v1222 = vld [vmem:[#allocation10 + $0x100] sm:$0xff]
    %v1223 = vld [vmem:[#allocation10 + $0x108] sm:$0xff]
    %v1224 = vld [vmem:[#allocation10 + $0x110] sm:$0xff]
    %v1225 = vld [vmem:[#allocation10 + $0x118] sm:$0xff]
    %v1226 = vld [vmem:[#allocation10 + $0x120] sm:$0xff]
    %v1227 = vld [vmem:[#allocation10 + $0x128] sm:$0xff]
    %v1228 = vld [vmem:[#allocation10 + $0x130] sm:$0xff]
    %v1229 = vld [vmem:[#allocation10 + $0x138] sm:$0xff]
    %v1230 = vld [vmem:[#allocation12] sm:$0x1]
    %v1231 = vld [vmem:[#allocation13] sm:$0xff]
    %v1232 = vld [vmem:[#allocation13 + $0x8] sm:$0xff]
    %v1233 = vld [vmem:[#allocation13 + $0x10] sm:$0xff]
    %v1234 = vld [vmem:[#allocation13 + $0x18] sm:$0xff]
    %v1235 = vld [vmem:[#allocation13 + $0x20] sm:$0xff]
    %v1236 = vld [vmem:[#allocation13 + $0x28] sm:$0xff]
    %v1237 = vld [vmem:[#allocation13 + $0x30] sm:$0xff]
    %v1238 = vld [vmem:[#allocation13 + $0x38] sm:$0xff]
    %v1239 = vld [vmem:[#allocation13 + $0x40] sm:$0xff]
    %v1240 = vld [vmem:[#allocation13 + $0x48] sm:$0xff]
    %v1241 = vld [vmem:[#allocation13 + $0x50] sm:$0xff]
    %v1242 = vld [vmem:[#allocation13 + $0x58] sm:$0xff]
    %v1243 = vld [vmem:[#allocation13 + $0x60] sm:$0xff]
    %v1244 = vld [vmem:[#allocation13 + $0x68] sm:$0xff]
    %v1245 = vld [vmem:[#allocation13 + $0x70] sm:$0xff]
    %v1246 = vld [vmem:[#allocation13 + $0x78] sm:$0xff]
    %v1247 = vld [vmem:[#allocation13 + $0x80] sm:$0xff]
    %v1248 = vld [vmem:[#allocation13 + $0x88] sm:$0xff]
    %v1249 = vld [vmem:[#allocation13 + $0x90] sm:$0xff]
    %v1250 = vld [vmem:[#allocation13 + $0x98] sm:$0xff]
    %v1251 = vld [vmem:[#allocation13 + $0xa0] sm:$0xff]
    %v1252 = vld [vmem:[#allocation13 + $0xa8] sm:$0xff]
    %v1253 = vld [vmem:[#allocation13 + $0xb0] sm:$0xff]
    %v1254 = vld [vmem:[#allocation13 + $0xb8] sm:$0xff]
    %v1255 = vld [vmem:[#allocation15] sm:$0x1]
    %v1257 = vrot.slane %v1188, 1
    %1258 = vrot.lane.b32.xlu0 %v1257, 64
    %v1259 = vpop.permute.xlu0 %1258
    %v1261 = vrot.slane %v1188, 2
    %v1264 = vrot.slane %v1188, 3
    %v1265 = vrot.slane %v1189, 3
    %v1266 = vsel %vm471, %v1264, %v1265
    %1267 = vrot.lane.b32.xlu0 %v1266, 64
    %v1268 = vpop.permute.xlu0 %1267
    %v1270 = vrot.slane %v1188, 4
    %v1271 = vrot.slane %v1189, 4
    %v1272 = vsel %vm481, %v1270, %v1271
    %v1273 = vsel %vm488, %v1188, %v1259
    %v1274 = vsel %vm488, %v1261, %v1268
    %v1276 = vlaneseq
    %v1277 = vshrl.u32 %v1276, 7
    %v1278 = vsub.s32 0, %v1277
    %v1279 = vrot.slane %v1230, %v1278
    %v1281 = vsel %vm488, %v1272, 0
    %1283 = vmatprep.subr.mxu0 0.0
    %1284 = vmatpush1.msra.mxu0 %v1190
    %1285 = vmatprep.subr.mxu0 0.0
    %1286 = vmatpush1.msra.mxu0 %v1191
    %1287 = vmatprep.subr.mxu0 0.0
    %1288 = vmatpush1.msra.mxu0 %v1192
    %1289 = vmatprep.subr.mxu0 0.0
    %1290 = vmatpush1.msra.mxu0 %v1193
    %1291 = vmatprep.subr.mxu0 0.0
    %1292 = vmatpush1.msra.mxu0 %v1194
    %1293 = vmatprep.subr.mxu0 0.0
    %1294 = vmatpush1.msra.mxu0 %v1195
    %1295 = vmatprep.subr.mxu0 0.0
    %1296 = vmatpush1.msra.mxu0 %v1196
    %1297 = vmatprep.subr.mxu0 0.0
    %1298 = vmatpush1.msra.mxu0 %v1197
    %1299 = vmatprep.subr.mxu0 0.0
    %1300 = vmatpush1.msra.mxu0 %v1198
    %1301 = vmatprep.subr.mxu0 0.0
    %1302 = vmatpush1.msra.mxu0 %v1199
    %1303 = vmatprep.subr.mxu0 0.0
    %1304 = vmatpush1.msra.mxu0 %v1200
    %1305 = vmatprep.subr.mxu0 0.0
    %1306 = vmatpush1.msra.mxu0 %v1201
    %1307 = vmatprep.subr.mxu0 0.0
    %1308 = vmatpush1.msra.mxu0 %v1202
    %1309 = vmatprep.subr.mxu0 0.0
    %1310 = vmatpush1.msra.mxu0 %v1203
    %1311 = vmatprep.subr.mxu0 0.0
    %1312 = vmatpush1.msra.mxu0 %v1204
    %1313 = vmatprep.subr.mxu0 0.0
    %1314 = vmatpush1.msra.mxu0 %v1205
    %1315 = vmatprep.subr.mxu0 0.0
    %1316 = vmatpush1.msra.mxu0 %v1206
    %1317 = vmatprep.subr.mxu0 0.0
    %1318 = vmatpush1.msra.mxu0 %v1207
    %1319 = vmatprep.subr.mxu0 0.0
    %1320 = vmatpush1.msra.mxu0 %v1208
    %1321 = vmatprep.subr.mxu0 0.0
    %1322 = vmatpush1.msra.mxu0 %v1209
    %1323 = vmatprep.subr.mxu0 0.0
    %1324 = vmatpush1.msra.mxu0 %v1210
    %1325 = vmatprep.subr.mxu0 0.0
    %1326 = vmatpush1.msra.mxu0 %v1211
    %1327 = vmatprep.subr.mxu0 0.0
    %1328 = vmatpush1.msra.mxu0 %v1212
    %1329 = vmatprep.subr.mxu0 0.0
    %1330 = vmatpush1.msra.mxu0 %v1213
    %1331 = vmatprep.subr.mxu0 0.0
    %1332 = vmatpush1.msra.mxu0 %v1214
    %1333 = vmatprep.subr.mxu0 0.0
    %1334 = vmatpush1.msra.mxu0 %v1215
    %1335 = vmatprep.subr.mxu0 0.0
    %1336 = vmatpush1.msra.mxu0 %v1216
    %1337 = vmatprep.subr.mxu0 0.0
    %1338 = vmatpush1.msra.mxu0 %v1217
    %1339 = vmatprep.subr.mxu0 0.0
    %1340 = vmatpush1.msra.mxu0 %v1218
    %1341 = vmatprep.subr.mxu0 0.0
    %1342 = vmatpush1.msra.mxu0 %v1219
    %1343 = vmatprep.subr.mxu0 0.0
    %1344 = vmatpush1.msra.mxu0 %v1220
    %1345 = vmatprep.subr.mxu0 0.0
    %1346 = vmatpush1.msra.mxu0 %v1221
    %1347 = vmatprep.mubr.f32.mxu0 %v1274
    %1348 = vmatmul.mubr.f32.gmra.mrb[0].mxu0 %v1273
    %v1349 = vpop.f32.mrb[0].mxu0
    %v1350 = vadd.f32 %v1279, %v1349
    %v1351 = vpop.f32.mrb[0].mxu0
    %1352 = vdwg.mxu0
    %1353 = vmatprep.subr.mxu0 0.0
    %1354 = vmatpush1.msra.mxu0 %v1222
    %1355 = vmatprep.subr.mxu0 0.0
    %1356 = vmatpush1.msra.mxu0 %v1223
    %1357 = vmatprep.subr.mxu0 0.0
    %1358 = vmatpush1.msra.mxu0 %v1224
    %1359 = vmatprep.subr.mxu0 0.0
    %1360 = vmatpush1.msra.mxu0 %v1225
    %1361 = vmatprep.subr.mxu0 0.0
    %1362 = vmatpush1.msra.mxu0 %v1226
    %1363 = vmatprep.subr.mxu0 0.0
    %1364 = vmatpush1.msra.mxu0 %v1227
    %1365 = vmatprep.subr.mxu0 0.0
    %1366 = vmatpush1.msra.mxu0 %v1228
    %1367 = vmatprep.subr.mxu0 0.0
    %1368 = vmatpush1.msra.mxu0 %v1229
    %1369 = vmatprep.subr.mxu0 0.0
    %1370 = vmatpush1.msra.mxu0 0.0
    %1371 = vmatprep.subr.mxu0 0.0
    %1372 = vmatpush1.msra.mxu0 0.0
    %1373 = vmatprep.subr.mxu0 0.0
    %1374 = vmatpush1.msra.mxu0 0.0
    %1375 = vmatprep.subr.mxu0 0.0
    %1376 = vmatpush1.msra.mxu0 0.0
    %1377 = vmatprep.subr.mxu0 0.0
    %1378 = vmatpush1.msra.mxu0 0.0
    %1379 = vmatprep.subr.mxu0 0.0
    %1380 = vmatpush1.msra.mxu0 0.0
    %1381 = vmatprep.subr.mxu0 0.0
    %1382 = vmatpush1.msra.mxu0 0.0
    %1383 = vmatprep.subr.mxu0 0.0
    %1384 = vmatpush1.msra.mxu0 0.0
    %1385 = vmatprep.subr.mxu0 0.0
    %1386 = vmatpush1.msra.mxu0 0.0
    %1387 = vmatprep.subr.mxu0 0.0
    %1388 = vmatpush1.msra.mxu0 0.0
    %1389 = vmatprep.subr.mxu0 0.0
    %1390 = vmatpush1.msra.mxu0 0.0
    %1391 = vmatprep.subr.mxu0 0.0
    %1392 = vmatpush1.msra.mxu0 0.0
    %1393 = vmatprep.subr.mxu0 0.0
    %1394 = vmatpush1.msra.mxu0 0.0
    %1395 = vmatprep.subr.mxu0 0.0
    %1396 = vmatpush1.msra.mxu0 0.0
    %1397 = vmatprep.subr.mxu0 0.0
    %1398 = vmatpush1.msra.mxu0 0.0
    %1399 = vmatprep.subr.mxu0 0.0
    %1400 = vmatpush1.msra.mxu0 0.0
    %1401 = vmatprep.subr.mxu0 0.0
    %1402 = vmatpush1.msra.mxu0 0.0
    %1403 = vmatprep.subr.mxu0 0.0
    %1404 = vmatpush1.msra.mxu0 0.0
    %1405 = vmatprep.subr.mxu0 0.0
    %1406 = vmatpush1.msra.mxu0 0.0
    %1407 = vmatprep.subr.mxu0 0.0
    %1408 = vmatpush1.msra.mxu0 0.0
    %1409 = vmatprep.subr.mxu0 0.0
    %1410 = vmatpush1.msra.mxu0 0.0
    %1411 = vmatprep.subr.mxu0 0.0
    %1412 = vmatpush1.msra.mxu0 0.0
    %1413 = vmatprep.subr.mxu0 0.0
    %1414 = vmatpush1.msra.mxu0 0.0
    %1415 = vmatprep.subr.mxu0 0.0
    %1416 = vmatpush1.msra.mxu0 0.0
    %1417 = vmatprep.mubr.f32.mxu0 0.0
    %1418 = vmatmul.mubr.f32.gmra.mrb[0].mxu0 %v1281
    %v1419 = vpop.f32.mrb[0].mxu0
    %v1420 = vadd.f32 %v1350, %v1419
    %v1421 = vpop.f32.mrb[0].mxu0
    %1422 = vdwg.mxu0
    %vm1423 = vcmp.ge.f32.partialorder %v1420, 0.0
    %v1424 = vmul.f32 %v1420, 0.01
    %v1425 = vsel %vm1423, %v1420, %v1424
    %v1427 = vrot.slane %v1425, 1
    %1428 = vrot.lane.b32.xlu0 %v1427, 64
    %v1429 = vpop.permute.xlu0 %1428
    %v1431 = vrot.slane %v1425, 2
    %v1432 = vsel %vm488, %v1425, %v1429
    %v1434 = vlaneseq
    %v1435 = vshrl.u32 %v1434, 7
    %v1436 = vsub.s32 0, %v1435
    %v1437 = vrot.slane %v1255, %v1436
    %v1439 = vsel %vm488, %v1431, 0
    %1441 = vmatprep.subr.mxu0 0.0
    %1442 = vmatpush1.msra.mxu0 %v1231
    %1443 = vmatprep.subr.mxu0 0.0
    %1444 = vmatpush1.msra.mxu0 %v1232
    %1445 = vmatprep.subr.mxu0 0.0
    %1446 = vmatpush1.msra.mxu0 %v1233
    %1447 = vmatprep.subr.mxu0 0.0
    %1448 = vmatpush1.msra.mxu0 %v1234
    %1449 = vmatprep.subr.mxu0 0.0
    %1450 = vmatpush1.msra.mxu0 %v1235
    %1451 = vmatprep.subr.mxu0 0.0
    %1452 = vmatpush1.msra.mxu0 %v1236
    %1453 = vmatprep.subr.mxu0 0.0
    %1454 = vmatpush1.msra.mxu0 %v1237
    %1455 = vmatprep.subr.mxu0 0.0
    %1456 = vmatpush1.msra.mxu0 %v1238
    %1457 = vmatprep.subr.mxu0 0.0
    %1458 = vmatpush1.msra.mxu0 %v1239
    %1459 = vmatprep.subr.mxu0 0.0
    %1460 = vmatpush1.msra.mxu0 %v1240
    %1461 = vmatprep.subr.mxu0 0.0
    %1462 = vmatpush1.msra.mxu0 %v1241
    %1463 = vmatprep.subr.mxu0 0.0
    %1464 = vmatpush1.msra.mxu0 %v1242
    %1465 = vmatprep.subr.mxu0 0.0
    %1466 = vmatpush1.msra.mxu0 %v1243
    %1467 = vmatprep.subr.mxu0 0.0
    %1468 = vmatpush1.msra.mxu0 %v1244
    %1469 = vmatprep.subr.mxu0 0.0
    %1470 = vmatpush1.msra.mxu0 %v1245
    %1471 = vmatprep.subr.mxu0 0.0
    %1472 = vmatpush1.msra.mxu0 %v1246
    %1473 = vmatprep.subr.mxu0 0.0
    %1474 = vmatpush1.msra.mxu0 %v1247
    %1475 = vmatprep.subr.mxu0 0.0
    %1476 = vmatpush1.msra.mxu0 %v1248
    %1477 = vmatprep.subr.mxu0 0.0
    %1478 = vmatpush1.msra.mxu0 %v1249
    %1479 = vmatprep.subr.mxu0 0.0
    %1480 = vmatpush1.msra.mxu0 %v1250
    %1481 = vmatprep.subr.mxu0 0.0
    %1482 = vmatpush1.msra.mxu0 %v1251
    %1483 = vmatprep.subr.mxu0 0.0
    %1484 = vmatpush1.msra.mxu0 %v1252
    %1485 = vmatprep.subr.mxu0 0.0
    %1486 = vmatpush1.msra.mxu0 %v1253
    %1487 = vmatprep.subr.mxu0 0.0
    %1488 = vmatpush1.msra.mxu0 %v1254
    %1489 = vmatprep.subr.mxu0 0.0
    %1490 = vmatpush1.msra.mxu0 0.0
    %1491 = vmatprep.subr.mxu0 0.0
    %1492 = vmatpush1.msra.mxu0 0.0
    %1493 = vmatprep.subr.mxu0 0.0
    %1494 = vmatpush1.msra.mxu0 0.0
    %1495 = vmatprep.subr.mxu0 0.0
    %1496 = vmatpush1.msra.mxu0 0.0
    %1497 = vmatprep.subr.mxu0 0.0
    %1498 = vmatpush1.msra.mxu0 0.0
    %1499 = vmatprep.subr.mxu0 0.0
    %1500 = vmatpush1.msra.mxu0 0.0
    %1501 = vmatprep.subr.mxu0 0.0
    %1502 = vmatpush1.msra.mxu0 0.0
    %1503 = vmatprep.subr.mxu0 0.0
    %1504 = vmatpush1.msra.mxu0 0.0
    %1505 = vmatprep.mubr.f32.mxu0 %v1439
    %1506 = vmatmul.mubr.f32.gmra.mrb[0].mxu0 %v1432
    %v1507 = vpop.f32.mrb[0].mxu0
    %v1508 = vadd.f32 %v1437, %v1507
    %v1509 = vpop.f32.mrb[0].mxu0
    %1510 = vdwg.mxu0
    %v1511 = vtanh.pop %v1508
    %1512 = vrot.lane.b32.xlu0 %v1188, 96
    %v1513 = vpop.permute.xlu0 %1512
    %1515 = vrot.lane.b32.xlu0 %v1188, 32
    %v1516 = vpop.permute.xlu0 %1515
    %v1518 = vsel %vm485, %v1513, %v1516
    %v1519 = vmul.f32 %v1511, 1.442695
    %v1520 = vpow.pop %v1519
    %v1522 = vrot.slane %v1520, 5
    %v1524 = vmul.f32 %v1518, %v1522
    %v1525 = vlaneseq
    %v1526 = vshrl.u32 %v1525, 7
    %v1527 = vsub.s32 3, %v1526
    %v1528 = vrot.slane %v1524, %v1527
    %v1529 = vlaneseq
    %v1530 = vshrl.u32 %v1529, 7
    %v1531 = vsub.s32 6, %v1530
    %v1532 = vrot.slane %v1524, %v1531
    %v1534 = vsel %vm710, %v1528, %v1524
    %v1535 = vsel %vm451, %v1534, %v1532
    %s1536 = scalar_lea.vmem [#allocation10], 320
    %v1537 = vld [vmem:[%s1536] sm:$0xff]
    %v1538 = vld [vmem:[%s1536 + $0x8] sm:$0xff]
    %v1539 = vld [vmem:[%s1536 + $0x10] sm:$0xff]
    %v1540 = vld [vmem:[%s1536 + $0x18] sm:$0xff]
    %v1541 = vld [vmem:[%s1536 + $0x20] sm:$0xff]
    %v1542 = vld [vmem:[%s1536 + $0x28] sm:$0xff]
    %v1543 = vld [vmem:[%s1536 + $0x30] sm:$0xff]
    %v1544 = vld [vmem:[%s1536 + $0x38] sm:$0xff]
    %v1545 = vld [vmem:[%s1536 + $0x40] sm:$0xff]
    %v1546 = vld [vmem:[%s1536 + $0x48] sm:$0xff]
    %v1547 = vld [vmem:[%s1536 + $0x50] sm:$0xff]
    %v1548 = vld [vmem:[%s1536 + $0x58] sm:$0xff]
    %v1549 = vld [vmem:[%s1536 + $0x60] sm:$0xff]
    %v1550 = vld [vmem:[%s1536 + $0x68] sm:$0xff]
    %v1551 = vld [vmem:[%s1536 + $0x70] sm:$0xff]
    %v1552 = vld [vmem:[%s1536 + $0x78] sm:$0xff]
    %v1553 = vld [vmem:[%s1536 + $0x80] sm:$0xff]
    %v1554 = vld [vmem:[%s1536 + $0x88] sm:$0xff]
    %v1555 = vld [vmem:[%s1536 + $0x90] sm:$0xff]
    %v1556 = vld [vmem:[%s1536 + $0x98] sm:$0xff]
    %v1557 = vld [vmem:[%s1536 + $0xa0] sm:$0xff]
    %v1558 = vld [vmem:[%s1536 + $0xa8] sm:$0xff]
    %v1559 = vld [vmem:[%s1536 + $0xb0] sm:$0xff]
    %v1560 = vld [vmem:[%s1536 + $0xb8] sm:$0xff]
    %v1561 = vld [vmem:[%s1536 + $0xc0] sm:$0xff]
    %v1562 = vld [vmem:[%s1536 + $0xc8] sm:$0xff]
    %v1563 = vld [vmem:[%s1536 + $0xd0] sm:$0xff]
    %v1564 = vld [vmem:[%s1536 + $0xd8] sm:$0xff]
    %v1565 = vld [vmem:[%s1536 + $0xe0] sm:$0xff]
    %v1566 = vld [vmem:[%s1536 + $0xe8] sm:$0xff]
    %v1567 = vld [vmem:[%s1536 + $0xf0] sm:$0xff]
    %v1568 = vld [vmem:[%s1536 + $0xf8] sm:$0xff]
    %v1569 = vld [vmem:[%s1536 + $0x100] sm:$0xff]
    %v1570 = vld [vmem:[%s1536 + $0x108] sm:$0xff]
    %v1571 = vld [vmem:[%s1536 + $0x110] sm:$0xff]
    %v1572 = vld [vmem:[%s1536 + $0x118] sm:$0xff]
    %v1573 = vld [vmem:[%s1536 + $0x120] sm:$0xff]
    %v1574 = vld [vmem:[%s1536 + $0x128] sm:$0xff]
    %v1575 = vld [vmem:[%s1536 + $0x130] sm:$0xff]
    %v1576 = vld [vmem:[%s1536 + $0x138] sm:$0xff]
    %s1577 = scalar_lea.vmem [#allocation12], 1
    %v1578 = vld [vmem:[%s1577] sm:$0x1]
    %s1579 = scalar_lea.vmem [#allocation13], 192
    %v1580 = vld [vmem:[%s1579] sm:$0xff]
    %v1581 = vld [vmem:[%s1579 + $0x8] sm:$0xff]
    %v1582 = vld [vmem:[%s1579 + $0x10] sm:$0xff]
    %v1583 = vld [vmem:[%s1579 + $0x18] sm:$0xff]
    %v1584 = vld [vmem:[%s1579 + $0x20] sm:$0xff]
    %v1585 = vld [vmem:[%s1579 + $0x28] sm:$0xff]
    %v1586 = vld [vmem:[%s1579 + $0x30] sm:$0xff]
    %v1587 = vld [vmem:[%s1579 + $0x38] sm:$0xff]
    %v1588 = vld [vmem:[%s1579 + $0x40] sm:$0xff]
    %v1589 = vld [vmem:[%s1579 + $0x48] sm:$0xff]
    %v1590 = vld [vmem:[%s1579 + $0x50] sm:$0xff]
    %v1591 = vld [vmem:[%s1579 + $0x58] sm:$0xff]
    %v1592 = vld [vmem:[%s1579 + $0x60] sm:$0xff]
    %v1593 = vld [vmem:[%s1579 + $0x68] sm:$0xff]
    %v1594 = vld [vmem:[%s1579 + $0x70] sm:$0xff]
    %v1595 = vld [vmem:[%s1579 + $0x78] sm:$0xff]
    %v1596 = vld [vmem:[%s1579 + $0x80] sm:$0xff]
    %v1597 = vld [vmem:[%s1579 + $0x88] sm:$0xff]
    %v1598 = vld [vmem:[%s1579 + $0x90] sm:$0xff]
    %v1599 = vld [vmem:[%s1579 + $0x98] sm:$0xff]
    %v1600 = vld [vmem:[%s1579 + $0xa0] sm:$0xff]
    %v1601 = vld [vmem:[%s1579 + $0xa8] sm:$0xff]
    %v1602 = vld [vmem:[%s1579 + $0xb0] sm:$0xff]
    %v1603 = vld [vmem:[%s1579 + $0xb8] sm:$0xff]
    %s1604 = scalar_lea.vmem [#allocation15], 1
    %v1605 = vld [vmem:[%s1604] sm:$0x1]
    %v1607 = vrot.slane %v1535, 1
    %1608 = vrot.lane.b32.xlu0 %v1607, 64
    %v1609 = vpop.permute.xlu0 %1608
    %v1611 = vrot.slane %v1535, 2
    %v1613 = vrot.slane %v1535, 3
    %v1614 = vrot.slane %v1532, 3
    %v1615 = vsel %vm471, %v1613, %v1614
    %1616 = vrot.lane.b32.xlu0 %v1615, 64
    %v1617 = vpop.permute.xlu0 %1616
    %v1619 = vrot.slane %v1535, 4
    %v1620 = vrot.slane %v1532, 4
    %v1621 = vsel %vm481, %v1619, %v1620
    %v1622 = vsel %vm488, %v1535, %v1609
    %v1623 = vsel %vm488, %v1611, %v1617
    %v1625 = vlaneseq
    %v1626 = vshrl.u32 %v1625, 7
    %v1627 = vsub.s32 0, %v1626
    %v1628 = vrot.slane %v1578, %v1627
    %v1630 = vsel %vm488, %v1621, 0
    %1632 = vmatprep.subr.mxu0 0.0
    %1633 = vmatpush1.msra.mxu0 %v1537
    %1634 = vmatprep.subr.mxu0 0.0
    %1635 = vmatpush1.msra.mxu0 %v1538
    %1636 = vmatprep.subr.mxu0 0.0
    %1637 = vmatpush1.msra.mxu0 %v1539
    %1638 = vmatprep.subr.mxu0 0.0
    %1639 = vmatpush1.msra.mxu0 %v1540
    %1640 = vmatprep.subr.mxu0 0.0
    %1641 = vmatpush1.msra.mxu0 %v1541
    %1642 = vmatprep.subr.mxu0 0.0
    %1643 = vmatpush1.msra.mxu0 %v1542
    %1644 = vmatprep.subr.mxu0 0.0
    %1645 = vmatpush1.msra.mxu0 %v1543
    %1646 = vmatprep.subr.mxu0 0.0
    %1647 = vmatpush1.msra.mxu0 %v1544
    %1648 = vmatprep.subr.mxu0 0.0
    %1649 = vmatpush1.msra.mxu0 %v1545
    %1650 = vmatprep.subr.mxu0 0.0
    %1651 = vmatpush1.msra.mxu0 %v1546
    %1652 = vmatprep.subr.mxu0 0.0
    %1653 = vmatpush1.msra.mxu0 %v1547
    %1654 = vmatprep.subr.mxu0 0.0
    %1655 = vmatpush1.msra.mxu0 %v1548
    %1656 = vmatprep.subr.mxu0 0.0
    %1657 = vmatpush1.msra.mxu0 %v1549
    %1658 = vmatprep.subr.mxu0 0.0
    %1659 = vmatpush1.msra.mxu0 %v1550
    %1660 = vmatprep.subr.mxu0 0.0
    %1661 = vmatpush1.msra.mxu0 %v1551
    %1662 = vmatprep.subr.mxu0 0.0
    %1663 = vmatpush1.msra.mxu0 %v1552
    %1664 = vmatprep.subr.mxu0 0.0
    %1665 = vmatpush1.msra.mxu0 %v1553
    %1666 = vmatprep.subr.mxu0 0.0
    %1667 = vmatpush1.msra.mxu0 %v1554
    %1668 = vmatprep.subr.mxu0 0.0
    %1669 = vmatpush1.msra.mxu0 %v1555
    %1670 = vmatprep.subr.mxu0 0.0
    %1671 = vmatpush1.msra.mxu0 %v1556
    %1672 = vmatprep.subr.mxu0 0.0
    %1673 = vmatpush1.msra.mxu0 %v1557
    %1674 = vmatprep.subr.mxu0 0.0
    %1675 = vmatpush1.msra.mxu0 %v1558
    %1676 = vmatprep.subr.mxu0 0.0
    %1677 = vmatpush1.msra.mxu0 %v1559
    %1678 = vmatprep.subr.mxu0 0.0
    %1679 = vmatpush1.msra.mxu0 %v1560
    %1680 = vmatprep.subr.mxu0 0.0
    %1681 = vmatpush1.msra.mxu0 %v1561
    %1682 = vmatprep.subr.mxu0 0.0
    %1683 = vmatpush1.msra.mxu0 %v1562
    %1684 = vmatprep.subr.mxu0 0.0
    %1685 = vmatpush1.msra.mxu0 %v1563
    %1686 = vmatprep.subr.mxu0 0.0
    %1687 = vmatpush1.msra.mxu0 %v1564
    %1688 = vmatprep.subr.mxu0 0.0
    %1689 = vmatpush1.msra.mxu0 %v1565
    %1690 = vmatprep.subr.mxu0 0.0
    %1691 = vmatpush1.msra.mxu0 %v1566
    %1692 = vmatprep.subr.mxu0 0.0
    %1693 = vmatpush1.msra.mxu0 %v1567
    %1694 = vmatprep.subr.mxu0 0.0
    %1695 = vmatpush1.msra.mxu0 %v1568
    %1696 = vmatprep.mubr.f32.mxu0 %v1623
    %1697 = vmatmul.mubr.f32.gmra.mrb[0].mxu0 %v1622
    %v1698 = vpop.f32.mrb[0].mxu0
    %v1699 = vadd.f32 %v1628, %v1698
    %v1700 = vpop.f32.mrb[0].mxu0
    %1701 = vdwg.mxu0
    %1702 = vmatprep.subr.mxu0 0.0
    %1703 = vmatpush1.msra.mxu0 %v1569
    %1704 = vmatprep.subr.mxu0 0.0
    %1705 = vmatpush1.msra.mxu0 %v1570
    %1706 = vmatprep.subr.mxu0 0.0
    %1707 = vmatpush1.msra.mxu0 %v1571
    %1708 = vmatprep.subr.mxu0 0.0
    %1709 = vmatpush1.msra.mxu0 %v1572
    %1710 = vmatprep.subr.mxu0 0.0
    %1711 = vmatpush1.msra.mxu0 %v1573
    %1712 = vmatprep.subr.mxu0 0.0
    %1713 = vmatpush1.msra.mxu0 %v1574
    %1714 = vmatprep.subr.mxu0 0.0
    %1715 = vmatpush1.msra.mxu0 %v1575
    %1716 = vmatprep.subr.mxu0 0.0
    %1717 = vmatpush1.msra.mxu0 %v1576
    %1718 = vmatprep.subr.mxu0 0.0
    %1719 = vmatpush1.msra.mxu0 0.0
    %1720 = vmatprep.subr.mxu0 0.0
    %1721 = vmatpush1.msra.mxu0 0.0
    %1722 = vmatprep.subr.mxu0 0.0
    %1723 = vmatpush1.msra.mxu0 0.0
    %1724 = vmatprep.subr.mxu0 0.0
    %1725 = vmatpush1.msra.mxu0 0.0
    %1726 = vmatprep.subr.mxu0 0.0
    %1727 = vmatpush1.msra.mxu0 0.0
    %1728 = vmatprep.subr.mxu0 0.0
    %1729 = vmatpush1.msra.mxu0 0.0
    %1730 = vmatprep.subr.mxu0 0.0
    %1731 = vmatpush1.msra.mxu0 0.0
    %1732 = vmatprep.subr.mxu0 0.0
    %1733 = vmatpush1.msra.mxu0 0.0
    %1734 = vmatprep.subr.mxu0 0.0
    %1735 = vmatpush1.msra.mxu0 0.0
    %1736 = vmatprep.subr.mxu0 0.0
    %1737 = vmatpush1.msra.mxu0 0.0
    %1738 = vmatprep.subr.mxu0 0.0
    %1739 = vmatpush1.msra.mxu0 0.0
    %1740 = vmatprep.subr.mxu0 0.0
    %1741 = vmatpush1.msra.mxu0 0.0
    %1742 = vmatprep.subr.mxu0 0.0
    %1743 = vmatpush1.msra.mxu0 0.0
    %1744 = vmatprep.subr.mxu0 0.0
    %1745 = vmatpush1.msra.mxu0 0.0
    %1746 = vmatprep.subr.mxu0 0.0
    %1747 = vmatpush1.msra.mxu0 0.0
    %1748 = vmatprep.subr.mxu0 0.0
    %1749 = vmatpush1.msra.mxu0 0.0
    %1750 = vmatprep.subr.mxu0 0.0
    %1751 = vmatpush1.msra.mxu0 0.0
    %1752 = vmatprep.subr.mxu0 0.0
    %1753 = vmatpush1.msra.mxu0 0.0
    %1754 = vmatprep.subr.mxu0 0.0
    %1755 = vmatpush1.msra.mxu0 0.0
    %1756 = vmatprep.subr.mxu0 0.0
    %1757 = vmatpush1.msra.mxu0 0.0
    %1758 = vmatprep.subr.mxu0 0.0
    %1759 = vmatpush1.msra.mxu0 0.0
    %1760 = vmatprep.subr.mxu0 0.0
    %1761 = vmatpush1.msra.mxu0 0.0
    %1762 = vmatprep.subr.mxu0 0.0
    %1763 = vmatpush1.msra.mxu0 0.0
    %1764 = vmatprep.subr.mxu0 0.0
    %1765 = vmatpush1.msra.mxu0 0.0
    %1766 = vmatprep.mubr.f32.mxu0 0.0
    %1767 = vmatmul.mubr.f32.gmra.mrb[0].mxu0 %v1630
    %v1768 = vpop.f32.mrb[0].mxu0
    %v1769 = vadd.f32 %v1699, %v1768
    %v1770 = vpop.f32.mrb[0].mxu0
    %1771 = vdwg.mxu0
    %vm1772 = vcmp.ge.f32.partialorder %v1769, 0.0
    %v1773 = vmul.f32 %v1769, 0.01
    %v1774 = vsel %vm1772, %v1769, %v1773
    %v1776 = vrot.slane %v1774, 1
    %1777 = vrot.lane.b32.xlu0 %v1776, 64
    %v1778 = vpop.permute.xlu0 %1777
    %v1780 = vrot.slane %v1774, 2
    %v1781 = vsel %vm488, %v1774, %v1778
    %v1783 = vlaneseq
    %v1784 = vshrl.u32 %v1783, 7
    %v1785 = vsub.s32 0, %v1784
    %v1786 = vrot.slane %v1605, %v1785
    %v1788 = vsel %vm488, %v1780, 0
    %1790 = vmatprep.subr.mxu0 0.0
    %1791 = vmatpush1.msra.mxu0 %v1580
    %1792 = vmatprep.subr.mxu0 0.0
    %1793 = vmatpush1.msra.mxu0 %v1581
    %1794 = vmatprep.subr.mxu0 0.0
    %1795 = vmatpush1.msra.mxu0 %v1582
    %1796 = vmatprep.subr.mxu0 0.0
    %1797 = vmatpush1.msra.mxu0 %v1583
    %1798 = vmatprep.subr.mxu0 0.0
    %1799 = vmatpush1.msra.mxu0 %v1584
    %1800 = vmatprep.subr.mxu0 0.0
    %1801 = vmatpush1.msra.mxu0 %v1585
    %1802 = vmatprep.subr.mxu0 0.0
    %1803 = vmatpush1.msra.mxu0 %v1586
    %1804 = vmatprep.subr.mxu0 0.0
    %1805 = vmatpush1.msra.mxu0 %v1587
    %1806 = vmatprep.subr.mxu0 0.0
    %1807 = vmatpush1.msra.mxu0 %v1588
    %1808 = vmatprep.subr.mxu0 0.0
    %1809 = vmatpush1.msra.mxu0 %v1589
    %1810 = vmatprep.subr.mxu0 0.0
    %1811 = vmatpush1.msra.mxu0 %v1590
    %1812 = vmatprep.subr.mxu0 0.0
    %1813 = vmatpush1.msra.mxu0 %v1591
    %1814 = vmatprep.subr.mxu0 0.0
    %1815 = vmatpush1.msra.mxu0 %v1592
    %1816 = vmatprep.subr.mxu0 0.0
    %1817 = vmatpush1.msra.mxu0 %v1593
    %1818 = vmatprep.subr.mxu0 0.0
    %1819 = vmatpush1.msra.mxu0 %v1594
    %1820 = vmatprep.subr.mxu0 0.0
    %1821 = vmatpush1.msra.mxu0 %v1595
    %1822 = vmatprep.subr.mxu0 0.0
    %1823 = vmatpush1.msra.mxu0 %v1596
    %1824 = vmatprep.subr.mxu0 0.0
    %1825 = vmatpush1.msra.mxu0 %v1597
    %1826 = vmatprep.subr.mxu0 0.0
    %1827 = vmatpush1.msra.mxu0 %v1598
    %1828 = vmatprep.subr.mxu0 0.0
    %1829 = vmatpush1.msra.mxu0 %v1599
    %1830 = vmatprep.subr.mxu0 0.0
    %1831 = vmatpush1.msra.mxu0 %v1600
    %1832 = vmatprep.subr.mxu0 0.0
    %1833 = vmatpush1.msra.mxu0 %v1601
    %1834 = vmatprep.subr.mxu0 0.0
    %1835 = vmatpush1.msra.mxu0 %v1602
    %1836 = vmatprep.subr.mxu0 0.0
    %1837 = vmatpush1.msra.mxu0 %v1603
    %1838 = vmatprep.subr.mxu0 0.0
    %1839 = vmatpush1.msra.mxu0 0.0
    %1840 = vmatprep.subr.mxu0 0.0
    %1841 = vmatpush1.msra.mxu0 0.0
    %1842 = vmatprep.subr.mxu0 0.0
    %1843 = vmatpush1.msra.mxu0 0.0
    %1844 = vmatprep.subr.mxu0 0.0
    %1845 = vmatpush1.msra.mxu0 0.0
    %1846 = vmatprep.subr.mxu0 0.0
    %1847 = vmatpush1.msra.mxu0 0.0
    %1848 = vmatprep.subr.mxu0 0.0
    %1849 = vmatpush1.msra.mxu0 0.0
    %1850 = vmatprep.subr.mxu0 0.0
    %1851 = vmatpush1.msra.mxu0 0.0
    %1852 = vmatprep.subr.mxu0 0.0
    %1853 = vmatpush1.msra.mxu0 0.0
    %1854 = vmatprep.mubr.f32.mxu0 %v1788
    %1855 = vmatmul.mubr.f32.gmra.mrb[0].mxu0 %v1781
    %v1856 = vpop.f32.mrb[0].mxu0
    %v1857 = vadd.f32 %v1786, %v1856
    %v1858 = vpop.f32.mrb[0].mxu0
    %1859 = vdwg.mxu0
    %v1860 = vtanh.pop %v1857
    %v1862 = vrot.slane %v1860, 5
    %1863 = vrot.lane.b32.xlu0 %v1862, 32
    %v1864 = vpop.permute.xlu0 %1863
    %v1866 = vadd.f32 %v1524, %v1864
    %1867 = vrot.lane.b32.xlu0 %v1862, 96
    %v1868 = vpop.permute.xlu0 %1867
    %v1870 = vsub.f32 %v1524, %v1868
    %1872 = vrot.lane.b32.xlu0 %v1866, 96
    %v1873 = vpop.permute.xlu0 %1872
    %1876 = vrot.lane.b32.xlu0 %v1870, 32
    %v1877 = vpop.permute.xlu0 %1876
    %v1879 = vsel %vm485, %v1873, %v1877
    %v1880 = vld [vmem:[%s13] sm:$0xff]
    %v1882 = vrot.slane %v1879, 3
    %vm1883 = vcmask 31744
    %v1885 = vsel %vm1883, %v1880, 0
    %v1887 = vsel %vm481, %v1882, 0
    %1889 = vmatprep.subr.mxu0 0.0
    %1890 = vmatpush1.msra.mxu0 %v1887
    %1891 = vmatprep.subr.mxu0 0.0
    %1892 = vmatpush1.msra.mxu0 0.0
    %1893 = vmatprep.subr.mxu0 0.0
    %1894 = vmatpush1.msra.mxu0 0.0
    %1895 = vmatprep.subr.mxu0 0.0
    %1896 = vmatpush1.msra.mxu0 0.0
    %1897 = vmatprep.subr.mxu0 0.0
    %1898 = vmatpush1.msra.mxu0 0.0
    %1899 = vmatprep.subr.mxu0 0.0
    %1900 = vmatpush1.msra.mxu0 0.0
    %1901 = vmatprep.subr.mxu0 0.0
    %1902 = vmatpush1.msra.mxu0 0.0
    %1903 = vmatprep.subr.mxu0 0.0
    %1904 = vmatpush1.msra.mxu0 0.0
    %1905 = vmatprep.subr.mxu0 0.0
    %1906 = vmatpush1.msra.mxu0 0.0
    %1907 = vmatprep.subr.mxu0 0.0
    %1908 = vmatpush1.msra.mxu0 0.0
    %1909 = vmatprep.subr.mxu0 0.0
    %1910 = vmatpush1.msra.mxu0 0.0
    %1911 = vmatprep.subr.mxu0 0.0
    %1912 = vmatpush1.msra.mxu0 0.0
    %1913 = vmatprep.subr.mxu0 0.0
    %1914 = vmatpush1.msra.mxu0 0.0
    %1915 = vmatprep.subr.mxu0 0.0
    %1916 = vmatpush1.msra.mxu0 0.0
    %1917 = vmatprep.subr.mxu0 0.0
    %1918 = vmatpush1.msra.mxu0 0.0
    %1919 = vmatprep.subr.mxu0 0.0
    %1920 = vmatpush1.msra.mxu0 0.0
    %1921 = vmatprep.subr.mxu0 0.0
    %1922 = vmatpush1.msra.mxu0 0.0
    %1923 = vmatprep.subr.mxu0 0.0
    %1924 = vmatpush1.msra.mxu0 0.0
    %1925 = vmatprep.subr.mxu0 0.0
    %1926 = vmatpush1.msra.mxu0 0.0
    %1927 = vmatprep.subr.mxu0 0.0
    %1928 = vmatpush1.msra.mxu0 0.0
    %1929 = vmatprep.subr.mxu0 0.0
    %1930 = vmatpush1.msra.mxu0 0.0
    %1931 = vmatprep.subr.mxu0 0.0
    %1932 = vmatpush1.msra.mxu0 0.0
    %1933 = vmatprep.subr.mxu0 0.0
    %1934 = vmatpush1.msra.mxu0 0.0
    %1935 = vmatprep.subr.mxu0 0.0
    %1936 = vmatpush1.msra.mxu0 0.0
    %1937 = vmatprep.subr.mxu0 0.0
    %1938 = vmatpush1.msra.mxu0 0.0
    %1939 = vmatprep.subr.mxu0 0.0
    %1940 = vmatpush1.msra.mxu0 0.0
    %1941 = vmatprep.subr.mxu0 0.0
    %1942 = vmatpush1.msra.mxu0 0.0
    %1943 = vmatprep.subr.mxu0 0.0
    %1944 = vmatpush1.msra.mxu0 0.0
    %1945 = vmatprep.subr.mxu0 0.0
    %1946 = vmatpush1.msra.mxu0 0.0
    %1947 = vmatprep.subr.mxu0 0.0
    %1948 = vmatpush1.msra.mxu0 0.0
    %1949 = vmatprep.subr.mxu0 0.0
    %1950 = vmatpush1.msra.mxu0 0.0
    %1951 = vmatprep.subr.mxu0 0.0
    %1952 = vmatpush1.msra.mxu0 0.0
    %1953 = vmatprep.mubr.f32.mxu0 0.0
    %1954 = vmatmul.mubr.f32.gmra.mrb[0].mxu0 %v1885
    %v1955 = vpop.f32.mrb[0].mxu0
    %v1956 = vadd.f32 0.0, %v1955
    %v1957 = vpop.f32.mrb[0].mxu0
    %1958 = vdwg.mxu0
    %s1959 = scalar_lea.vmem %s13, 8
    %v1960 = vld [vmem:[%s1959] sm:$0xff]
    %v1962 = vsel %vm1883, %v1960, 0
    %1964 = vmatprep.subr.mxu0 0.0
    %1965 = vmatpush1.msra.mxu0 %v1887
    %1966 = vmatprep.subr.mxu0 0.0
    %1967 = vmatpush1.msra.mxu0 0.0
    %1968 = vmatprep.subr.mxu0 0.0
    %1969 = vmatpush1.msra.mxu0 0.0
    %1970 = vmatprep.subr.mxu0 0.0
    %1971 = vmatpush1.msra.mxu0 0.0
    %1972 = vmatprep.subr.mxu0 0.0
    %1973 = vmatpush1.msra.mxu0 0.0
    %1974 = vmatprep.subr.mxu0 0.0
    %1975 = vmatpush1.msra.mxu0 0.0
    %1976 = vmatprep.subr.mxu0 0.0
    %1977 = vmatpush1.msra.mxu0 0.0
    %1978 = vmatprep.subr.mxu0 0.0
    %1979 = vmatpush1.msra.mxu0 0.0
    %1980 = vmatprep.subr.mxu0 0.0
    %1981 = vmatpush1.msra.mxu0 0.0
    %1982 = vmatprep.subr.mxu0 0.0
    %1983 = vmatpush1.msra.mxu0 0.0
    %1984 = vmatprep.subr.mxu0 0.0
    %1985 = vmatpush1.msra.mxu0 0.0
    %1986 = vmatprep.subr.mxu0 0.0
    %1987 = vmatpush1.msra.mxu0 0.0
    %1988 = vmatprep.subr.mxu0 0.0
    %1989 = vmatpush1.msra.mxu0 0.0
    %1990 = vmatprep.subr.mxu0 0.0
    %1991 = vmatpush1.msra.mxu0 0.0
    %1992 = vmatprep.subr.mxu0 0.0
    %1993 = vmatpush1.msra.mxu0 0.0
    %1994 = vmatprep.subr.mxu0 0.0
    %1995 = vmatpush1.msra.mxu0 0.0
    %1996 = vmatprep.subr.mxu0 0.0
    %1997 = vmatpush1.msra.mxu0 0.0
    %1998 = vmatprep.subr.mxu0 0.0
    %1999 = vmatpush1.msra.mxu0 0.0
    %2000 = vmatprep.subr.mxu0 0.0
    %2001 = vmatpush1.msra.mxu0 0.0
    %2002 = vmatprep.subr.mxu0 0.0
    %2003 = vmatpush1.msra.mxu0 0.0
    %2004 = vmatprep.subr.mxu0 0.0
    %2005 = vmatpush1.msra.mxu0 0.0
    %2006 = vmatprep.subr.mxu0 0.0
    %2007 = vmatpush1.msra.mxu0 0.0
    %2008 = vmatprep.subr.mxu0 0.0
    %2009 = vmatpush1.msra.mxu0 0.0
    %2010 = vmatprep.subr.mxu0 0.0
    %2011 = vmatpush1.msra.mxu0 0.0
    %2012 = vmatprep.subr.mxu0 0.0
    %2013 = vmatpush1.msra.mxu0 0.0
    %2014 = vmatprep.subr.mxu0 0.0
    %2015 = vmatpush1.msra.mxu0 0.0
    %2016 = vmatprep.subr.mxu0 0.0
    %2017 = vmatpush1.msra.mxu0 0.0
    %2018 = vmatprep.subr.mxu0 0.0
    %2019 = vmatpush1.msra.mxu0 0.0
    %2020 = vmatprep.subr.mxu0 0.0
    %2021 = vmatpush1.msra.mxu0 0.0
    %2022 = vmatprep.subr.mxu0 0.0
    %2023 = vmatpush1.msra.mxu0 0.0
    %2024 = vmatprep.subr.mxu0 0.0
    %2025 = vmatpush1.msra.mxu0 0.0
    %2026 = vmatprep.subr.mxu0 0.0
    %2027 = vmatpush1.msra.mxu0 0.0
    %2028 = vmatprep.mubr.f32.mxu0 0.0
    %2029 = vmatmul.mubr.f32.gmra.mrb[0].mxu0 %v1962
    %v2030 = vpop.f32.mrb[0].mxu0
    %v2031 = vadd.f32 0.0, %v2030
    %v2032 = vpop.f32.mrb[0].mxu0
    %2033 = vdwg.mxu0
    %2035 = vrot.lane.b32.xlu0 %v2031, 64
    %v2036 = vpop.permute.xlu0 %2035
    %v2038 = vsel %vm488, %v1956, %v2036
    %v2039 = vld [vmem:[#allocation16] sm:$0xff]
    %v2040 = vld [vmem:[#allocation16 + $0x8] sm:$0xff]
    %v2041 = vld [vmem:[#allocation16 + $0x10] sm:$0xff]
    %v2042 = vld [vmem:[#allocation16 + $0x18] sm:$0xff]
    %v2043 = vld [vmem:[#allocation16 + $0x20] sm:$0xff]
    %v2044 = vld [vmem:[#allocation16 + $0x28] sm:$0xff]
    %v2045 = vld [vmem:[#allocation16 + $0x30] sm:$0xff]
    %v2046 = vld [vmem:[#allocation16 + $0x38] sm:$0xff]
    %v2047 = vld [vmem:[#allocation16 + $0x40] sm:$0xff]
    %v2048 = vld [vmem:[#allocation16 + $0x48] sm:$0xff]
    %v2049 = vld [vmem:[#allocation16 + $0x50] sm:$0xff]
    %v2050 = vld [vmem:[#allocation16 + $0x58] sm:$0xff]
    %v2051 = vld [vmem:[#allocation16 + $0x60] sm:$0xff]
    %v2052 = vld [vmem:[#allocation16 + $0x68] sm:$0xff]
    %v2053 = vld [vmem:[#allocation16 + $0x70] sm:$0xff]
    %v2054 = vld [vmem:[#allocation16 + $0x78] sm:$0xff]
    %v2055 = vld [vmem:[#allocation16 + $0x80] sm:$0xff]
    %v2056 = vld [vmem:[#allocation16 + $0x88] sm:$0xff]
    %v2057 = vld [vmem:[#allocation16 + $0x90] sm:$0xff]
    %v2058 = vld [vmem:[#allocation16 + $0x98] sm:$0xff]
    %v2059 = vld [vmem:[#allocation16 + $0xa0] sm:$0xff]
    %v2060 = vld [vmem:[#allocation16 + $0xa8] sm:$0xff]
    %v2061 = vld [vmem:[#allocation16 + $0xb0] sm:$0xff]
    %v2062 = vld [vmem:[#allocation16 + $0xb8] sm:$0xff]
    %v2063 = vld [vmem:[#allocation16 + $0xc0] sm:$0xff]
    %v2064 = vld [vmem:[#allocation16 + $0xc8] sm:$0xff]
    %v2065 = vld [vmem:[#allocation16 + $0xd0] sm:$0xff]
    %v2066 = vld [vmem:[#allocation16 + $0xd8] sm:$0xff]
    %v2067 = vld [vmem:[#allocation16 + $0xe0] sm:$0xff]
    %v2068 = vld [vmem:[#allocation16 + $0xe8] sm:$0xff]
    %v2069 = vld [vmem:[#allocation16 + $0xf0] sm:$0xff]
    %v2070 = vld [vmem:[#allocation16 + $0xf8] sm:$0xff]
    %v2071 = vld [vmem:[#allocation16 + $0x100] sm:$0xff]
    %v2072 = vld [vmem:[#allocation16 + $0x108] sm:$0xff]
    %v2073 = vld [vmem:[#allocation16 + $0x110] sm:$0xff]
    %v2074 = vld [vmem:[#allocation16 + $0x118] sm:$0xff]
    %v2075 = vld [vmem:[#allocation16 + $0x120] sm:$0xff]
    %v2076 = vld [vmem:[#allocation16 + $0x128] sm:$0xff]
    %v2077 = vld [vmem:[#allocation16 + $0x130] sm:$0xff]
    %v2078 = vld [vmem:[#allocation16 + $0x138] sm:$0xff]
    %v2079 = vld [vmem:[#allocation16 + $0x140] sm:$0xff]
    %v2080 = vld [vmem:[#allocation16 + $0x148] sm:$0xff]
    %v2081 = vld [vmem:[#allocation16 + $0x150] sm:$0xff]
    %v2082 = vld [vmem:[#allocation16 + $0x158] sm:$0xff]
    %v2083 = vld [vmem:[#allocation16 + $0x160] sm:$0xff]
    %v2084 = vld [vmem:[#allocation16 + $0x168] sm:$0xff]
    %v2085 = vld [vmem:[#allocation16 + $0x170] sm:$0xff]
    %v2086 = vld [vmem:[#allocation16 + $0x178] sm:$0xff]
    %v2087 = vld [vmem:[#allocation16 + $0x180] sm:$0xff]
    %v2088 = vld [vmem:[#allocation16 + $0x188] sm:$0xff]
    %v2089 = vld [vmem:[#allocation16 + $0x190] sm:$0xff]
    %v2090 = vld [vmem:[#allocation16 + $0x198] sm:$0xff]
    %v2091 = vld [vmem:[#allocation16 + $0x1a0] sm:$0xff]
    %v2092 = vld [vmem:[#allocation16 + $0x1a8] sm:$0xff]
    %v2093 = vld [vmem:[#allocation16 + $0x1b0] sm:$0xff]
    %v2094 = vld [vmem:[#allocation16 + $0x1b8] sm:$0xff]
    %v2095 = vld [vmem:[#allocation16 + $0x1c0] sm:$0xff]
    %v2096 = vld [vmem:[#allocation16 + $0x1c8] sm:$0xff]
    %v2097 = vld [vmem:[#allocation16 + $0x1d0] sm:$0xff]
    %v2098 = vld [vmem:[#allocation16 + $0x1d8] sm:$0xff]
    %v2099 = vld [vmem:[#allocation16 + $0x1e0] sm:$0xff]
    %v2100 = vld [vmem:[#allocation16 + $0x1e8] sm:$0xff]
    %v2101 = vld [vmem:[#allocation16 + $0x1f0] sm:$0xff]
    %v2102 = vld [vmem:[#allocation16 + $0x1f8] sm:$0xff]
    %v2103 = vld [vmem:[#allocation16 + $0x200] sm:$0xff]
    %v2104 = vld [vmem:[#allocation16 + $0x208] sm:$0xff]
    %v2105 = vld [vmem:[#allocation16 + $0x210] sm:$0xff]
    %v2106 = vld [vmem:[#allocation16 + $0x218] sm:$0xff]
    %v2107 = vld [vmem:[#allocation16 + $0x220] sm:$0xff]
    %v2108 = vld [vmem:[#allocation16 + $0x228] sm:$0xff]
    %v2109 = vld [vmem:[#allocation16 + $0x230] sm:$0xff]
    %v2110 = vld [vmem:[#allocation16 + $0x238] sm:$0xff]
    %v2111 = vld [vmem:[#allocation16 + $0x240] sm:$0xff]
    %v2112 = vld [vmem:[#allocation16 + $0x248] sm:$0xff]
    %v2113 = vld [vmem:[#allocation16 + $0x250] sm:$0xff]
    %v2114 = vld [vmem:[#allocation16 + $0x258] sm:$0xff]
    %v2115 = vld [vmem:[#allocation16 + $0x260] sm:$0xff]
    %v2116 = vld [vmem:[#allocation16 + $0x268] sm:$0xff]
    %v2117 = vld [vmem:[#allocation16 + $0x270] sm:$0xff]
    %v2118 = vld [vmem:[#allocation16 + $0x278] sm:$0xff]
    %v2119 = vld [vmem:[#allocation18] sm:$0x1]
    %v2120 = vld [vmem:[#allocation19] sm:$0xff]
    %v2121 = vld [vmem:[#allocation19 + $0x8] sm:$0xff]
    %v2122 = vld [vmem:[#allocation19 + $0x10] sm:$0xff]
    %v2123 = vld [vmem:[#allocation19 + $0x18] sm:$0xff]
    %v2124 = vld [vmem:[#allocation19 + $0x20] sm:$0xff]
    %v2125 = vld [vmem:[#allocation19 + $0x28] sm:$0xff]
    %v2126 = vld [vmem:[#allocation19 + $0x30] sm:$0xff]
    %v2127 = vld [vmem:[#allocation19 + $0x38] sm:$0xff]
    %v2128 = vld [vmem:[#allocation19 + $0x40] sm:$0xff]
    %v2129 = vld [vmem:[#allocation19 + $0x48] sm:$0xff]
    %v2130 = vld [vmem:[#allocation19 + $0x50] sm:$0xff]
    %v2131 = vld [vmem:[#allocation19 + $0x58] sm:$0xff]
    %v2132 = vld [vmem:[#allocation19 + $0x60] sm:$0xff]
    %v2133 = vld [vmem:[#allocation19 + $0x68] sm:$0xff]
    %v2134 = vld [vmem:[#allocation19 + $0x70] sm:$0xff]
    %v2135 = vld [vmem:[#allocation19 + $0x78] sm:$0xff]
    %v2136 = vld [vmem:[#allocation19 + $0x80] sm:$0xff]
    %v2137 = vld [vmem:[#allocation19 + $0x88] sm:$0xff]
    %v2138 = vld [vmem:[#allocation19 + $0x90] sm:$0xff]
    %v2139 = vld [vmem:[#allocation19 + $0x98] sm:$0xff]
    %v2140 = vld [vmem:[#allocation19 + $0xa0] sm:$0xff]
    %v2141 = vld [vmem:[#allocation19 + $0xa8] sm:$0xff]
    %v2142 = vld [vmem:[#allocation19 + $0xb0] sm:$0xff]
    %v2143 = vld [vmem:[#allocation19 + $0xb8] sm:$0xff]
    %v2144 = vld [vmem:[#allocation19 + $0xc0] sm:$0xff]
    %v2145 = vld [vmem:[#allocation19 + $0xc8] sm:$0xff]
    %v2146 = vld [vmem:[#allocation19 + $0xd0] sm:$0xff]
    %v2147 = vld [vmem:[#allocation19 + $0xd8] sm:$0xff]
    %v2148 = vld [vmem:[#allocation19 + $0xe0] sm:$0xff]
    %v2149 = vld [vmem:[#allocation19 + $0xe8] sm:$0xff]
    %v2150 = vld [vmem:[#allocation19 + $0xf0] sm:$0xff]
    %v2151 = vld [vmem:[#allocation19 + $0xf8] sm:$0xff]
    %v2152 = vld [vmem:[#allocation19 + $0x100] sm:$0xff]
    %v2153 = vld [vmem:[#allocation19 + $0x108] sm:$0xff]
    %v2154 = vld [vmem:[#allocation19 + $0x110] sm:$0xff]
    %v2155 = vld [vmem:[#allocation19 + $0x118] sm:$0xff]
    %v2156 = vld [vmem:[#allocation19 + $0x120] sm:$0xff]
    %v2157 = vld [vmem:[#allocation19 + $0x128] sm:$0xff]
    %v2158 = vld [vmem:[#allocation19 + $0x130] sm:$0xff]
    %v2159 = vld [vmem:[#allocation19 + $0x138] sm:$0xff]
    %v2160 = vld [vmem:[#allocation19 + $0x140] sm:$0xff]
    %v2161 = vld [vmem:[#allocation19 + $0x148] sm:$0xff]
    %v2162 = vld [vmem:[#allocation19 + $0x150] sm:$0xff]
    %v2163 = vld [vmem:[#allocation19 + $0x158] sm:$0xff]
    %v2164 = vld [vmem:[#allocation19 + $0x160] sm:$0xff]
    %v2165 = vld [vmem:[#allocation19 + $0x168] sm:$0xff]
    %v2166 = vld [vmem:[#allocation19 + $0x170] sm:$0xff]
    %v2167 = vld [vmem:[#allocation19 + $0x178] sm:$0xff]
    %v2168 = vld [vmem:[#allocation21] sm:$0x1]
    %v2170 = vrot.slane %v2038, 1
    %v2172 = vrot.slane %v2038, 2
    %v2174 = vrot.slane %v2038, 3
    %v2176 = vrot.slane %v2038, 4
    %v2179 = vlaneseq
    %v2180 = vshrl.u32 %v2179, 7
    %v2181 = vsub.s32 0, %v2180
    %v2182 = vrot.slane %v2119, %v2181
    %2184 = vmatprep.subr.mxu0 0.0
    %2185 = vmatpush1.msra.mxu0 %v2039
    %2186 = vmatprep.subr.mxu0 0.0
    %2187 = vmatpush1.msra.mxu0 %v2040
    %2188 = vmatprep.subr.mxu0 0.0
    %2189 = vmatpush1.msra.mxu0 %v2041
    %2190 = vmatprep.subr.mxu0 0.0
    %2191 = vmatpush1.msra.mxu0 %v2042
    %2192 = vmatprep.subr.mxu0 0.0
    %2193 = vmatpush1.msra.mxu0 %v2043
    %2194 = vmatprep.subr.mxu0 0.0
    %2195 = vmatpush1.msra.mxu0 %v2044
    %2196 = vmatprep.subr.mxu0 0.0
    %2197 = vmatpush1.msra.mxu0 %v2045
    %2198 = vmatprep.subr.mxu0 0.0
    %2199 = vmatpush1.msra.mxu0 %v2046
    %2200 = vmatprep.subr.mxu0 0.0
    %2201 = vmatpush1.msra.mxu0 %v2047
    %2202 = vmatprep.subr.mxu0 0.0
    %2203 = vmatpush1.msra.mxu0 %v2048
    %2204 = vmatprep.subr.mxu0 0.0
    %2205 = vmatpush1.msra.mxu0 %v2049
    %2206 = vmatprep.subr.mxu0 0.0
    %2207 = vmatpush1.msra.mxu0 %v2050
    %2208 = vmatprep.subr.mxu0 0.0
    %2209 = vmatpush1.msra.mxu0 %v2051
    %2210 = vmatprep.subr.mxu0 0.0
    %2211 = vmatpush1.msra.mxu0 %v2052
    %2212 = vmatprep.subr.mxu0 0.0
    %2213 = vmatpush1.msra.mxu0 %v2053
    %2214 = vmatprep.subr.mxu0 0.0
    %2215 = vmatpush1.msra.mxu0 %v2054
    %2216 = vmatprep.subr.mxu0 0.0
    %2217 = vmatpush1.msra.mxu0 %v2055
    %2218 = vmatprep.subr.mxu0 0.0
    %2219 = vmatpush1.msra.mxu0 %v2056
    %2220 = vmatprep.subr.mxu0 0.0
    %2221 = vmatpush1.msra.mxu0 %v2057
    %2222 = vmatprep.subr.mxu0 0.0
    %2223 = vmatpush1.msra.mxu0 %v2058
    %2224 = vmatprep.subr.mxu0 0.0
    %2225 = vmatpush1.msra.mxu0 %v2059
    %2226 = vmatprep.subr.mxu0 0.0
    %2227 = vmatpush1.msra.mxu0 %v2060
    %2228 = vmatprep.subr.mxu0 0.0
    %2229 = vmatpush1.msra.mxu0 %v2061
    %2230 = vmatprep.subr.mxu0 0.0
    %2231 = vmatpush1.msra.mxu0 %v2062
    %2232 = vmatprep.subr.mxu0 0.0
    %2233 = vmatpush1.msra.mxu0 %v2063
    %2234 = vmatprep.subr.mxu0 0.0
    %2235 = vmatpush1.msra.mxu0 %v2064
    %2236 = vmatprep.subr.mxu0 0.0
    %2237 = vmatpush1.msra.mxu0 %v2065
    %2238 = vmatprep.subr.mxu0 0.0
    %2239 = vmatpush1.msra.mxu0 %v2066
    %2240 = vmatprep.subr.mxu0 0.0
    %2241 = vmatpush1.msra.mxu0 %v2067
    %2242 = vmatprep.subr.mxu0 0.0
    %2243 = vmatpush1.msra.mxu0 %v2068
    %2244 = vmatprep.subr.mxu0 0.0
    %2245 = vmatpush1.msra.mxu0 %v2069
    %2246 = vmatprep.subr.mxu0 0.0
    %2247 = vmatpush1.msra.mxu0 %v2070
    %2248 = vmatprep.mubr.f32.mxu0 %v2170
    %2249 = vmatmul.mubr.f32.gmra.mrb[0].mxu0 %v2038
    %v2250 = vpop.f32.mrb[0].mxu0
    %v2251 = vadd.f32 %v2182, %v2250
    %v2252 = vpop.f32.mrb[0].mxu0
    %2253 = vdwg.mxu0
    %2254 = vmatprep.subr.mxu0 0.0
    %2255 = vmatpush1.msra.mxu0 %v2071
    %2256 = vmatprep.subr.mxu0 0.0
    %2257 = vmatpush1.msra.mxu0 %v2072
    %2258 = vmatprep.subr.mxu0 0.0
    %2259 = vmatpush1.msra.mxu0 %v2073
    %2260 = vmatprep.subr.mxu0 0.0
    %2261 = vmatpush1.msra.mxu0 %v2074
    %2262 = vmatprep.subr.mxu0 0.0
    %2263 = vmatpush1.msra.mxu0 %v2075
    %2264 = vmatprep.subr.mxu0 0.0
    %2265 = vmatpush1.msra.mxu0 %v2076
    %2266 = vmatprep.subr.mxu0 0.0
    %2267 = vmatpush1.msra.mxu0 %v2077
    %2268 = vmatprep.subr.mxu0 0.0
    %2269 = vmatpush1.msra.mxu0 %v2078
    %2270 = vmatprep.subr.mxu0 0.0
    %2271 = vmatpush1.msra.mxu0 %v2079
    %2272 = vmatprep.subr.mxu0 0.0
    %2273 = vmatpush1.msra.mxu0 %v2080
    %2274 = vmatprep.subr.mxu0 0.0
    %2275 = vmatpush1.msra.mxu0 %v2081
    %2276 = vmatprep.subr.mxu0 0.0
    %2277 = vmatpush1.msra.mxu0 %v2082
    %2278 = vmatprep.subr.mxu0 0.0
    %2279 = vmatpush1.msra.mxu0 %v2083
    %2280 = vmatprep.subr.mxu0 0.0
    %2281 = vmatpush1.msra.mxu0 %v2084
    %2282 = vmatprep.subr.mxu0 0.0
    %2283 = vmatpush1.msra.mxu0 %v2085
    %2284 = vmatprep.subr.mxu0 0.0
    %2285 = vmatpush1.msra.mxu0 %v2086
    %2286 = vmatprep.subr.mxu0 0.0
    %2287 = vmatpush1.msra.mxu0 %v2087
    %2288 = vmatprep.subr.mxu0 0.0
    %2289 = vmatpush1.msra.mxu0 %v2088
    %2290 = vmatprep.subr.mxu0 0.0
    %2291 = vmatpush1.msra.mxu0 %v2089
    %2292 = vmatprep.subr.mxu0 0.0
    %2293 = vmatpush1.msra.mxu0 %v2090
    %2294 = vmatprep.subr.mxu0 0.0
    %2295 = vmatpush1.msra.mxu0 %v2091
    %2296 = vmatprep.subr.mxu0 0.0
    %2297 = vmatpush1.msra.mxu0 %v2092
    %2298 = vmatprep.subr.mxu0 0.0
    %2299 = vmatpush1.msra.mxu0 %v2093
    %2300 = vmatprep.subr.mxu0 0.0
    %2301 = vmatpush1.msra.mxu0 %v2094
    %2302 = vmatprep.subr.mxu0 0.0
    %2303 = vmatpush1.msra.mxu0 %v2095
    %2304 = vmatprep.subr.mxu0 0.0
    %2305 = vmatpush1.msra.mxu0 %v2096
    %2306 = vmatprep.subr.mxu0 0.0
    %2307 = vmatpush1.msra.mxu0 %v2097
    %2308 = vmatprep.subr.mxu0 0.0
    %2309 = vmatpush1.msra.mxu0 %v2098
    %2310 = vmatprep.subr.mxu0 0.0
    %2311 = vmatpush1.msra.mxu0 %v2099
    %2312 = vmatprep.subr.mxu0 0.0
    %2313 = vmatpush1.msra.mxu0 %v2100
    %2314 = vmatprep.subr.mxu0 0.0
    %2315 = vmatpush1.msra.mxu0 %v2101
    %2316 = vmatprep.subr.mxu0 0.0
    %2317 = vmatpush1.msra.mxu0 %v2102
    %2318 = vmatprep.mubr.f32.mxu0 %v2174
    %2319 = vmatmul.mubr.f32.gmra.mrb[0].mxu0 %v2172
    %v2320 = vpop.f32.mrb[0].mxu0
    %v2321 = vadd.f32 %v2251, %v2320
    %v2322 = vpop.f32.mrb[0].mxu0
    %2323 = vdwg.mxu0
    %2324 = vmatprep.subr.mxu0 0.0
    %2325 = vmatpush1.msra.mxu0 %v2103
    %2326 = vmatprep.subr.mxu0 0.0
    %2327 = vmatpush1.msra.mxu0 %v2104
    %2328 = vmatprep.subr.mxu0 0.0
    %2329 = vmatpush1.msra.mxu0 %v2105
    %2330 = vmatprep.subr.mxu0 0.0
    %2331 = vmatpush1.msra.mxu0 %v2106
    %2332 = vmatprep.subr.mxu0 0.0
    %2333 = vmatpush1.msra.mxu0 %v2107
    %2334 = vmatprep.subr.mxu0 0.0
    %2335 = vmatpush1.msra.mxu0 %v2108
    %2336 = vmatprep.subr.mxu0 0.0
    %2337 = vmatpush1.msra.mxu0 %v2109
    %2338 = vmatprep.subr.mxu0 0.0
    %2339 = vmatpush1.msra.mxu0 %v2110
    %2340 = vmatprep.subr.mxu0 0.0
    %2341 = vmatpush1.msra.mxu0 %v2111
    %2342 = vmatprep.subr.mxu0 0.0
    %2343 = vmatpush1.msra.mxu0 %v2112
    %2344 = vmatprep.subr.mxu0 0.0
    %2345 = vmatpush1.msra.mxu0 %v2113
    %2346 = vmatprep.subr.mxu0 0.0
    %2347 = vmatpush1.msra.mxu0 %v2114
    %2348 = vmatprep.subr.mxu0 0.0
    %2349 = vmatpush1.msra.mxu0 %v2115
    %2350 = vmatprep.subr.mxu0 0.0
    %2351 = vmatpush1.msra.mxu0 %v2116
    %2352 = vmatprep.subr.mxu0 0.0
    %2353 = vmatpush1.msra.mxu0 %v2117
    %2354 = vmatprep.subr.mxu0 0.0
    %2355 = vmatpush1.msra.mxu0 %v2118
    %2356 = vmatprep.subr.mxu0 0.0
    %2357 = vmatpush1.msra.mxu0 0.0
    %2358 = vmatprep.subr.mxu0 0.0
    %2359 = vmatpush1.msra.mxu0 0.0
    %2360 = vmatprep.subr.mxu0 0.0
    %2361 = vmatpush1.msra.mxu0 0.0
    %2362 = vmatprep.subr.mxu0 0.0
    %2363 = vmatpush1.msra.mxu0 0.0
    %2364 = vmatprep.subr.mxu0 0.0
    %2365 = vmatpush1.msra.mxu0 0.0
    %2366 = vmatprep.subr.mxu0 0.0
    %2367 = vmatpush1.msra.mxu0 0.0
    %2368 = vmatprep.subr.mxu0 0.0
    %2369 = vmatpush1.msra.mxu0 0.0
    %2370 = vmatprep.subr.mxu0 0.0
    %2371 = vmatpush1.msra.mxu0 0.0
    %2372 = vmatprep.subr.mxu0 0.0
    %2373 = vmatpush1.msra.mxu0 0.0
    %2374 = vmatprep.subr.mxu0 0.0
    %2375 = vmatpush1.msra.mxu0 0.0
    %2376 = vmatprep.subr.mxu0 0.0
    %2377 = vmatpush1.msra.mxu0 0.0
    %2378 = vmatprep.subr.mxu0 0.0
    %2379 = vmatpush1.msra.mxu0 0.0
    %2380 = vmatprep.subr.mxu0 0.0
    %2381 = vmatpush1.msra.mxu0 0.0
    %2382 = vmatprep.subr.mxu0 0.0
    %2383 = vmatpush1.msra.mxu0 0.0
    %2384 = vmatprep.subr.mxu0 0.0
    %2385 = vmatpush1.msra.mxu0 0.0
    %2386 = vmatprep.subr.mxu0 0.0
    %2387 = vmatpush1.msra.mxu0 0.0
    %2388 = vmatprep.mubr.f32.mxu0 0.0
    %2389 = vmatmul.mubr.f32.gmra.mrb[0].mxu0 %v2176
    %v2390 = vpop.f32.mrb[0].mxu0
    %v2391 = vadd.f32 %v2321, %v2390
    %v2392 = vpop.f32.mrb[0].mxu0
    %2393 = vdwg.mxu0
    %vm2394 = vcmp.ge.f32.partialorder %v2391, 0.0
    %v2395 = vmul.f32 %v2391, 0.01
    %v2396 = vsel %vm2394, %v2391, %v2395
    %v2398 = vrot.slane %v2396, 1
    %v2400 = vrot.slane %v2396, 2
    %v2403 = vlaneseq
    %v2404 = vshrl.u32 %v2403, 7
    %v2405 = vsub.s32 0, %v2404
    %v2406 = vrot.slane %v2168, %v2405
    %2408 = vmatprep.subr.mxu0 0.0
    %2409 = vmatpush1.msra.mxu0 %v2120
    %2410 = vmatprep.subr.mxu0 0.0
    %2411 = vmatpush1.msra.mxu0 %v2121
    %2412 = vmatprep.subr.mxu0 0.0
    %2413 = vmatpush1.msra.mxu0 %v2122
    %2414 = vmatprep.subr.mxu0 0.0
    %2415 = vmatpush1.msra.mxu0 %v2123
    %2416 = vmatprep.subr.mxu0 0.0
    %2417 = vmatpush1.msra.mxu0 %v2124
    %2418 = vmatprep.subr.mxu0 0.0
    %2419 = vmatpush1.msra.mxu0 %v2125
    %2420 = vmatprep.subr.mxu0 0.0
    %2421 = vmatpush1.msra.mxu0 %v2126
    %2422 = vmatprep.subr.mxu0 0.0
    %2423 = vmatpush1.msra.mxu0 %v2127
    %2424 = vmatprep.subr.mxu0 0.0
    %2425 = vmatpush1.msra.mxu0 %v2128
    %2426 = vmatprep.subr.mxu0 0.0
    %2427 = vmatpush1.msra.mxu0 %v2129
    %2428 = vmatprep.subr.mxu0 0.0
    %2429 = vmatpush1.msra.mxu0 %v2130
    %2430 = vmatprep.subr.mxu0 0.0
    %2431 = vmatpush1.msra.mxu0 %v2131
    %2432 = vmatprep.subr.mxu0 0.0
    %2433 = vmatpush1.msra.mxu0 %v2132
    %2434 = vmatprep.subr.mxu0 0.0
    %2435 = vmatpush1.msra.mxu0 %v2133
    %2436 = vmatprep.subr.mxu0 0.0
    %2437 = vmatpush1.msra.mxu0 %v2134
    %2438 = vmatprep.subr.mxu0 0.0
    %2439 = vmatpush1.msra.mxu0 %v2135
    %2440 = vmatprep.subr.mxu0 0.0
    %2441 = vmatpush1.msra.mxu0 %v2136
    %2442 = vmatprep.subr.mxu0 0.0
    %2443 = vmatpush1.msra.mxu0 %v2137
    %2444 = vmatprep.subr.mxu0 0.0
    %2445 = vmatpush1.msra.mxu0 %v2138
    %2446 = vmatprep.subr.mxu0 0.0
    %2447 = vmatpush1.msra.mxu0 %v2139
    %2448 = vmatprep.subr.mxu0 0.0
    %2449 = vmatpush1.msra.mxu0 %v2140
    %2450 = vmatprep.subr.mxu0 0.0
    %2451 = vmatpush1.msra.mxu0 %v2141
    %2452 = vmatprep.subr.mxu0 0.0
    %2453 = vmatpush1.msra.mxu0 %v2142
    %2454 = vmatprep.subr.mxu0 0.0
    %2455 = vmatpush1.msra.mxu0 %v2143
    %2456 = vmatprep.subr.mxu0 0.0
    %2457 = vmatpush1.msra.mxu0 %v2144
    %2458 = vmatprep.subr.mxu0 0.0
    %2459 = vmatpush1.msra.mxu0 %v2145
    %2460 = vmatprep.subr.mxu0 0.0
    %2461 = vmatpush1.msra.mxu0 %v2146
    %2462 = vmatprep.subr.mxu0 0.0
    %2463 = vmatpush1.msra.mxu0 %v2147
    %2464 = vmatprep.subr.mxu0 0.0
    %2465 = vmatpush1.msra.mxu0 %v2148
    %2466 = vmatprep.subr.mxu0 0.0
    %2467 = vmatpush1.msra.mxu0 %v2149
    %2468 = vmatprep.subr.mxu0 0.0
    %2469 = vmatpush1.msra.mxu0 %v2150
    %2470 = vmatprep.subr.mxu0 0.0
    %2471 = vmatpush1.msra.mxu0 %v2151
    %2472 = vmatprep.mubr.f32.mxu0 %v2398
    %2473 = vmatmul.mubr.f32.gmra.mrb[0].mxu0 %v2396
    %v2474 = vpop.f32.mrb[0].mxu0
    %v2475 = vadd.f32 %v2406, %v2474
    %v2476 = vpop.f32.mrb[0].mxu0
    %2477 = vdwg.mxu0
    %2478 = vmatprep.subr.mxu0 0.0
    %2479 = vmatpush1.msra.mxu0 %v2152
    %2480 = vmatprep.subr.mxu0 0.0
    %2481 = vmatpush1.msra.mxu0 %v2153
    %2482 = vmatprep.subr.mxu0 0.0
    %2483 = vmatpush1.msra.mxu0 %v2154
    %2484 = vmatprep.subr.mxu0 0.0
    %2485 = vmatpush1.msra.mxu0 %v2155
    %2486 = vmatprep.subr.mxu0 0.0
    %2487 = vmatpush1.msra.mxu0 %v2156
    %2488 = vmatprep.subr.mxu0 0.0
    %2489 = vmatpush1.msra.mxu0 %v2157
    %2490 = vmatprep.subr.mxu0 0.0
    %2491 = vmatpush1.msra.mxu0 %v2158
    %2492 = vmatprep.subr.mxu0 0.0
    %2493 = vmatpush1.msra.mxu0 %v2159
    %2494 = vmatprep.subr.mxu0 0.0
    %2495 = vmatpush1.msra.mxu0 %v2160
    %2496 = vmatprep.subr.mxu0 0.0
    %2497 = vmatpush1.msra.mxu0 %v2161
    %2498 = vmatprep.subr.mxu0 0.0
    %2499 = vmatpush1.msra.mxu0 %v2162
    %2500 = vmatprep.subr.mxu0 0.0
    %2501 = vmatpush1.msra.mxu0 %v2163
    %2502 = vmatprep.subr.mxu0 0.0
    %2503 = vmatpush1.msra.mxu0 %v2164
    %2504 = vmatprep.subr.mxu0 0.0
    %2505 = vmatpush1.msra.mxu0 %v2165
    %2506 = vmatprep.subr.mxu0 0.0
    %2507 = vmatpush1.msra.mxu0 %v2166
    %2508 = vmatprep.subr.mxu0 0.0
    %2509 = vmatpush1.msra.mxu0 %v2167
    %2510 = vmatprep.subr.mxu0 0.0
    %2511 = vmatpush1.msra.mxu0 0.0
    %2512 = vmatprep.subr.mxu0 0.0
    %2513 = vmatpush1.msra.mxu0 0.0
    %2514 = vmatprep.subr.mxu0 0.0
    %2515 = vmatpush1.msra.mxu0 0.0
    %2516 = vmatprep.subr.mxu0 0.0
    %2517 = vmatpush1.msra.mxu0 0.0
    %2518 = vmatprep.subr.mxu0 0.0
    %2519 = vmatpush1.msra.mxu0 0.0
    %2520 = vmatprep.subr.mxu0 0.0
    %2521 = vmatpush1.msra.mxu0 0.0
    %2522 = vmatprep.subr.mxu0 0.0
    %2523 = vmatpush1.msra.mxu0 0.0
    %2524 = vmatprep.subr.mxu0 0.0
    %2525 = vmatpush1.msra.mxu0 0.0
    %2526 = vmatprep.subr.mxu0 0.0
    %2527 = vmatpush1.msra.mxu0 0.0
    %2528 = vmatprep.subr.mxu0 0.0
    %2529 = vmatpush1.msra.mxu0 0.0
    %2530 = vmatprep.subr.mxu0 0.0
    %2531 = vmatpush1.msra.mxu0 0.0
    %2532 = vmatprep.subr.mxu0 0.0
    %2533 = vmatpush1.msra.mxu0 0.0
    %2534 = vmatprep.subr.mxu0 0.0
    %2535 = vmatpush1.msra.mxu0 0.0
    %2536 = vmatprep.subr.mxu0 0.0
    %2537 = vmatpush1.msra.mxu0 0.0
    %2538 = vmatprep.subr.mxu0 0.0
    %2539 = vmatpush1.msra.mxu0 0.0
    %2540 = vmatprep.subr.mxu0 0.0
    %2541 = vmatpush1.msra.mxu0 0.0
    %2542 = vmatprep.mubr.f32.mxu0 0.0
    %2543 = vmatmul.mubr.f32.gmra.mrb[0].mxu0 %v2400
    %v2544 = vpop.f32.mrb[0].mxu0
    %v2545 = vadd.f32 %v2475, %v2544
    %v2546 = vpop.f32.mrb[0].mxu0
    %2547 = vdwg.mxu0
    %v2548 = vtanh.pop %v2545
    %2549 = vrot.lane.b32.xlu0 %v2038, 64
    %v2550 = vpop.permute.xlu0 %2549
    %v2552 = vmul.f32 %v2548, 1.442695
    %v2553 = vpow.pop %v2552
    %v2555 = vrot.slane %v2553, 5
    %v2557 = vmul.f32 %v2550, %v2555
    %v2558 = vlaneseq
    %v2559 = vshrl.u32 %v2558, 7
    %v2560 = vsub.s32 3, %v2559
    %v2561 = vrot.slane %v2557, %v2560
    %v2562 = vlaneseq
    %v2563 = vshrl.u32 %v2562, 7
    %v2564 = vsub.s32 4, %v2563
    %v2565 = vrot.slane %v2557, %v2564
    %v2566 = vsel %vm710, %v2561, %v2557
    %v2567 = vsel %vm471, %v2566, %v2565
    %s2568 = scalar_lea.vmem [#allocation16], 640
    %v2569 = vld [vmem:[%s2568] sm:$0xff]
    %v2570 = vld [vmem:[%s2568 + $0x8] sm:$0xff]
    %v2571 = vld [vmem:[%s2568 + $0x10] sm:$0xff]
    %v2572 = vld [vmem:[%s2568 + $0x18] sm:$0xff]
    %v2573 = vld [vmem:[%s2568 + $0x20] sm:$0xff]
    %v2574 = vld [vmem:[%s2568 + $0x28] sm:$0xff]
    %v2575 = vld [vmem:[%s2568 + $0x30] sm:$0xff]
    %v2576 = vld [vmem:[%s2568 + $0x38] sm:$0xff]
    %v2577 = vld [vmem:[%s2568 + $0x40] sm:$0xff]
    %v2578 = vld [vmem:[%s2568 + $0x48] sm:$0xff]
    %v2579 = vld [vmem:[%s2568 + $0x50] sm:$0xff]
    %v2580 = vld [vmem:[%s2568 + $0x58] sm:$0xff]
    %v2581 = vld [vmem:[%s2568 + $0x60] sm:$0xff]
    %v2582 = vld [vmem:[%s2568 + $0x68] sm:$0xff]
    %v2583 = vld [vmem:[%s2568 + $0x70] sm:$0xff]
    %v2584 = vld [vmem:[%s2568 + $0x78] sm:$0xff]
    %v2585 = vld [vmem:[%s2568 + $0x80] sm:$0xff]
    %v2586 = vld [vmem:[%s2568 + $0x88] sm:$0xff]
    %v2587 = vld [vmem:[%s2568 + $0x90] sm:$0xff]
    %v2588 = vld [vmem:[%s2568 + $0x98] sm:$0xff]
    %v2589 = vld [vmem:[%s2568 + $0xa0] sm:$0xff]
    %v2590 = vld [vmem:[%s2568 + $0xa8] sm:$0xff]
    %v2591 = vld [vmem:[%s2568 + $0xb0] sm:$0xff]
    %v2592 = vld [vmem:[%s2568 + $0xb8] sm:$0xff]
    %v2593 = vld [vmem:[%s2568 + $0xc0] sm:$0xff]
    %v2594 = vld [vmem:[%s2568 + $0xc8] sm:$0xff]
    %v2595 = vld [vmem:[%s2568 + $0xd0] sm:$0xff]
    %v2596 = vld [vmem:[%s2568 + $0xd8] sm:$0xff]
    %v2597 = vld [vmem:[%s2568 + $0xe0] sm:$0xff]
    %v2598 = vld [vmem:[%s2568 + $0xe8] sm:$0xff]
    %v2599 = vld [vmem:[%s2568 + $0xf0] sm:$0xff]
    %v2600 = vld [vmem:[%s2568 + $0xf8] sm:$0xff]
    %v2601 = vld [vmem:[%s2568 + $0x100] sm:$0xff]
    %v2602 = vld [vmem:[%s2568 + $0x108] sm:$0xff]
    %v2603 = vld [vmem:[%s2568 + $0x110] sm:$0xff]
    %v2604 = vld [vmem:[%s2568 + $0x118] sm:$0xff]
    %v2605 = vld [vmem:[%s2568 + $0x120] sm:$0xff]
    %v2606 = vld [vmem:[%s2568 + $0x128] sm:$0xff]
    %v2607 = vld [vmem:[%s2568 + $0x130] sm:$0xff]
    %v2608 = vld [vmem:[%s2568 + $0x138] sm:$0xff]
    %v2609 = vld [vmem:[%s2568 + $0x140] sm:$0xff]
    %v2610 = vld [vmem:[%s2568 + $0x148] sm:$0xff]
    %v2611 = vld [vmem:[%s2568 + $0x150] sm:$0xff]
    %v2612 = vld [vmem:[%s2568 + $0x158] sm:$0xff]
    %v2613 = vld [vmem:[%s2568 + $0x160] sm:$0xff]
    %v2614 = vld [vmem:[%s2568 + $0x168] sm:$0xff]
    %v2615 = vld [vmem:[%s2568 + $0x170] sm:$0xff]
    %v2616 = vld [vmem:[%s2568 + $0x178] sm:$0xff]
    %v2617 = vld [vmem:[%s2568 + $0x180] sm:$0xff]
    %v2618 = vld [vmem:[%s2568 + $0x188] sm:$0xff]
    %v2619 = vld [vmem:[%s2568 + $0x190] sm:$0xff]
    %v2620 = vld [vmem:[%s2568 + $0x198] sm:$0xff]
    %v2621 = vld [vmem:[%s2568 + $0x1a0] sm:$0xff]
    %v2622 = vld [vmem:[%s2568 + $0x1a8] sm:$0xff]
    %v2623 = vld [vmem:[%s2568 + $0x1b0] sm:$0xff]
    %v2624 = vld [vmem:[%s2568 + $0x1b8] sm:$0xff]
    %v2625 = vld [vmem:[%s2568 + $0x1c0] sm:$0xff]
    %v2626 = vld [vmem:[%s2568 + $0x1c8] sm:$0xff]
    %v2627 = vld [vmem:[%s2568 + $0x1d0] sm:$0xff]
    %v2628 = vld [vmem:[%s2568 + $0x1d8] sm:$0xff]
    %v2629 = vld [vmem:[%s2568 + $0x1e0] sm:$0xff]
    %v2630 = vld [vmem:[%s2568 + $0x1e8] sm:$0xff]
    %v2631 = vld [vmem:[%s2568 + $0x1f0] sm:$0xff]
    %v2632 = vld [vmem:[%s2568 + $0x1f8] sm:$0xff]
    %v2633 = vld [vmem:[%s2568 + $0x200] sm:$0xff]
    %v2634 = vld [vmem:[%s2568 + $0x208] sm:$0xff]
    %v2635 = vld [vmem:[%s2568 + $0x210] sm:$0xff]
    %v2636 = vld [vmem:[%s2568 + $0x218] sm:$0xff]
    %v2637 = vld [vmem:[%s2568 + $0x220] sm:$0xff]
    %v2638 = vld [vmem:[%s2568 + $0x228] sm:$0xff]
    %v2639 = vld [vmem:[%s2568 + $0x230] sm:$0xff]
    %v2640 = vld [vmem:[%s2568 + $0x238] sm:$0xff]
    %v2641 = vld [vmem:[%s2568 + $0x240] sm:$0xff]
    %v2642 = vld [vmem:[%s2568 + $0x248] sm:$0xff]
    %v2643 = vld [vmem:[%s2568 + $0x250] sm:$0xff]
    %v2644 = vld [vmem:[%s2568 + $0x258] sm:$0xff]
    %v2645 = vld [vmem:[%s2568 + $0x260] sm:$0xff]
    %v2646 = vld [vmem:[%s2568 + $0x268] sm:$0xff]
    %v2647 = vld [vmem:[%s2568 + $0x270] sm:$0xff]
    %v2648 = vld [vmem:[%s2568 + $0x278] sm:$0xff]
    %s2649 = scalar_lea.vmem [#allocation18], 1
    %v2650 = vld [vmem:[%s2649] sm:$0x1]
    %s2651 = scalar_lea.vmem [#allocation19], 384
    %v2652 = vld [vmem:[%s2651] sm:$0xff]
    %v2653 = vld [vmem:[%s2651 + $0x8] sm:$0xff]
    %v2654 = vld [vmem:[%s2651 + $0x10] sm:$0xff]
    %v2655 = vld [vmem:[%s2651 + $0x18] sm:$0xff]
    %v2656 = vld [vmem:[%s2651 + $0x20] sm:$0xff]
    %v2657 = vld [vmem:[%s2651 + $0x28] sm:$0xff]
    %v2658 = vld [vmem:[%s2651 + $0x30] sm:$0xff]
    %v2659 = vld [vmem:[%s2651 + $0x38] sm:$0xff]
    %v2660 = vld [vmem:[%s2651 + $0x40] sm:$0xff]
    %v2661 = vld [vmem:[%s2651 + $0x48] sm:$0xff]
    %v2662 = vld [vmem:[%s2651 + $0x50] sm:$0xff]
    %v2663 = vld [vmem:[%s2651 + $0x58] sm:$0xff]
    %v2664 = vld [vmem:[%s2651 + $0x60] sm:$0xff]
    %v2665 = vld [vmem:[%s2651 + $0x68] sm:$0xff]
    %v2666 = vld [vmem:[%s2651 + $0x70] sm:$0xff]
    %v2667 = vld [vmem:[%s2651 + $0x78] sm:$0xff]
    %v2668 = vld [vmem:[%s2651 + $0x80] sm:$0xff]
    %v2669 = vld [vmem:[%s2651 + $0x88] sm:$0xff]
    %v2670 = vld [vmem:[%s2651 + $0x90] sm:$0xff]
    %v2671 = vld [vmem:[%s2651 + $0x98] sm:$0xff]
    %v2672 = vld [vmem:[%s2651 + $0xa0] sm:$0xff]
    %v2673 = vld [vmem:[%s2651 + $0xa8] sm:$0xff]
    %v2674 = vld [vmem:[%s2651 + $0xb0] sm:$0xff]
    %v2675 = vld [vmem:[%s2651 + $0xb8] sm:$0xff]
    %v2676 = vld [vmem:[%s2651 + $0xc0] sm:$0xff]
    %v2677 = vld [vmem:[%s2651 + $0xc8] sm:$0xff]
    %v2678 = vld [vmem:[%s2651 + $0xd0] sm:$0xff]
    %v2679 = vld [vmem:[%s2651 + $0xd8] sm:$0xff]
    %v2680 = vld [vmem:[%s2651 + $0xe0] sm:$0xff]
    %v2681 = vld [vmem:[%s2651 + $0xe8] sm:$0xff]
    %v2682 = vld [vmem:[%s2651 + $0xf0] sm:$0xff]
    %v2683 = vld [vmem:[%s2651 + $0xf8] sm:$0xff]
    %v2684 = vld [vmem:[%s2651 + $0x100] sm:$0xff]
    %v2685 = vld [vmem:[%s2651 + $0x108] sm:$0xff]
    %v2686 = vld [vmem:[%s2651 + $0x110] sm:$0xff]
    %v2687 = vld [vmem:[%s2651 + $0x118] sm:$0xff]
    %v2688 = vld [vmem:[%s2651 + $0x120] sm:$0xff]
    %v2689 = vld [vmem:[%s2651 + $0x128] sm:$0xff]
    %v2690 = vld [vmem:[%s2651 + $0x130] sm:$0xff]
    %v2691 = vld [vmem:[%s2651 + $0x138] sm:$0xff]
    %v2692 = vld [vmem:[%s2651 + $0x140] sm:$0xff]
    %v2693 = vld [vmem:[%s2651 + $0x148] sm:$0xff]
    %v2694 = vld [vmem:[%s2651 + $0x150] sm:$0xff]
    %v2695 = vld [vmem:[%s2651 + $0x158] sm:$0xff]
    %v2696 = vld [vmem:[%s2651 + $0x160] sm:$0xff]
    %v2697 = vld [vmem:[%s2651 + $0x168] sm:$0xff]
    %v2698 = vld [vmem:[%s2651 + $0x170] sm:$0xff]
    %v2699 = vld [vmem:[%s2651 + $0x178] sm:$0xff]
    %s2700 = scalar_lea.vmem [#allocation21], 1
    %v2701 = vld [vmem:[%s2700] sm:$0x1]
    %v2703 = vrot.slane %v2567, 1
    %v2705 = vrot.slane %v2567, 2
    %v2707 = vrot.slane %v2567, 3
    %v2709 = vrot.slane %v2567, 4
    %v2712 = vlaneseq
    %v2713 = vshrl.u32 %v2712, 7
    %v2714 = vsub.s32 0, %v2713
    %v2715 = vrot.slane %v2650, %v2714
    %2717 = vmatprep.subr.mxu0 0.0
    %2718 = vmatpush1.msra.mxu0 %v2569
    %2719 = vmatprep.subr.mxu0 0.0
    %2720 = vmatpush1.msra.mxu0 %v2570
    %2721 = vmatprep.subr.mxu0 0.0
    %2722 = vmatpush1.msra.mxu0 %v2571
    %2723 = vmatprep.subr.mxu0 0.0
    %2724 = vmatpush1.msra.mxu0 %v2572
    %2725 = vmatprep.subr.mxu0 0.0
    %2726 = vmatpush1.msra.mxu0 %v2573
    %2727 = vmatprep.subr.mxu0 0.0
    %2728 = vmatpush1.msra.mxu0 %v2574
    %2729 = vmatprep.subr.mxu0 0.0
    %2730 = vmatpush1.msra.mxu0 %v2575
    %2731 = vmatprep.subr.mxu0 0.0
    %2732 = vmatpush1.msra.mxu0 %v2576
    %2733 = vmatprep.subr.mxu0 0.0
    %2734 = vmatpush1.msra.mxu0 %v2577
    %2735 = vmatprep.subr.mxu0 0.0
    %2736 = vmatpush1.msra.mxu0 %v2578
    %2737 = vmatprep.subr.mxu0 0.0
    %2738 = vmatpush1.msra.mxu0 %v2579
    %2739 = vmatprep.subr.mxu0 0.0
    %2740 = vmatpush1.msra.mxu0 %v2580
    %2741 = vmatprep.subr.mxu0 0.0
    %2742 = vmatpush1.msra.mxu0 %v2581
    %2743 = vmatprep.subr.mxu0 0.0
    %2744 = vmatpush1.msra.mxu0 %v2582
    %2745 = vmatprep.subr.mxu0 0.0
    %2746 = vmatpush1.msra.mxu0 %v2583
    %2747 = vmatprep.subr.mxu0 0.0
    %2748 = vmatpush1.msra.mxu0 %v2584
    %2749 = vmatprep.subr.mxu0 0.0
    %2750 = vmatpush1.msra.mxu0 %v2585
    %2751 = vmatprep.subr.mxu0 0.0
    %2752 = vmatpush1.msra.mxu0 %v2586
    %2753 = vmatprep.subr.mxu0 0.0
    %2754 = vmatpush1.msra.mxu0 %v2587
    %2755 = vmatprep.subr.mxu0 0.0
    %2756 = vmatpush1.msra.mxu0 %v2588
    %2757 = vmatprep.subr.mxu0 0.0
    %2758 = vmatpush1.msra.mxu0 %v2589
    %2759 = vmatprep.subr.mxu0 0.0
    %2760 = vmatpush1.msra.mxu0 %v2590
    %2761 = vmatprep.subr.mxu0 0.0
    %2762 = vmatpush1.msra.mxu0 %v2591
    %2763 = vmatprep.subr.mxu0 0.0
    %2764 = vmatpush1.msra.mxu0 %v2592
    %2765 = vmatprep.subr.mxu0 0.0
    %2766 = vmatpush1.msra.mxu0 %v2593
    %2767 = vmatprep.subr.mxu0 0.0
    %2768 = vmatpush1.msra.mxu0 %v2594
    %2769 = vmatprep.subr.mxu0 0.0
    %2770 = vmatpush1.msra.mxu0 %v2595
    %2771 = vmatprep.subr.mxu0 0.0
    %2772 = vmatpush1.msra.mxu0 %v2596
    %2773 = vmatprep.subr.mxu0 0.0
    %2774 = vmatpush1.msra.mxu0 %v2597
    %2775 = vmatprep.subr.mxu0 0.0
    %2776 = vmatpush1.msra.mxu0 %v2598
    %2777 = vmatprep.subr.mxu0 0.0
    %2778 = vmatpush1.msra.mxu0 %v2599
    %2779 = vmatprep.subr.mxu0 0.0
    %2780 = vmatpush1.msra.mxu0 %v2600
    %2781 = vmatprep.mubr.f32.mxu0 %v2703
    %2782 = vmatmul.mubr.f32.gmra.mrb[0].mxu0 %v2567
    %v2783 = vpop.f32.mrb[0].mxu0
    %v2784 = vadd.f32 %v2715, %v2783
    %v2785 = vpop.f32.mrb[0].mxu0
    %2786 = vdwg.mxu0
    %2787 = vmatprep.subr.mxu0 0.0
    %2788 = vmatpush1.msra.mxu0 %v2601
    %2789 = vmatprep.subr.mxu0 0.0
    %2790 = vmatpush1.msra.mxu0 %v2602
    %2791 = vmatprep.subr.mxu0 0.0
    %2792 = vmatpush1.msra.mxu0 %v2603
    %2793 = vmatprep.subr.mxu0 0.0
    %2794 = vmatpush1.msra.mxu0 %v2604
    %2795 = vmatprep.subr.mxu0 0.0
    %2796 = vmatpush1.msra.mxu0 %v2605
    %2797 = vmatprep.subr.mxu0 0.0
    %2798 = vmatpush1.msra.mxu0 %v2606
    %2799 = vmatprep.subr.mxu0 0.0
    %2800 = vmatpush1.msra.mxu0 %v2607
    %2801 = vmatprep.subr.mxu0 0.0
    %2802 = vmatpush1.msra.mxu0 %v2608
    %2803 = vmatprep.subr.mxu0 0.0
    %2804 = vmatpush1.msra.mxu0 %v2609
    %2805 = vmatprep.subr.mxu0 0.0
    %2806 = vmatpush1.msra.mxu0 %v2610
    %2807 = vmatprep.subr.mxu0 0.0
    %2808 = vmatpush1.msra.mxu0 %v2611
    %2809 = vmatprep.subr.mxu0 0.0
    %2810 = vmatpush1.msra.mxu0 %v2612
    %2811 = vmatprep.subr.mxu0 0.0
    %2812 = vmatpush1.msra.mxu0 %v2613
    %2813 = vmatprep.subr.mxu0 0.0
    %2814 = vmatpush1.msra.mxu0 %v2614
    %2815 = vmatprep.subr.mxu0 0.0
    %2816 = vmatpush1.msra.mxu0 %v2615
    %2817 = vmatprep.subr.mxu0 0.0
    %2818 = vmatpush1.msra.mxu0 %v2616
    %2819 = vmatprep.subr.mxu0 0.0
    %2820 = vmatpush1.msra.mxu0 %v2617
    %2821 = vmatprep.subr.mxu0 0.0
    %2822 = vmatpush1.msra.mxu0 %v2618
    %2823 = vmatprep.subr.mxu0 0.0
    %2824 = vmatpush1.msra.mxu0 %v2619
    %2825 = vmatprep.subr.mxu0 0.0
    %2826 = vmatpush1.msra.mxu0 %v2620
    %2827 = vmatprep.subr.mxu0 0.0
    %2828 = vmatpush1.msra.mxu0 %v2621
    %2829 = vmatprep.subr.mxu0 0.0
    %2830 = vmatpush1.msra.mxu0 %v2622
    %2831 = vmatprep.subr.mxu0 0.0
    %2832 = vmatpush1.msra.mxu0 %v2623
    %2833 = vmatprep.subr.mxu0 0.0
    %2834 = vmatpush1.msra.mxu0 %v2624
    %2835 = vmatprep.subr.mxu0 0.0
    %2836 = vmatpush1.msra.mxu0 %v2625
    %2837 = vmatprep.subr.mxu0 0.0
    %2838 = vmatpush1.msra.mxu0 %v2626
    %2839 = vmatprep.subr.mxu0 0.0
    %2840 = vmatpush1.msra.mxu0 %v2627
    %2841 = vmatprep.subr.mxu0 0.0
    %2842 = vmatpush1.msra.mxu0 %v2628
    %2843 = vmatprep.subr.mxu0 0.0
    %2844 = vmatpush1.msra.mxu0 %v2629
    %2845 = vmatprep.subr.mxu0 0.0
    %2846 = vmatpush1.msra.mxu0 %v2630
    %2847 = vmatprep.subr.mxu0 0.0
    %2848 = vmatpush1.msra.mxu0 %v2631
    %2849 = vmatprep.subr.mxu0 0.0
    %2850 = vmatpush1.msra.mxu0 %v2632
    %2851 = vmatprep.mubr.f32.mxu0 %v2707
    %2852 = vmatmul.mubr.f32.gmra.mrb[0].mxu0 %v2705
    %v2853 = vpop.f32.mrb[0].mxu0
    %v2854 = vadd.f32 %v2784, %v2853
    %v2855 = vpop.f32.mrb[0].mxu0
    %2856 = vdwg.mxu0
    %2857 = vmatprep.subr.mxu0 0.0
    %2858 = vmatpush1.msra.mxu0 %v2633
    %2859 = vmatprep.subr.mxu0 0.0
    %2860 = vmatpush1.msra.mxu0 %v2634
    %2861 = vmatprep.subr.mxu0 0.0
    %2862 = vmatpush1.msra.mxu0 %v2635
    %2863 = vmatprep.subr.mxu0 0.0
    %2864 = vmatpush1.msra.mxu0 %v2636
    %2865 = vmatprep.subr.mxu0 0.0
    %2866 = vmatpush1.msra.mxu0 %v2637
    %2867 = vmatprep.subr.mxu0 0.0
    %2868 = vmatpush1.msra.mxu0 %v2638
    %2869 = vmatprep.subr.mxu0 0.0
    %2870 = vmatpush1.msra.mxu0 %v2639
    %2871 = vmatprep.subr.mxu0 0.0
    %2872 = vmatpush1.msra.mxu0 %v2640
    %2873 = vmatprep.subr.mxu0 0.0
    %2874 = vmatpush1.msra.mxu0 %v2641
    %2875 = vmatprep.subr.mxu0 0.0
    %2876 = vmatpush1.msra.mxu0 %v2642
    %2877 = vmatprep.subr.mxu0 0.0
    %2878 = vmatpush1.msra.mxu0 %v2643
    %2879 = vmatprep.subr.mxu0 0.0
    %2880 = vmatpush1.msra.mxu0 %v2644
    %2881 = vmatprep.subr.mxu0 0.0
    %2882 = vmatpush1.msra.mxu0 %v2645
    %2883 = vmatprep.subr.mxu0 0.0
    %2884 = vmatpush1.msra.mxu0 %v2646
    %2885 = vmatprep.subr.mxu0 0.0
    %2886 = vmatpush1.msra.mxu0 %v2647
    %2887 = vmatprep.subr.mxu0 0.0
    %2888 = vmatpush1.msra.mxu0 %v2648
    %2889 = vmatprep.subr.mxu0 0.0
    %2890 = vmatpush1.msra.mxu0 0.0
    %2891 = vmatprep.subr.mxu0 0.0
    %2892 = vmatpush1.msra.mxu0 0.0
    %2893 = vmatprep.subr.mxu0 0.0
    %2894 = vmatpush1.msra.mxu0 0.0
    %2895 = vmatprep.subr.mxu0 0.0
    %2896 = vmatpush1.msra.mxu0 0.0
    %2897 = vmatprep.subr.mxu0 0.0
    %2898 = vmatpush1.msra.mxu0 0.0
    %2899 = vmatprep.subr.mxu0 0.0
    %2900 = vmatpush1.msra.mxu0 0.0
    %2901 = vmatprep.subr.mxu0 0.0
    %2902 = vmatpush1.msra.mxu0 0.0
    %2903 = vmatprep.subr.mxu0 0.0
    %2904 = vmatpush1.msra.mxu0 0.0
    %2905 = vmatprep.subr.mxu0 0.0
    %2906 = vmatpush1.msra.mxu0 0.0
    %2907 = vmatprep.subr.mxu0 0.0
    %2908 = vmatpush1.msra.mxu0 0.0
    %2909 = vmatprep.subr.mxu0 0.0
    %2910 = vmatpush1.msra.mxu0 0.0
    %2911 = vmatprep.subr.mxu0 0.0
    %2912 = vmatpush1.msra.mxu0 0.0
    %2913 = vmatprep.subr.mxu0 0.0
    %2914 = vmatpush1.msra.mxu0 0.0
    %2915 = vmatprep.subr.mxu0 0.0
    %2916 = vmatpush1.msra.mxu0 0.0
    %2917 = vmatprep.subr.mxu0 0.0
    %2918 = vmatpush1.msra.mxu0 0.0
    %2919 = vmatprep.subr.mxu0 0.0
    %2920 = vmatpush1.msra.mxu0 0.0
    %2921 = vmatprep.mubr.f32.mxu0 0.0
    %2922 = vmatmul.mubr.f32.gmra.mrb[0].mxu0 %v2709
    %v2923 = vpop.f32.mrb[0].mxu0
    %v2924 = vadd.f32 %v2854, %v2923
    %v2925 = vpop.f32.mrb[0].mxu0
    %2926 = vdwg.mxu0
    %vm2927 = vcmp.ge.f32.partialorder %v2924, 0.0
    %v2928 = vmul.f32 %v2924, 0.01
    %v2929 = vsel %vm2927, %v2924, %v2928
    %v2931 = vrot.slane %v2929, 1
    %v2933 = vrot.slane %v2929, 2
    %v2936 = vlaneseq
    %v2937 = vshrl.u32 %v2936, 7
    %v2938 = vsub.s32 0, %v2937
    %v2939 = vrot.slane %v2701, %v2938
    %2941 = vmatprep.subr.mxu0 0.0
    %2942 = vmatpush1.msra.mxu0 %v2652
    %2943 = vmatprep.subr.mxu0 0.0
    %2944 = vmatpush1.msra.mxu0 %v2653
    %2945 = vmatprep.subr.mxu0 0.0
    %2946 = vmatpush1.msra.mxu0 %v2654
    %2947 = vmatprep.subr.mxu0 0.0
    %2948 = vmatpush1.msra.mxu0 %v2655
    %2949 = vmatprep.subr.mxu0 0.0
    %2950 = vmatpush1.msra.mxu0 %v2656
    %2951 = vmatprep.subr.mxu0 0.0
    %2952 = vmatpush1.msra.mxu0 %v2657
    %2953 = vmatprep.subr.mxu0 0.0
    %2954 = vmatpush1.msra.mxu0 %v2658
    %2955 = vmatprep.subr.mxu0 0.0
    %2956 = vmatpush1.msra.mxu0 %v2659
    %2957 = vmatprep.subr.mxu0 0.0
    %2958 = vmatpush1.msra.mxu0 %v2660
    %2959 = vmatprep.subr.mxu0 0.0
    %2960 = vmatpush1.msra.mxu0 %v2661
    %2961 = vmatprep.subr.mxu0 0.0
    %2962 = vmatpush1.msra.mxu0 %v2662
    %2963 = vmatprep.subr.mxu0 0.0
    %2964 = vmatpush1.msra.mxu0 %v2663
    %2965 = vmatprep.subr.mxu0 0.0
    %2966 = vmatpush1.msra.mxu0 %v2664
    %2967 = vmatprep.subr.mxu0 0.0
    %2968 = vmatpush1.msra.mxu0 %v2665
    %2969 = vmatprep.subr.mxu0 0.0
    %2970 = vmatpush1.msra.mxu0 %v2666
    %2971 = vmatprep.subr.mxu0 0.0
    %2972 = vmatpush1.msra.mxu0 %v2667
    %2973 = vmatprep.subr.mxu0 0.0
    %2974 = vmatpush1.msra.mxu0 %v2668
    %2975 = vmatprep.subr.mxu0 0.0
    %2976 = vmatpush1.msra.mxu0 %v2669
    %2977 = vmatprep.subr.mxu0 0.0
    %2978 = vmatpush1.msra.mxu0 %v2670
    %2979 = vmatprep.subr.mxu0 0.0
    %2980 = vmatpush1.msra.mxu0 %v2671
    %2981 = vmatprep.subr.mxu0 0.0
    %2982 = vmatpush1.msra.mxu0 %v2672
    %2983 = vmatprep.subr.mxu0 0.0
    %2984 = vmatpush1.msra.mxu0 %v2673
    %2985 = vmatprep.subr.mxu0 0.0
    %2986 = vmatpush1.msra.mxu0 %v2674
    %2987 = vmatprep.subr.mxu0 0.0
    %2988 = vmatpush1.msra.mxu0 %v2675
    %2989 = vmatprep.subr.mxu0 0.0
    %2990 = vmatpush1.msra.mxu0 %v2676
    %2991 = vmatprep.subr.mxu0 0.0
    %2992 = vmatpush1.msra.mxu0 %v2677
    %2993 = vmatprep.subr.mxu0 0.0
    %2994 = vmatpush1.msra.mxu0 %v2678
    %2995 = vmatprep.subr.mxu0 0.0
    %2996 = vmatpush1.msra.mxu0 %v2679
    %2997 = vmatprep.subr.mxu0 0.0
    %2998 = vmatpush1.msra.mxu0 %v2680
    %2999 = vmatprep.subr.mxu0 0.0
    %3000 = vmatpush1.msra.mxu0 %v2681
    %3001 = vmatprep.subr.mxu0 0.0
    %3002 = vmatpush1.msra.mxu0 %v2682
    %3003 = vmatprep.subr.mxu0 0.0
    %3004 = vmatpush1.msra.mxu0 %v2683
    %3005 = vmatprep.mubr.f32.mxu0 %v2931
    %3006 = vmatmul.mubr.f32.gmra.mrb[0].mxu0 %v2929
    %v3007 = vpop.f32.mrb[0].mxu0
    %v3008 = vadd.f32 %v2939, %v3007
    %v3009 = vpop.f32.mrb[0].mxu0
    %3010 = vdwg.mxu0
    %3011 = vmatprep.subr.mxu0 0.0
    %3012 = vmatpush1.msra.mxu0 %v2684
    %3013 = vmatprep.subr.mxu0 0.0
    %3014 = vmatpush1.msra.mxu0 %v2685
    %3015 = vmatprep.subr.mxu0 0.0
    %3016 = vmatpush1.msra.mxu0 %v2686
    %3017 = vmatprep.subr.mxu0 0.0
    %3018 = vmatpush1.msra.mxu0 %v2687
    %3019 = vmatprep.subr.mxu0 0.0
    %3020 = vmatpush1.msra.mxu0 %v2688
    %3021 = vmatprep.subr.mxu0 0.0
    %3022 = vmatpush1.msra.mxu0 %v2689
    %3023 = vmatprep.subr.mxu0 0.0
    %3024 = vmatpush1.msra.mxu0 %v2690
    %3025 = vmatprep.subr.mxu0 0.0
    %3026 = vmatpush1.msra.mxu0 %v2691
    %3027 = vmatprep.subr.mxu0 0.0
    %3028 = vmatpush1.msra.mxu0 %v2692
    %3029 = vmatprep.subr.mxu0 0.0
    %3030 = vmatpush1.msra.mxu0 %v2693
    %3031 = vmatprep.subr.mxu0 0.0
    %3032 = vmatpush1.msra.mxu0 %v2694
    %3033 = vmatprep.subr.mxu0 0.0
    %3034 = vmatpush1.msra.mxu0 %v2695
    %3035 = vmatprep.subr.mxu0 0.0
    %3036 = vmatpush1.msra.mxu0 %v2696
    %3037 = vmatprep.subr.mxu0 0.0
    %3038 = vmatpush1.msra.mxu0 %v2697
    %3039 = vmatprep.subr.mxu0 0.0
    %3040 = vmatpush1.msra.mxu0 %v2698
    %3041 = vmatprep.subr.mxu0 0.0
    %3042 = vmatpush1.msra.mxu0 %v2699
    %3043 = vmatprep.subr.mxu0 0.0
    %3044 = vmatpush1.msra.mxu0 0.0
    %3045 = vmatprep.subr.mxu0 0.0
    %3046 = vmatpush1.msra.mxu0 0.0
    %3047 = vmatprep.subr.mxu0 0.0
    %3048 = vmatpush1.msra.mxu0 0.0
    %3049 = vmatprep.subr.mxu0 0.0
    %3050 = vmatpush1.msra.mxu0 0.0
    %3051 = vmatprep.subr.mxu0 0.0
    %3052 = vmatpush1.msra.mxu0 0.0
    %3053 = vmatprep.subr.mxu0 0.0
    %3054 = vmatpush1.msra.mxu0 0.0
    %3055 = vmatprep.subr.mxu0 0.0
    %3056 = vmatpush1.msra.mxu0 0.0
    %3057 = vmatprep.subr.mxu0 0.0
    %3058 = vmatpush1.msra.mxu0 0.0
    %3059 = vmatprep.subr.mxu0 0.0
    %3060 = vmatpush1.msra.mxu0 0.0
    %3061 = vmatprep.subr.mxu0 0.0
    %3062 = vmatpush1.msra.mxu0 0.0
    %3063 = vmatprep.subr.mxu0 0.0
    %3064 = vmatpush1.msra.mxu0 0.0
    %3065 = vmatprep.subr.mxu0 0.0
    %3066 = vmatpush1.msra.mxu0 0.0
    %3067 = vmatprep.subr.mxu0 0.0
    %3068 = vmatpush1.msra.mxu0 0.0
    %3069 = vmatprep.subr.mxu0 0.0
    %3070 = vmatpush1.msra.mxu0 0.0
    %3071 = vmatprep.subr.mxu0 0.0
    %3072 = vmatpush1.msra.mxu0 0.0
    %3073 = vmatprep.subr.mxu0 0.0
    %3074 = vmatpush1.msra.mxu0 0.0
    %3075 = vmatprep.mubr.f32.mxu0 0.0
    %3076 = vmatmul.mubr.f32.gmra.mrb[0].mxu0 %v2933
    %v3077 = vpop.f32.mrb[0].mxu0
    %v3078 = vadd.f32 %v3008, %v3077
    %v3079 = vpop.f32.mrb[0].mxu0
    %3080 = vdwg.mxu0
    %v3081 = vtanh.pop %v3078
    %v3083 = vrot.slane %v3081, 5
    %3084 = vrot.lane.b32.xlu0 %v3083, 64
    %v3085 = vpop.permute.xlu0 %3084
    %v3087 = vadd.f32 %v2557, %v3085
    %v3088 = vsub.f32 %v2557, %v3085
    %3090 = vrot.lane.b32.xlu0 %v3087, 64
    %v3091 = vpop.permute.xlu0 %3090
    %3094 = vrot.lane.b32.xlu0 %v3088, 64
    %v3095 = vpop.permute.xlu0 %3094
    %v3097 = vsel %vm488, %v3091, %v3095
    %v3098 = vld [vmem:[%s1] sm:$0x3]
    %v3100 = vrot.slane %v3098, 5
    %v3102 = vadd.f32 %v3097, %v3100
    %v3103 = vld [vmem:[#allocation2] sm:$0xff]
    %v3104 = vld [vmem:[#allocation2 + $0x8] sm:$0xff]
    %v3105 = vld [vmem:[#allocation2 + $0x10] sm:$0xff]
    %v3106 = vld [vmem:[#allocation2 + $0x18] sm:$0xff]
    %v3107 = vld [vmem:[#allocation2 + $0x20] sm:$0xff]
    %v3108 = vld [vmem:[#allocation2 + $0x28] sm:$0xff]
    %v3109 = vld [vmem:[#allocation2 + $0x30] sm:$0xff]
    %v3110 = vld [vmem:[#allocation2 + $0x38] sm:$0xff]
    %v3111 = vld [vmem:[#allocation2 + $0x40] sm:$0xff]
    %v3112 = vld [vmem:[#allocation2 + $0x48] sm:$0xff]
    %v3113 = vld [vmem:[#allocation2 + $0x50] sm:$0xff]
    %v3114 = vld [vmem:[#allocation2 + $0x58] sm:$0xff]
    %v3115 = vld [vmem:[#allocation2 + $0x60] sm:$0xff]
    %v3116 = vld [vmem:[#allocation2 + $0x68] sm:$0xff]
    %v3117 = vld [vmem:[#allocation2 + $0x70] sm:$0xff]
    %v3118 = vld [vmem:[#allocation2 + $0x78] sm:$0xff]
    %s3119 = scalar_lea.vmem [#allocation2], 128
    %v3120 = vld [vmem:[%s3119] sm:$0xff]
    %v3121 = vld [vmem:[%s3119 + $0x8] sm:$0xff]
    %v3122 = vld [vmem:[%s3119 + $0x10] sm:$0xff]
    %v3123 = vld [vmem:[%s3119 + $0x18] sm:$0xff]
    %v3124 = vld [vmem:[%s3119 + $0x20] sm:$0xff]
    %v3125 = vld [vmem:[%s3119 + $0x28] sm:$0xff]
    %v3126 = vld [vmem:[%s3119 + $0x30] sm:$0xff]
    %v3127 = vld [vmem:[%s3119 + $0x38] sm:$0xff]
    %v3128 = vld [vmem:[%s3119 + $0x40] sm:$0xff]
    %v3129 = vld [vmem:[%s3119 + $0x48] sm:$0xff]
    %v3130 = vld [vmem:[%s3119 + $0x50] sm:$0xff]
    %v3131 = vld [vmem:[%s3119 + $0x58] sm:$0xff]
    %v3132 = vld [vmem:[%s3119 + $0x60] sm:$0xff]
    %v3133 = vld [vmem:[%s3119 + $0x68] sm:$0xff]
    %v3134 = vld [vmem:[%s3119 + $0x70] sm:$0xff]
    %v3135 = vld [vmem:[%s3119 + $0x78] sm:$0xff]
    %v3137 = vrot.slane %v3102, 4
    %3139 = vmatprep.subr.mxu0 0.0
    %3140 = vmatpush1.msra.mxu0 %v3120
    %3141 = vmatprep.subr.mxu0 0.0
    %3142 = vmatpush1.msra.mxu0 %v3121
    %3143 = vmatprep.subr.mxu0 0.0
    %3144 = vmatpush1.msra.mxu0 %v3122
    %3145 = vmatprep.subr.mxu0 0.0
    %3146 = vmatpush1.msra.mxu0 %v3123
    %3147 = vmatprep.subr.mxu0 0.0
    %3148 = vmatpush1.msra.mxu0 %v3124
    %3149 = vmatprep.subr.mxu0 0.0
    %3150 = vmatpush1.msra.mxu0 %v3125
    %3151 = vmatprep.subr.mxu0 0.0
    %3152 = vmatpush1.msra.mxu0 %v3126
    %3153 = vmatprep.subr.mxu0 0.0
    %3154 = vmatpush1.msra.mxu0 %v3127
    %3155 = vmatprep.subr.mxu0 0.0
    %3156 = vmatpush1.msra.mxu0 %v3128
    %3157 = vmatprep.subr.mxu0 0.0
    %3158 = vmatpush1.msra.mxu0 %v3129
    %3159 = vmatprep.subr.mxu0 0.0
    %3160 = vmatpush1.msra.mxu0 %v3130
    %3161 = vmatprep.subr.mxu0 0.0
    %3162 = vmatpush1.msra.mxu0 %v3131
    %3163 = vmatprep.subr.mxu0 0.0
    %3164 = vmatpush1.msra.mxu0 %v3132
    %3165 = vmatprep.subr.mxu0 0.0
    %3166 = vmatpush1.msra.mxu0 %v3133
    %3167 = vmatprep.subr.mxu0 0.0
    %3168 = vmatpush1.msra.mxu0 %v3134
    %3169 = vmatprep.subr.mxu0 0.0
    %3170 = vmatpush1.msra.mxu0 %v3135
    %3171 = vmatprep.subr.mxu0 0.0
    %3172 = vmatpush1.msra.mxu0 0.0
    %3173 = vmatprep.subr.mxu0 0.0
    %3174 = vmatpush1.msra.mxu0 0.0
    %3175 = vmatprep.subr.mxu0 0.0
    %3176 = vmatpush1.msra.mxu0 0.0
    %3177 = vmatprep.subr.mxu0 0.0
    %3178 = vmatpush1.msra.mxu0 0.0
    %3179 = vmatprep.subr.mxu0 0.0
    %3180 = vmatpush1.msra.mxu0 0.0
    %3181 = vmatprep.subr.mxu0 0.0
    %3182 = vmatpush1.msra.mxu0 0.0
    %3183 = vmatprep.subr.mxu0 0.0
    %3184 = vmatpush1.msra.mxu0 0.0
    %3185 = vmatprep.subr.mxu0 0.0
    %3186 = vmatpush1.msra.mxu0 0.0
    %3187 = vmatprep.subr.mxu0 0.0
    %3188 = vmatpush1.msra.mxu0 0.0
    %3189 = vmatprep.subr.mxu0 0.0
    %3190 = vmatpush1.msra.mxu0 0.0
    %3191 = vmatprep.subr.mxu0 0.0
    %3192 = vmatpush1.msra.mxu0 0.0
    %3193 = vmatprep.subr.mxu0 0.0
    %3194 = vmatpush1.msra.mxu0 0.0
    %3195 = vmatprep.subr.mxu0 0.0
    %3196 = vmatpush1.msra.mxu0 0.0
    %3197 = vmatprep.subr.mxu0 0.0
    %3198 = vmatpush1.msra.mxu0 0.0
    %3199 = vmatprep.subr.mxu0 0.0
    %3200 = vmatpush1.msra.mxu0 0.0
    %3201 = vmatprep.subr.mxu0 0.0
    %3202 = vmatpush1.msra.mxu0 0.0
    %3203 = vmatprep.mubr.f32.mxu0 0.0
    %3204 = vmatmul.mubr.f32.gmra.mrb[0].mxu0 %v3137
    %v3205 = vpop.f32.mrb[0].mxu0
    %v3206 = vadd.f32 0.0, %v3205
    %v3207 = vpop.f32.mrb[0].mxu0
    %3208 = vdwg.mxu0
    %v3209 = vrot.slane %v3102, 3
    %3211 = vmatprep.subr.mxu0 0.0
    %3212 = vmatpush1.msra.mxu0 %v3103
    %3213 = vmatprep.subr.mxu0 0.0
    %3214 = vmatpush1.msra.mxu0 %v3104
    %3215 = vmatprep.subr.mxu0 0.0
    %3216 = vmatpush1.msra.mxu0 %v3105
    %3217 = vmatprep.subr.mxu0 0.0
    %3218 = vmatpush1.msra.mxu0 %v3106
    %3219 = vmatprep.subr.mxu0 0.0
    %3220 = vmatpush1.msra.mxu0 %v3107
    %3221 = vmatprep.subr.mxu0 0.0
    %3222 = vmatpush1.msra.mxu0 %v3108
    %3223 = vmatprep.subr.mxu0 0.0
    %3224 = vmatpush1.msra.mxu0 %v3109
    %3225 = vmatprep.subr.mxu0 0.0
    %3226 = vmatpush1.msra.mxu0 %v3110
    %3227 = vmatprep.subr.mxu0 0.0
    %3228 = vmatpush1.msra.mxu0 %v3111
    %3229 = vmatprep.subr.mxu0 0.0
    %3230 = vmatpush1.msra.mxu0 %v3112
    %3231 = vmatprep.subr.mxu0 0.0
    %3232 = vmatpush1.msra.mxu0 %v3113
    %3233 = vmatprep.subr.mxu0 0.0
    %3234 = vmatpush1.msra.mxu0 %v3114
    %3235 = vmatprep.subr.mxu0 0.0
    %3236 = vmatpush1.msra.mxu0 %v3115
    %3237 = vmatprep.subr.mxu0 0.0
    %3238 = vmatpush1.msra.mxu0 %v3116
    %3239 = vmatprep.subr.mxu0 0.0
    %3240 = vmatpush1.msra.mxu0 %v3117
    %3241 = vmatprep.subr.mxu0 0.0
    %3242 = vmatpush1.msra.mxu0 %v3118
    %3243 = vmatprep.subr.mxu0 0.0
    %3244 = vmatpush1.msra.mxu0 0.0
    %3245 = vmatprep.subr.mxu0 0.0
    %3246 = vmatpush1.msra.mxu0 0.0
    %3247 = vmatprep.subr.mxu0 0.0
    %3248 = vmatpush1.msra.mxu0 0.0
    %3249 = vmatprep.subr.mxu0 0.0
    %3250 = vmatpush1.msra.mxu0 0.0
    %3251 = vmatprep.subr.mxu0 0.0
    %3252 = vmatpush1.msra.mxu0 0.0
    %3253 = vmatprep.subr.mxu0 0.0
    %3254 = vmatpush1.msra.mxu0 0.0
    %3255 = vmatprep.subr.mxu0 0.0
    %3256 = vmatpush1.msra.mxu0 0.0
    %3257 = vmatprep.subr.mxu0 0.0
    %3258 = vmatpush1.msra.mxu0 0.0
    %3259 = vmatprep.subr.mxu0 0.0
    %3260 = vmatpush1.msra.mxu0 0.0
    %3261 = vmatprep.subr.mxu0 0.0
    %3262 = vmatpush1.msra.mxu0 0.0
    %3263 = vmatprep.subr.mxu0 0.0
    %3264 = vmatpush1.msra.mxu0 0.0
    %3265 = vmatprep.subr.mxu0 0.0
    %3266 = vmatpush1.msra.mxu0 0.0
    %3267 = vmatprep.subr.mxu0 0.0
    %3268 = vmatpush1.msra.mxu0 0.0
    %3269 = vmatprep.subr.mxu0 0.0
    %3270 = vmatpush1.msra.mxu0 0.0
    %3271 = vmatprep.subr.mxu0 0.0
    %3272 = vmatpush1.msra.mxu0 0.0
    %3273 = vmatprep.subr.mxu0 0.0
    %3274 = vmatpush1.msra.mxu0 0.0
    %3275 = vmatprep.mubr.f32.mxu0 0.0
    %3276 = vmatmul.mubr.f32.gmra.mrb[0].mxu0 %v3209
    %v3277 = vpop.f32.mrb[0].mxu0
    %v3278 = vadd.f32 %v3206, %v3277
    %v3279 = vpop.f32.mrb[0].mxu0
    %3280 = vdwg.mxu0
    %vm3281 = vcmask 516096
    %3282 = vst.msk [vmem:[%s18] sm:$0x1] %vm3281, %v3278
    // Predicated region
    $region126: #{forward.1} parent=1 // pred_check
      _
    $region127: #{forward.1} parent=1 // pred_check_branch
      %3284 = sbr.rel (0) target = $region129
    $region128: #{forward.1} parent=1 // pred_region
      _
    $region129: #{forward.1} parent=1 // pred_fallthru
      _
    // Predicated region
    $region130: #{forward.1} parent=1 // pred_check
      _
    $region131: #{forward.1} parent=1 // pred_check_branch
      %3286 = sbr.rel (0) target = $region133
    $region132: #{forward.1} parent=1 // pred_region
      _
    $region133: #{forward.1} parent=1 // pred_fallthru
      _
    %3287 = vsyncpa [#allocation3], 1
    %3288 = vsyncpa [#allocation5], 1
    %3289 = vsyncpa [#allocation8], 1
    %3290 = vsyncpa [#allocation11], 1
    %3291 = vsyncpa [#allocation14], 1
    %3292 = vsyncpa [#allocation17], 1
    %3293 = vsyncpa [#allocation20], 1

</llo_original>
